<compile_context>
chip_gen: v7x
topology: tpu7x:2x2x1
jax: 0.10.0
libtpu: 0.0.40
codegen_flags: <defaults>
</compile_context>

<pallas_src>
import math

import numpy as np

import jax
import jax.numpy as jnp
from jax import lax
from jax.experimental import pallas as pl
from jax.experimental.pallas import tpu as pltpu

B = 2          # batch
S = 8          # per-modality sequence length
F = 16         # feature_dim
D = 32         # transformer_dim (d_model)
T = 3          # number of modalities == transformer sequence length
L = 2          # num encoder layers
H = 4          # nhead
HD = D // H    # head dim
FF = 2048      # PyTorch TransformerEncoderLayer default dim_feedforward
EPS = 1e-5     # LayerNorm eps (PyTorch default)
R = B * T      # token rows in the fused slab (row r = t*B + b)
NS = 8         # sublane padding per key block -> vreg-aligned static slices


def _layer_norm(x, g, b):
    mu = jnp.mean(x, axis=-1, keepdims=True)
    xc = x - mu
    var = jnp.mean(xc * xc, axis=-1, keepdims=True)
    return xc * lax.rsqrt(var + EPS) * g + b


# -----------------------------------------------------------------------------
# Single fused kernel: projections + mean, 2 encoder layers, attention pooling.
# All activations are 2-D (rows, lanes) slabs; batching structure is carried by
# host-packed 0/1 averaging / gather matrices, so there are no in-kernel concats,
# no multi-dim relayout reshapes and exactly one score matmul per layer.
# -----------------------------------------------------------------------------
def _fused_kernel(z_ref, avg_ref, mask_ref, btok_ref, wstack_ref, mblk_ref,
                  gq_ref, gk_ref,
                  ipw_ref, ipb_ref, opw_ref, opb_ref, n1g_ref, n1b_ref,
                  w1_ref, b1_ref, w2_ref, b2_ref, n2g_ref, n2b_ref,
                  aw_ref, ab_ref, o_ref):
    f32 = jnp.float32
    bf16 = jnp.bfloat16

    # ---- Stage 1: mean over S commuted with the Linear; 2 tiny matmuls, no loops. ----
    # zbar6[r=(t,b), :] = mean_s z_cat[b, s, :]   (averaging matrix, f32 -> exact-ish)
    zbar6 = jnp.dot(avg_ref[...], z_ref[...], preferred_element_type=f32)     # (R, 3F)
    lhs = zbar6 * mask_ref[...]                       # keep only modality-t lane block
    x = jnp.dot(lhs.astype(bf16), wstack_ref[...],
                preferred_element_type=f32) + btok_ref[...]                   # (R, D)

    # ---- Stage 2: two post-norm nn.TransformerEncoderLayer (nhead=4, relu FFN). ----
    for l in range(L):
        qkv = jnp.dot(x.astype(bf16), ipw_ref[l],
                      preferred_element_type=f32) + ipb_ref[l]                # (R, 3D)
        q = qkv[:, :D]                                                        # (R, D)
        kv = qkv[:, D:]                                                       # (R, 2D)

        # Row-gather all (key j, query row) pairs in one slab: block j occupies
        # sublanes [j*NS, j*NS+R).  qq row = query token's q, kk/vv row = key token's k/v.
        qq = jnp.dot(gq_ref[...], q, preferred_element_type=f32)             # (T*NS, D)
        kv_g = jnp.dot(gk_ref[...], kv, preferred_element_type=f32)          # (T*NS, 2D)
        kk = kv_g[:, :D]
        vv = kv_g[:, D:]

        # ONE score matmul per layer: (q_i * k_j) @ (same-head mask / sqrt(HD))
        # -> per-head scores replicated across each head's HD lanes.
        s = jnp.dot((qq * kk).astype(bf16), mblk_ref[...],
                    preferred_element_type=f32)                               # (T*NS, D)

        # Key-axis softmax as elementwise ops across the three vreg-aligned slabs.
        s_j = [s[j * NS:j * NS + R] for j in range(T)]                        # (R, D) each
        v_j = [vv[j * NS:j * NS + R] for j in range(T)]
        m = s_j[0]
        for j in range(1, T):
            m = jnp.maximum(m, s_j[j])
        e_j = [jnp.exp(sj - m) for sj in s_j]
        denom = e_j[0]
        for j in range(1, T):
            denom = denom + e_j[j]
        rinv = pl.reciprocal(denom, approx=True)
        ctx = e_j[0] * v_j[0]
        for j in range(1, T):
            ctx = ctx + e_j[j] * v_j[j]
        attn = ctx * rinv                                                     # (R, D)

        attn = jnp.dot(attn.astype(bf16), opw_ref[l],
                       preferred_element_type=f32) + opb_ref[l]
        x = _layer_norm(x + attn, n1g_ref[l], n1b_ref[l])

        # FFN (bf16 weights / operands, f32 accumulation).
        h1 = jnp.dot(x.astype(bf16), w1_ref[l],
                     preferred_element_type=f32) + b1_ref[l]                  # (R, FF)
        h1 = jnp.maximum(h1, 0.0)
        ff = jnp.dot(h1.astype(bf16), w2_ref[l],
                     preferred_element_type=f32) + b2_ref[l]                  # (R, D)
        x = _layer_norm(x + ff, n2g_ref[l], n2b_ref[l])

    # ---- Stage 3: attention pooling (Linear(D,1) as lane reduce, softmax over T). ----
    sc = jnp.sum(x * aw_ref[...], axis=-1, keepdims=True) + ab_ref[...]       # (R, 1)
    x_t = [x[t * B:(t + 1) * B] for t in range(T)]                            # (B, D) each
    c_t = [sc[t * B:(t + 1) * B] for t in range(T)]                           # (B, 1) each
    cm = c_t[0]
    for t in range(1, T):
        cm = jnp.maximum(cm, c_t[t])
    w_t = [jnp.exp(ct - cm) for ct in c_t]
    wden = w_t[0]
    for t in range(1, T):
        wden = wden + w_t[t]
    winv = pl.reciprocal(wden, approx=True)
    out = w_t[0] * x_t[0]
    for t in range(1, T):
        out = out + w_t[t] * x_t[t]
    o_ref[...] = out * winv                                                   # (B, D)


def multimodal_feature_block(z1, z2, z3, kparams):
    # Lane-dense input packing: (B, S, 3F) concatenated then flattened to (B*S, 3F).
    z2d = jnp.concatenate([z1, z2, z3], axis=-1).reshape(B * S, T * F)
    args = (z2d,) + tuple(kparams)
    return pl.pallas_call(
        _fused_kernel,
        out_shape=jax.ShapeDtypeStruct((B, D), jnp.float32),
        in_specs=[pl.BlockSpec(memory_space=pltpu.MemorySpace.VMEM)] * len(args),
        out_specs=pl.BlockSpec(memory_space=pltpu.MemorySpace.VMEM),
    )(*args)


# -----------------------------------------------------------------------------
# fp32 "PyTorch module" parameters (deterministic synthetic init).
# -----------------------------------------------------------------------------
def init_params(key):
    ks = iter(jax.random.split(key, 16))
    scale = 0.05

    def w(shape):
        return scale * jax.random.normal(next(ks), shape, jnp.float32)

    return dict(
        fc_w=w((T, F, D)), fc_b=w((T, D)),          # Linear(F, D) per modality (W^T, b)
        ipw=w((L, D, 3 * D)), ipb=w((L, 3 * D)),    # MHA in_proj (W^T, b)
        opw=w((L, D, D)), opb=w((L, D)),            # MHA out_proj (W^T, b)
        n1g=jnp.ones((L, D), jnp.float32), n1b=jnp.zeros((L, D), jnp.float32),
        w1=w((L, D, FF)), b1=w((L, FF)),            # linear1 (W^T, b)
        w2=w((L, FF, D)), b2=w((L, D)),             # linear2 (W^T, b)
        n2g=jnp.ones((L, D), jnp.float32), n2b=jnp.zeros((L, D), jnp.float32),
        attn_w=w((D,)), attn_b=w((1,)),             # attention pooling Linear(D, 1)
    )


# -----------------------------------------------------------------------------
# One-time host-side packing: averaging / mask / gather matrices, scale-folded
# same-head matrix, bf16 weight casts.  Called once, outside jit.
# -----------------------------------------------------------------------------
def pack_params(p):
    bf16 = jnp.bfloat16

    # Token row order: r = t*B + b  (modality-major -> contiguous per-t slabs for pooling).
    avg = np.zeros((R, B * S), np.float32)     # zbar6 = avg @ z2d   (mean over S)
    mask = np.zeros((R, T * F), np.float32)    # keep modality-t lane block of zbar
    for t in range(T):
        for b in range(B):
            r = t * B + b
            avg[r, b * S:(b + 1) * S] = 1.0 / S
            mask[r, t * F:(t + 1) * F] = 1.0
    btok = np.asarray(p['fc_b'])[np.arange(R) // B]            # (R, D): row r -> fc_b[t]

    # Attention row gathers: score row (key j, query row r) = j*NS + r.
    gq = np.zeros((T * NS, R), np.float32)     # -> query token's q row
    gk = np.zeros((T * NS, R), np.float32)     # -> key token (b, j)'s k/v row
    for j in range(T):
        for i in range(T):
            for b in range(B):
                r = i * B + b
                gq[j * NS + r, r] = 1.0
                gk[j * NS + r, j * B + b] = 1.0

    # Same-head block matrix with 1/sqrt(HD) folded in (head-replicated scores).
    lane = np.arange(D)
    mblk = ((lane[:, None] // HD) == (lane[None, :] // HD)).astype(np.float32)
    mblk = mblk / math.sqrt(HD)

    return (jnp.asarray(avg), jnp.asarray(mask), jnp.asarray(btok),
            p['fc_w'].reshape(T * F, D).astype(bf16),           # block-stacked fc weight
            jnp.asarray(mblk).astype(bf16),
            jnp.asarray(gq), jnp.asarray(gk),
            p['ipw'].astype(bf16), p['ipb'][:, None, :],
            p['opw'].astype(bf16), p['opb'][:, None, :],
            p['n1g'][:, None, :], p['n1b'][:, None, :],
            p['w1'].astype(bf16), p['b1'][:, None, :],
            p['w2'].astype(bf16), p['b2'][:, None, :],
            p['n2g'][:, None, :], p['n2b'][:, None, :],
            p['attn_w'][None, :], p['attn_b'][None, :])


# -----------------------------------------------------------------------------
# Pure-fp32 reference (true PyTorch eval-mode semantics; no bf16 anywhere).
# -----------------------------------------------------------------------------
def _ln_ref(x, g, b):
    mu = jnp.mean(x, axis=-1, keepdims=True)
    var = jnp.mean((x - mu) ** 2, axis=-1, keepdims=True)
    return (x - mu) / jnp.sqrt(var + EPS) * g + b


def reference_forward(z1, z2, z3, p):
    zs = [z1, z2, z3]
    feats = [zs[m] @ p['fc_w'][m] + p['fc_b'][m] for m in range(T)]         # (B, S, D)
    x = jnp.mean(jnp.stack(feats, axis=1), axis=2)                          # (B, T, D)
    for l in range(L):
        qkv = x @ p['ipw'][l] + p['ipb'][l]
        q, k, v = qkv[..., :D], qkv[..., D:2 * D], qkv[..., 2 * D:]
        q = q.reshape(B, T, H, HD).transpose(0, 2, 1, 3)
        k = k.reshape(B, T, H, HD).transpose(0, 2, 1, 3)
        v = v.reshape(B, T, H, HD).transpose(0, 2, 1, 3)
        s = jnp.einsum("bhqd,bhkd->bhqk", q, k) / math.sqrt(HD)
        a = jax.nn.softmax(s, axis=-1)
        o = jnp.einsum("bhqk,bhkd->bhqd", a, v).transpose(0, 2, 1, 3).reshape(B, T, D)
        o = o @ p['opw'][l] + p['opb'][l]
        x = _ln_ref(x + o, p['n1g'][l], p['n1b'][l])
        h = jax.nn.relu(x @ p['w1'][l] + p['b1'][l])
        f = h @ p['w2'][l] + p['b2'][l]
        x = _ln_ref(x + f, p['n2g'][l], p['n2b'][l])
    scores = x @ p['attn_w'][:, None] + p['attn_b']                         # (B, T, 1)
    wts = jax.nn.softmax(scores, axis=1)
    return jnp.sum(x * wts, axis=1)                                          # (B, D)


if __name__ == "__main__":
    key = jax.random.PRNGKey(0)
    k_params, k1, k2, k3 = jax.random.split(key, 4)
    params = init_params(k_params)
    z1 = jax.random.normal(k1, (B, S, F), jnp.float32)
    z2 = jax.random.normal(k2, (B, S, F), jnp.float32)
    z3 = jax.random.normal(k3, (B, S, F), jnp.float32)

    kparams = pack_params(params)                    # packed / cast once, outside jit
    forward = jax.jit(multimodal_feature_block)
    out = jax.block_until_ready(forward(z1, z2, z3, kparams))

    ref = reference_forward(z1, z2, z3, params)      # true fp32 module semantics
    assert out.shape == (B, D)
    assert bool(jnp.all(jnp.isfinite(out)))
    max_err = float(jnp.max(jnp.abs(out - ref)))
    # Budget: bf16 MXU operands (dominated by the two K=2048 FFN contractions) +
    # approx-reciprocal softmax vs. the pure-fp32 reference.
    assert max_err < 4e-2, f"max |kernel - fp32 reference| = {max_err}"
    print("KERNEL_OK")
</pallas_src>

<mosaic_0001>
module attributes {stable_mosaic.version = 11 : i64} {
  func.func @_fused_kernel(%arg0: memref<16x48xf32, #tpu.memory_space<vmem>>, %arg1: memref<6x16xf32, #tpu.memory_space<vmem>>, %arg2: memref<6x48xf32, #tpu.memory_space<vmem>>, %arg3: memref<6x32xf32, #tpu.memory_space<vmem>>, %arg4: memref<48x32xbf16, #tpu.memory_space<vmem>>, %arg5: memref<32x32xbf16, #tpu.memory_space<vmem>>, %arg6: memref<24x6xf32, #tpu.memory_space<vmem>>, %arg7: memref<24x6xf32, #tpu.memory_space<vmem>>, %arg8: memref<2x32x96xbf16, #tpu.memory_space<vmem>>, %arg9: memref<2x1x96xf32, #tpu.memory_space<vmem>>, %arg10: memref<2x32x32xbf16, #tpu.memory_space<vmem>>, %arg11: memref<2x1x32xf32, #tpu.memory_space<vmem>>, %arg12: memref<2x1x32xf32, #tpu.memory_space<vmem>>, %arg13: memref<2x1x32xf32, #tpu.memory_space<vmem>>, %arg14: memref<2x32x2048xbf16, #tpu.memory_space<vmem>>, %arg15: memref<2x1x2048xf32, #tpu.memory_space<vmem>>, %arg16: memref<2x2048x32xbf16, #tpu.memory_space<vmem>>, %arg17: memref<2x1x32xf32, #tpu.memory_space<vmem>>, %arg18: memref<2x1x32xf32, #tpu.memory_space<vmem>>, %arg19: memref<2x1x32xf32, #tpu.memory_space<vmem>>, %arg20: memref<1x32xf32, #tpu.memory_space<vmem>>, %arg21: memref<1x1xf32, #tpu.memory_space<vmem>>, %arg22: memref<2x32xf32, #tpu.memory_space<vmem>>) attributes {dimension_semantics = [], scalar_prefetch = 0 : i64, scratch_operands = 0 : i64, tpu.core_type = #tpu.core_type<tc>} {
    %c0 = arith.constant 0 : index
    %c0_0 = arith.constant 0 : index
    %0 = vector.load %arg1[%c0, %c0_0] : memref<6x16xf32, #tpu.memory_space<vmem>>, vector<6x16xf32>
    %c0_1 = arith.constant 0 : index
    %c0_2 = arith.constant 0 : index
    %1 = vector.load %arg0[%c0_1, %c0_2] : memref<16x48xf32, #tpu.memory_space<vmem>>, vector<16x48xf32>
    %cst = arith.constant dense<0.000000e+00> : vector<6x48xf32>
    %2 = tpu.matmul %0, %1, %cst {dimension_numbers = #tpu.dot_dimension_numbers<[1], [0], [0], [1], [0, 0, 1, 1], [], []>} : vector<6x16xf32>, vector<16x48xf32>, vector<6x48xf32> -> vector<6x48xf32>
    %c0_3 = arith.constant 0 : index
    %c0_4 = arith.constant 0 : index
    %3 = vector.load %arg2[%c0_3, %c0_4] : memref<6x48xf32, #tpu.memory_space<vmem>>, vector<6x48xf32>
    %4 = arith.mulf %2, %3 : vector<6x48xf32>
    %5 = arith.truncf %4 : vector<6x48xf32> to vector<6x48xbf16>
    %c0_5 = arith.constant 0 : index
    %c0_6 = arith.constant 0 : index
    %6 = vector.load %arg4[%c0_5, %c0_6] : memref<48x32xbf16, #tpu.memory_space<vmem>>, vector<48x32xbf16>
    %cst_7 = arith.constant dense<0.000000e+00> : vector<6x32xf32>
    %7 = tpu.matmul %5, %6, %cst_7 {dimension_numbers = #tpu.dot_dimension_numbers<[1], [0], [0], [1], [0, 0, 1, 1], [], []>} : vector<6x48xbf16>, vector<48x32xbf16>, vector<6x32xf32> -> vector<6x32xf32>
    %c0_8 = arith.constant 0 : index
    %c0_9 = arith.constant 0 : index
    %8 = vector.load %arg3[%c0_8, %c0_9] : memref<6x32xf32, #tpu.memory_space<vmem>>, vector<6x32xf32>
    %9 = arith.addf %7, %8 : vector<6x32xf32>
    %10 = arith.truncf %9 : vector<6x32xf32> to vector<6x32xbf16>
    %c0_10 = arith.constant 0 : index
    %c0_11 = arith.constant 0 : index
    %c0_12 = arith.constant 0 : index
    %11 = vector.load %arg8[%c0_10, %c0_11, %c0_12] : memref<2x32x96xbf16, #tpu.memory_space<vmem>>, vector<1x32x96xbf16>
    %12 = vector.shape_cast %11 : vector<1x32x96xbf16> to vector<32x96xbf16>
    %cst_13 = arith.constant dense<0.000000e+00> : vector<6x96xf32>
    %13 = tpu.matmul %10, %12, %cst_13 {dimension_numbers = #tpu.dot_dimension_numbers<[1], [0], [0], [1], [0, 0, 1, 1], [], []>} : vector<6x32xbf16>, vector<32x96xbf16>, vector<6x96xf32> -> vector<6x96xf32>
    %c0_14 = arith.constant 0 : index
    %c0_15 = arith.constant 0 : index
    %c0_16 = arith.constant 0 : index
    %14 = vector.load %arg9[%c0_14, %c0_15, %c0_16] : memref<2x1x96xf32, #tpu.memory_space<vmem>>, vector<1x1x96xf32>
    %15 = vector.shape_cast %14 : vector<1x1x96xf32> to vector<1x96xf32>
    %16 = vector.broadcast %15 : vector<1x96xf32> to vector<6x96xf32>
    %17 = arith.addf %13, %16 : vector<6x96xf32>
    %18 = vector.extract_strided_slice %17 {offsets = [0, 0], sizes = [6, 32], strides = [1, 1]} : vector<6x96xf32> to vector<6x32xf32>
    %19 = vector.extract_strided_slice %17 {offsets = [0, 32], sizes = [6, 64], strides = [1, 1]} : vector<6x96xf32> to vector<6x64xf32>
    %c0_17 = arith.constant 0 : index
    %c0_18 = arith.constant 0 : index
    %20 = vector.load %arg6[%c0_17, %c0_18] : memref<24x6xf32, #tpu.memory_space<vmem>>, vector<24x6xf32>
    %cst_19 = arith.constant dense<0.000000e+00> : vector<24x32xf32>
    %21 = tpu.matmul %20, %18, %cst_19 {dimension_numbers = #tpu.dot_dimension_numbers<[1], [0], [0], [1], [0, 0, 1, 1], [], []>} : vector<24x6xf32>, vector<6x32xf32>, vector<24x32xf32> -> vector<24x32xf32>
    %c0_20 = arith.constant 0 : index
    %c0_21 = arith.constant 0 : index
    %22 = vector.load %arg7[%c0_20, %c0_21] : memref<24x6xf32, #tpu.memory_space<vmem>>, vector<24x6xf32>
    %cst_22 = arith.constant dense<0.000000e+00> : vector<24x64xf32>
    %23 = tpu.matmul %22, %19, %cst_22 {dimension_numbers = #tpu.dot_dimension_numbers<[1], [0], [0], [1], [0, 0, 1, 1], [], []>} : vector<24x6xf32>, vector<6x64xf32>, vector<24x64xf32> -> vector<24x64xf32>
    %24 = vector.extract_strided_slice %23 {offsets = [0, 0], sizes = [24, 32], strides = [1, 1]} : vector<24x64xf32> to vector<24x32xf32>
    %25 = vector.extract_strided_slice %23 {offsets = [0, 32], sizes = [24, 32], strides = [1, 1]} : vector<24x64xf32> to vector<24x32xf32>
    %26 = arith.mulf %21, %24 : vector<24x32xf32>
    %27 = arith.truncf %26 : vector<24x32xf32> to vector<24x32xbf16>
    %c0_23 = arith.constant 0 : index
    %c0_24 = arith.constant 0 : index
    %28 = vector.load %arg5[%c0_23, %c0_24] : memref<32x32xbf16, #tpu.memory_space<vmem>>, vector<32x32xbf16>
    %cst_25 = arith.constant dense<0.000000e+00> : vector<24x32xf32>
    %29 = tpu.matmul %27, %28, %cst_25 {dimension_numbers = #tpu.dot_dimension_numbers<[1], [0], [0], [1], [0, 0, 1, 1], [], []>} : vector<24x32xbf16>, vector<32x32xbf16>, vector<24x32xf32> -> vector<24x32xf32>
    %30 = vector.extract_strided_slice %29 {offsets = [0, 0], sizes = [6, 32], strides = [1, 1]} : vector<24x32xf32> to vector<6x32xf32>
    %31 = vector.extract_strided_slice %29 {offsets = [8, 0], sizes = [6, 32], strides = [1, 1]} : vector<24x32xf32> to vector<6x32xf32>
    %32 = vector.extract_strided_slice %29 {offsets = [16, 0], sizes = [6, 32], strides = [1, 1]} : vector<24x32xf32> to vector<6x32xf32>
    %33 = vector.extract_strided_slice %25 {offsets = [0, 0], sizes = [6, 32], strides = [1, 1]} : vector<24x32xf32> to vector<6x32xf32>
    %34 = vector.extract_strided_slice %25 {offsets = [8, 0], sizes = [6, 32], strides = [1, 1]} : vector<24x32xf32> to vector<6x32xf32>
    %35 = vector.extract_strided_slice %25 {offsets = [16, 0], sizes = [6, 32], strides = [1, 1]} : vector<24x32xf32> to vector<6x32xf32>
    %36 = arith.maximumf %30, %31 : vector<6x32xf32>
    %37 = arith.maximumf %36, %32 : vector<6x32xf32>
    %38 = arith.subf %30, %37 : vector<6x32xf32>
    %39 = math.exp %38 : vector<6x32xf32>
    %40 = arith.subf %31, %37 : vector<6x32xf32>
    %41 = math.exp %40 : vector<6x32xf32>
    %42 = arith.subf %32, %37 : vector<6x32xf32>
    %43 = math.exp %42 : vector<6x32xf32>
    %44 = arith.addf %39, %41 : vector<6x32xf32>
    %45 = arith.addf %44, %43 : vector<6x32xf32>
    %46 = tpu.reciprocal %45 {approx = true} : vector<6x32xf32> -> vector<6x32xf32>
    %47 = arith.mulf %39, %33 : vector<6x32xf32>
    %48 = arith.mulf %41, %34 : vector<6x32xf32>
    %49 = arith.addf %47, %48 : vector<6x32xf32>
    %50 = arith.mulf %43, %35 : vector<6x32xf32>
    %51 = arith.addf %49, %50 : vector<6x32xf32>
    %52 = arith.mulf %51, %46 : vector<6x32xf32>
    %53 = arith.truncf %52 : vector<6x32xf32> to vector<6x32xbf16>
    %c0_26 = arith.constant 0 : index
    %c0_27 = arith.constant 0 : index
    %c0_28 = arith.constant 0 : index
    %54 = vector.load %arg10[%c0_26, %c0_27, %c0_28] : memref<2x32x32xbf16, #tpu.memory_space<vmem>>, vector<1x32x32xbf16>
    %55 = vector.shape_cast %54 : vector<1x32x32xbf16> to vector<32x32xbf16>
    %cst_29 = arith.constant dense<0.000000e+00> : vector<6x32xf32>
    %56 = tpu.matmul %53, %55, %cst_29 {dimension_numbers = #tpu.dot_dimension_numbers<[1], [0], [0], [1], [0, 0, 1, 1], [], []>} : vector<6x32xbf16>, vector<32x32xbf16>, vector<6x32xf32> -> vector<6x32xf32>
    %c0_30 = arith.constant 0 : index
    %c0_31 = arith.constant 0 : index
    %c0_32 = arith.constant 0 : index
    %57 = vector.load %arg11[%c0_30, %c0_31, %c0_32] : memref<2x1x32xf32, #tpu.memory_space<vmem>>, vector<1x1x32xf32>
    %58 = vector.shape_cast %57 : vector<1x1x32xf32> to vector<1x32xf32>
    %59 = vector.broadcast %58 : vector<1x32xf32> to vector<6x32xf32>
    %60 = arith.addf %56, %59 : vector<6x32xf32>
    %61 = arith.addf %9, %60 : vector<6x32xf32>
    %c0_33 = arith.constant 0 : index
    %c0_34 = arith.constant 0 : index
    %c0_35 = arith.constant 0 : index
    %62 = vector.load %arg12[%c0_33, %c0_34, %c0_35] : memref<2x1x32xf32, #tpu.memory_space<vmem>>, vector<1x1x32xf32>
    %63 = vector.shape_cast %62 : vector<1x1x32xf32> to vector<1x32xf32>
    %c0_36 = arith.constant 0 : index
    %c0_37 = arith.constant 0 : index
    %c0_38 = arith.constant 0 : index
    %64 = vector.load %arg13[%c0_36, %c0_37, %c0_38] : memref<2x1x32xf32, #tpu.memory_space<vmem>>, vector<1x1x32xf32>
    %65 = vector.shape_cast %64 : vector<1x1x32xf32> to vector<1x32xf32>
    %cst_39 = arith.constant dense<0.000000e+00> : vector<6xf32>
    %66 = vector.multi_reduction <add>, %61, %cst_39 [1] : vector<6x32xf32> to vector<6xf32>
    %67 = vector.shape_cast %66 : vector<6xf32> to vector<6x1xf32>
    %cst_40 = arith.constant 3.200000e+01 : f32
    %68 = vector.broadcast %cst_40 : f32 to vector<6x1xf32>
    %69 = arith.divf %67, %68 : vector<6x1xf32>
    %70 = vector.broadcast %69 : vector<6x1xf32> to vector<6x32xf32>
    %71 = arith.subf %61, %70 : vector<6x32xf32>
    %72 = arith.mulf %71, %71 : vector<6x32xf32>
    %cst_41 = arith.constant dense<0.000000e+00> : vector<6xf32>
    %73 = vector.multi_reduction <add>, %72, %cst_41 [1] : vector<6x32xf32> to vector<6xf32>
    %74 = vector.shape_cast %73 : vector<6xf32> to vector<6x1xf32>
    %cst_42 = arith.constant 3.200000e+01 : f32
    %75 = vector.broadcast %cst_42 : f32 to vector<6x1xf32>
    %76 = arith.divf %74, %75 : vector<6x1xf32>
    %cst_43 = arith.constant 9.99999974E-6 : f32
    %77 = vector.broadcast %cst_43 : f32 to vector<6x1xf32>
    %78 = arith.addf %76, %77 : vector<6x1xf32>
    %79 = math.rsqrt %78 : vector<6x1xf32>
    %80 = vector.broadcast %79 : vector<6x1xf32> to vector<6x32xf32>
    %81 = arith.mulf %71, %80 : vector<6x32xf32>
    %82 = vector.broadcast %63 : vector<1x32xf32> to vector<6x32xf32>
    %83 = arith.mulf %81, %82 : vector<6x32xf32>
    %84 = vector.broadcast %65 : vector<1x32xf32> to vector<6x32xf32>
    %85 = arith.addf %83, %84 : vector<6x32xf32>
    %86 = arith.truncf %85 : vector<6x32xf32> to vector<6x32xbf16>
    %c0_44 = arith.constant 0 : index
    %c0_45 = arith.constant 0 : index
    %c0_46 = arith.constant 0 : index
    %87 = vector.load %arg14[%c0_44, %c0_45, %c0_46] : memref<2x32x2048xbf16, #tpu.memory_space<vmem>>, vector<1x32x2048xbf16>
    %88 = vector.shape_cast %87 : vector<1x32x2048xbf16> to vector<32x2048xbf16>
    %cst_47 = arith.constant dense<0.000000e+00> : vector<6x2048xf32>
    %89 = tpu.matmul %86, %88, %cst_47 {dimension_numbers = #tpu.dot_dimension_numbers<[1], [0], [0], [1], [0, 0, 1, 1], [], []>} : vector<6x32xbf16>, vector<32x2048xbf16>, vector<6x2048xf32> -> vector<6x2048xf32>
    %c0_48 = arith.constant 0 : index
    %c0_49 = arith.constant 0 : index
    %c0_50 = arith.constant 0 : index
    %90 = vector.load %arg15[%c0_48, %c0_49, %c0_50] : memref<2x1x2048xf32, #tpu.memory_space<vmem>>, vector<1x1x2048xf32>
    %91 = vector.shape_cast %90 : vector<1x1x2048xf32> to vector<1x2048xf32>
    %92 = vector.broadcast %91 : vector<1x2048xf32> to vector<6x2048xf32>
    %93 = arith.addf %89, %92 : vector<6x2048xf32>
    %cst_51 = arith.constant 0.000000e+00 : f32
    %94 = vector.broadcast %cst_51 : f32 to vector<6x2048xf32>
    %95 = arith.maximumf %93, %94 : vector<6x2048xf32>
    %96 = arith.truncf %95 : vector<6x2048xf32> to vector<6x2048xbf16>
    %c0_52 = arith.constant 0 : index
    %c0_53 = arith.constant 0 : index
    %c0_54 = arith.constant 0 : index
    %97 = vector.load %arg16[%c0_52, %c0_53, %c0_54] : memref<2x2048x32xbf16, #tpu.memory_space<vmem>>, vector<1x2048x32xbf16>
    %98 = vector.shape_cast %97 : vector<1x2048x32xbf16> to vector<2048x32xbf16>
    %cst_55 = arith.constant dense<0.000000e+00> : vector<6x32xf32>
    %99 = tpu.matmul %96, %98, %cst_55 {dimension_numbers = #tpu.dot_dimension_numbers<[1], [0], [0], [1], [0, 0, 1, 1], [], []>} : vector<6x2048xbf16>, vector<2048x32xbf16>, vector<6x32xf32> -> vector<6x32xf32>
    %c0_56 = arith.constant 0 : index
    %c0_57 = arith.constant 0 : index
    %c0_58 = arith.constant 0 : index
    %100 = vector.load %arg17[%c0_56, %c0_57, %c0_58] : memref<2x1x32xf32, #tpu.memory_space<vmem>>, vector<1x1x32xf32>
    %101 = vector.shape_cast %100 : vector<1x1x32xf32> to vector<1x32xf32>
    %102 = vector.broadcast %101 : vector<1x32xf32> to vector<6x32xf32>
    %103 = arith.addf %99, %102 : vector<6x32xf32>
    %104 = arith.addf %85, %103 : vector<6x32xf32>
    %c0_59 = arith.constant 0 : index
    %c0_60 = arith.constant 0 : index
    %c0_61 = arith.constant 0 : index
    %105 = vector.load %arg18[%c0_59, %c0_60, %c0_61] : memref<2x1x32xf32, #tpu.memory_space<vmem>>, vector<1x1x32xf32>
    %106 = vector.shape_cast %105 : vector<1x1x32xf32> to vector<1x32xf32>
    %c0_62 = arith.constant 0 : index
    %c0_63 = arith.constant 0 : index
    %c0_64 = arith.constant 0 : index
    %107 = vector.load %arg19[%c0_62, %c0_63, %c0_64] : memref<2x1x32xf32, #tpu.memory_space<vmem>>, vector<1x1x32xf32>
    %108 = vector.shape_cast %107 : vector<1x1x32xf32> to vector<1x32xf32>
    %cst_65 = arith.constant dense<0.000000e+00> : vector<6xf32>
    %109 = vector.multi_reduction <add>, %104, %cst_65 [1] : vector<6x32xf32> to vector<6xf32>
    %110 = vector.shape_cast %109 : vector<6xf32> to vector<6x1xf32>
    %cst_66 = arith.constant 3.200000e+01 : f32
    %111 = vector.broadcast %cst_66 : f32 to vector<6x1xf32>
    %112 = arith.divf %110, %111 : vector<6x1xf32>
    %113 = vector.broadcast %112 : vector<6x1xf32> to vector<6x32xf32>
    %114 = arith.subf %104, %113 : vector<6x32xf32>
    %115 = arith.mulf %114, %114 : vector<6x32xf32>
    %cst_67 = arith.constant dense<0.000000e+00> : vector<6xf32>
    %116 = vector.multi_reduction <add>, %115, %cst_67 [1] : vector<6x32xf32> to vector<6xf32>
    %117 = vector.shape_cast %116 : vector<6xf32> to vector<6x1xf32>
    %cst_68 = arith.constant 3.200000e+01 : f32
    %118 = vector.broadcast %cst_68 : f32 to vector<6x1xf32>
    %119 = arith.divf %117, %118 : vector<6x1xf32>
    %cst_69 = arith.constant 9.99999974E-6 : f32
    %120 = vector.broadcast %cst_69 : f32 to vector<6x1xf32>
    %121 = arith.addf %119, %120 : vector<6x1xf32>
    %122 = math.rsqrt %121 : vector<6x1xf32>
    %123 = vector.broadcast %122 : vector<6x1xf32> to vector<6x32xf32>
    %124 = arith.mulf %114, %123 : vector<6x32xf32>
    %125 = vector.broadcast %106 : vector<1x32xf32> to vector<6x32xf32>
    %126 = arith.mulf %124, %125 : vector<6x32xf32>
    %127 = vector.broadcast %108 : vector<1x32xf32> to vector<6x32xf32>
    %128 = arith.addf %126, %127 : vector<6x32xf32>
    %129 = arith.truncf %128 : vector<6x32xf32> to vector<6x32xbf16>
    %c1 = arith.constant 1 : index
    %c0_70 = arith.constant 0 : index
    %c0_71 = arith.constant 0 : index
    %130 = vector.load %arg8[%c1, %c0_70, %c0_71] : memref<2x32x96xbf16, #tpu.memory_space<vmem>>, vector<1x32x96xbf16>
    %131 = vector.shape_cast %130 : vector<1x32x96xbf16> to vector<32x96xbf16>
    %cst_72 = arith.constant dense<0.000000e+00> : vector<6x96xf32>
    %132 = tpu.matmul %129, %131, %cst_72 {dimension_numbers = #tpu.dot_dimension_numbers<[1], [0], [0], [1], [0, 0, 1, 1], [], []>} : vector<6x32xbf16>, vector<32x96xbf16>, vector<6x96xf32> -> vector<6x96xf32>
    %c1_73 = arith.constant 1 : index
    %c0_74 = arith.constant 0 : index
    %c0_75 = arith.constant 0 : index
    %133 = vector.load %arg9[%c1_73, %c0_74, %c0_75] : memref<2x1x96xf32, #tpu.memory_space<vmem>>, vector<1x1x96xf32>
    %134 = vector.shape_cast %133 : vector<1x1x96xf32> to vector<1x96xf32>
    %135 = vector.broadcast %134 : vector<1x96xf32> to vector<6x96xf32>
    %136 = arith.addf %132, %135 : vector<6x96xf32>
    %137 = vector.extract_strided_slice %136 {offsets = [0, 0], sizes = [6, 32], strides = [1, 1]} : vector<6x96xf32> to vector<6x32xf32>
    %138 = vector.extract_strided_slice %136 {offsets = [0, 32], sizes = [6, 64], strides = [1, 1]} : vector<6x96xf32> to vector<6x64xf32>
    %c0_76 = arith.constant 0 : index
    %c0_77 = arith.constant 0 : index
    %139 = vector.load %arg6[%c0_76, %c0_77] : memref<24x6xf32, #tpu.memory_space<vmem>>, vector<24x6xf32>
    %cst_78 = arith.constant dense<0.000000e+00> : vector<24x32xf32>
    %140 = tpu.matmul %139, %137, %cst_78 {dimension_numbers = #tpu.dot_dimension_numbers<[1], [0], [0], [1], [0, 0, 1, 1], [], []>} : vector<24x6xf32>, vector<6x32xf32>, vector<24x32xf32> -> vector<24x32xf32>
    %c0_79 = arith.constant 0 : index
    %c0_80 = arith.constant 0 : index
    %141 = vector.load %arg7[%c0_79, %c0_80] : memref<24x6xf32, #tpu.memory_space<vmem>>, vector<24x6xf32>
    %cst_81 = arith.constant dense<0.000000e+00> : vector<24x64xf32>
    %142 = tpu.matmul %141, %138, %cst_81 {dimension_numbers = #tpu.dot_dimension_numbers<[1], [0], [0], [1], [0, 0, 1, 1], [], []>} : vector<24x6xf32>, vector<6x64xf32>, vector<24x64xf32> -> vector<24x64xf32>
    %143 = vector.extract_strided_slice %142 {offsets = [0, 0], sizes = [24, 32], strides = [1, 1]} : vector<24x64xf32> to vector<24x32xf32>
    %144 = vector.extract_strided_slice %142 {offsets = [0, 32], sizes = [24, 32], strides = [1, 1]} : vector<24x64xf32> to vector<24x32xf32>
    %145 = arith.mulf %140, %143 : vector<24x32xf32>
    %146 = arith.truncf %145 : vector<24x32xf32> to vector<24x32xbf16>
    %c0_82 = arith.constant 0 : index
    %c0_83 = arith.constant 0 : index
    %147 = vector.load %arg5[%c0_82, %c0_83] : memref<32x32xbf16, #tpu.memory_space<vmem>>, vector<32x32xbf16>
    %cst_84 = arith.constant dense<0.000000e+00> : vector<24x32xf32>
    %148 = tpu.matmul %146, %147, %cst_84 {dimension_numbers = #tpu.dot_dimension_numbers<[1], [0], [0], [1], [0, 0, 1, 1], [], []>} : vector<24x32xbf16>, vector<32x32xbf16>, vector<24x32xf32> -> vector<24x32xf32>
    %149 = vector.extract_strided_slice %148 {offsets = [0, 0], sizes = [6, 32], strides = [1, 1]} : vector<24x32xf32> to vector<6x32xf32>
    %150 = vector.extract_strided_slice %148 {offsets = [8, 0], sizes = [6, 32], strides = [1, 1]} : vector<24x32xf32> to vector<6x32xf32>
    %151 = vector.extract_strided_slice %148 {offsets = [16, 0], sizes = [6, 32], strides = [1, 1]} : vector<24x32xf32> to vector<6x32xf32>
    %152 = vector.extract_strided_slice %144 {offsets = [0, 0], sizes = [6, 32], strides = [1, 1]} : vector<24x32xf32> to vector<6x32xf32>
    %153 = vector.extract_strided_slice %144 {offsets = [8, 0], sizes = [6, 32], strides = [1, 1]} : vector<24x32xf32> to vector<6x32xf32>
    %154 = vector.extract_strided_slice %144 {offsets = [16, 0], sizes = [6, 32], strides = [1, 1]} : vector<24x32xf32> to vector<6x32xf32>
    %155 = arith.maximumf %149, %150 : vector<6x32xf32>
    %156 = arith.maximumf %155, %151 : vector<6x32xf32>
    %157 = arith.subf %149, %156 : vector<6x32xf32>
    %158 = math.exp %157 : vector<6x32xf32>
    %159 = arith.subf %150, %156 : vector<6x32xf32>
    %160 = math.exp %159 : vector<6x32xf32>
    %161 = arith.subf %151, %156 : vector<6x32xf32>
    %162 = math.exp %161 : vector<6x32xf32>
    %163 = arith.addf %158, %160 : vector<6x32xf32>
    %164 = arith.addf %163, %162 : vector<6x32xf32>
    %165 = tpu.reciprocal %164 {approx = true} : vector<6x32xf32> -> vector<6x32xf32>
    %166 = arith.mulf %158, %152 : vector<6x32xf32>
    %167 = arith.mulf %160, %153 : vector<6x32xf32>
    %168 = arith.addf %166, %167 : vector<6x32xf32>
    %169 = arith.mulf %162, %154 : vector<6x32xf32>
    %170 = arith.addf %168, %169 : vector<6x32xf32>
    %171 = arith.mulf %170, %165 : vector<6x32xf32>
    %172 = arith.truncf %171 : vector<6x32xf32> to vector<6x32xbf16>
    %c1_85 = arith.constant 1 : index
    %c0_86 = arith.constant 0 : index
    %c0_87 = arith.constant 0 : index
    %173 = vector.load %arg10[%c1_85, %c0_86, %c0_87] : memref<2x32x32xbf16, #tpu.memory_space<vmem>>, vector<1x32x32xbf16>
    %174 = vector.shape_cast %173 : vector<1x32x32xbf16> to vector<32x32xbf16>
    %cst_88 = arith.constant dense<0.000000e+00> : vector<6x32xf32>
    %175 = tpu.matmul %172, %174, %cst_88 {dimension_numbers = #tpu.dot_dimension_numbers<[1], [0], [0], [1], [0, 0, 1, 1], [], []>} : vector<6x32xbf16>, vector<32x32xbf16>, vector<6x32xf32> -> vector<6x32xf32>
    %c1_89 = arith.constant 1 : index
    %c0_90 = arith.constant 0 : index
    %c0_91 = arith.constant 0 : index
    %176 = vector.load %arg11[%c1_89, %c0_90, %c0_91] : memref<2x1x32xf32, #tpu.memory_space<vmem>>, vector<1x1x32xf32>
    %177 = vector.shape_cast %176 : vector<1x1x32xf32> to vector<1x32xf32>
    %178 = vector.broadcast %177 : vector<1x32xf32> to vector<6x32xf32>
    %179 = arith.addf %175, %178 : vector<6x32xf32>
    %180 = arith.addf %128, %179 : vector<6x32xf32>
    %c1_92 = arith.constant 1 : index
    %c0_93 = arith.constant 0 : index
    %c0_94 = arith.constant 0 : index
    %181 = vector.load %arg12[%c1_92, %c0_93, %c0_94] : memref<2x1x32xf32, #tpu.memory_space<vmem>>, vector<1x1x32xf32>
    %182 = vector.shape_cast %181 : vector<1x1x32xf32> to vector<1x32xf32>
    %c1_95 = arith.constant 1 : index
    %c0_96 = arith.constant 0 : index
    %c0_97 = arith.constant 0 : index
    %183 = vector.load %arg13[%c1_95, %c0_96, %c0_97] : memref<2x1x32xf32, #tpu.memory_space<vmem>>, vector<1x1x32xf32>
    %184 = vector.shape_cast %183 : vector<1x1x32xf32> to vector<1x32xf32>
    %cst_98 = arith.constant dense<0.000000e+00> : vector<6xf32>
    %185 = vector.multi_reduction <add>, %180, %cst_98 [1] : vector<6x32xf32> to vector<6xf32>
    %186 = vector.shape_cast %185 : vector<6xf32> to vector<6x1xf32>
    %cst_99 = arith.constant 3.200000e+01 : f32
    %187 = vector.broadcast %cst_99 : f32 to vector<6x1xf32>
    %188 = arith.divf %186, %187 : vector<6x1xf32>
    %189 = vector.broadcast %188 : vector<6x1xf32> to vector<6x32xf32>
    %190 = arith.subf %180, %189 : vector<6x32xf32>
    %191 = arith.mulf %190, %190 : vector<6x32xf32>
    %cst_100 = arith.constant dense<0.000000e+00> : vector<6xf32>
    %192 = vector.multi_reduction <add>, %191, %cst_100 [1] : vector<6x32xf32> to vector<6xf32>
    %193 = vector.shape_cast %192 : vector<6xf32> to vector<6x1xf32>
    %cst_101 = arith.constant 3.200000e+01 : f32
    %194 = vector.broadcast %cst_101 : f32 to vector<6x1xf32>
    %195 = arith.divf %193, %194 : vector<6x1xf32>
    %cst_102 = arith.constant 9.99999974E-6 : f32
    %196 = vector.broadcast %cst_102 : f32 to vector<6x1xf32>
    %197 = arith.addf %195, %196 : vector<6x1xf32>
    %198 = math.rsqrt %197 : vector<6x1xf32>
    %199 = vector.broadcast %198 : vector<6x1xf32> to vector<6x32xf32>
    %200 = arith.mulf %190, %199 : vector<6x32xf32>
    %201 = vector.broadcast %182 : vector<1x32xf32> to vector<6x32xf32>
    %202 = arith.mulf %200, %201 : vector<6x32xf32>
    %203 = vector.broadcast %184 : vector<1x32xf32> to vector<6x32xf32>
    %204 = arith.addf %202, %203 : vector<6x32xf32>
    %205 = arith.truncf %204 : vector<6x32xf32> to vector<6x32xbf16>
    %c1_103 = arith.constant 1 : index
    %c0_104 = arith.constant 0 : index
    %c0_105 = arith.constant 0 : index
    %206 = vector.load %arg14[%c1_103, %c0_104, %c0_105] : memref<2x32x2048xbf16, #tpu.memory_space<vmem>>, vector<1x32x2048xbf16>
    %207 = vector.shape_cast %206 : vector<1x32x2048xbf16> to vector<32x2048xbf16>
    %cst_106 = arith.constant dense<0.000000e+00> : vector<6x2048xf32>
    %208 = tpu.matmul %205, %207, %cst_106 {dimension_numbers = #tpu.dot_dimension_numbers<[1], [0], [0], [1], [0, 0, 1, 1], [], []>} : vector<6x32xbf16>, vector<32x2048xbf16>, vector<6x2048xf32> -> vector<6x2048xf32>
    %c1_107 = arith.constant 1 : index
    %c0_108 = arith.constant 0 : index
    %c0_109 = arith.constant 0 : index
    %209 = vector.load %arg15[%c1_107, %c0_108, %c0_109] : memref<2x1x2048xf32, #tpu.memory_space<vmem>>, vector<1x1x2048xf32>
    %210 = vector.shape_cast %209 : vector<1x1x2048xf32> to vector<1x2048xf32>
    %211 = vector.broadcast %210 : vector<1x2048xf32> to vector<6x2048xf32>
    %212 = arith.addf %208, %211 : vector<6x2048xf32>
    %cst_110 = arith.constant 0.000000e+00 : f32
    %213 = vector.broadcast %cst_110 : f32 to vector<6x2048xf32>
    %214 = arith.maximumf %212, %213 : vector<6x2048xf32>
    %215 = arith.truncf %214 : vector<6x2048xf32> to vector<6x2048xbf16>
    %c1_111 = arith.constant 1 : index
    %c0_112 = arith.constant 0 : index
    %c0_113 = arith.constant 0 : index
    %216 = vector.load %arg16[%c1_111, %c0_112, %c0_113] : memref<2x2048x32xbf16, #tpu.memory_space<vmem>>, vector<1x2048x32xbf16>
    %217 = vector.shape_cast %216 : vector<1x2048x32xbf16> to vector<2048x32xbf16>
    %cst_114 = arith.constant dense<0.000000e+00> : vector<6x32xf32>
    %218 = tpu.matmul %215, %217, %cst_114 {dimension_numbers = #tpu.dot_dimension_numbers<[1], [0], [0], [1], [0, 0, 1, 1], [], []>} : vector<6x2048xbf16>, vector<2048x32xbf16>, vector<6x32xf32> -> vector<6x32xf32>
    %c1_115 = arith.constant 1 : index
    %c0_116 = arith.constant 0 : index
    %c0_117 = arith.constant 0 : index
    %219 = vector.load %arg17[%c1_115, %c0_116, %c0_117] : memref<2x1x32xf32, #tpu.memory_space<vmem>>, vector<1x1x32xf32>
    %220 = vector.shape_cast %219 : vector<1x1x32xf32> to vector<1x32xf32>
    %221 = vector.broadcast %220 : vector<1x32xf32> to vector<6x32xf32>
    %222 = arith.addf %218, %221 : vector<6x32xf32>
    %223 = arith.addf %204, %222 : vector<6x32xf32>
    %c1_118 = arith.constant 1 : index
    %c0_119 = arith.constant 0 : index
    %c0_120 = arith.constant 0 : index
    %224 = vector.load %arg18[%c1_118, %c0_119, %c0_120] : memref<2x1x32xf32, #tpu.memory_space<vmem>>, vector<1x1x32xf32>
    %225 = vector.shape_cast %224 : vector<1x1x32xf32> to vector<1x32xf32>
    %c1_121 = arith.constant 1 : index
    %c0_122 = arith.constant 0 : index
    %c0_123 = arith.constant 0 : index
    %226 = vector.load %arg19[%c1_121, %c0_122, %c0_123] : memref<2x1x32xf32, #tpu.memory_space<vmem>>, vector<1x1x32xf32>
    %227 = vector.shape_cast %226 : vector<1x1x32xf32> to vector<1x32xf32>
    %cst_124 = arith.constant dense<0.000000e+00> : vector<6xf32>
    %228 = vector.multi_reduction <add>, %223, %cst_124 [1] : vector<6x32xf32> to vector<6xf32>
    %229 = vector.shape_cast %228 : vector<6xf32> to vector<6x1xf32>
    %cst_125 = arith.constant 3.200000e+01 : f32
    %230 = vector.broadcast %cst_125 : f32 to vector<6x1xf32>
    %231 = arith.divf %229, %230 : vector<6x1xf32>
    %232 = vector.broadcast %231 : vector<6x1xf32> to vector<6x32xf32>
    %233 = arith.subf %223, %232 : vector<6x32xf32>
    %234 = arith.mulf %233, %233 : vector<6x32xf32>
    %cst_126 = arith.constant dense<0.000000e+00> : vector<6xf32>
    %235 = vector.multi_reduction <add>, %234, %cst_126 [1] : vector<6x32xf32> to vector<6xf32>
    %236 = vector.shape_cast %235 : vector<6xf32> to vector<6x1xf32>
    %cst_127 = arith.constant 3.200000e+01 : f32
    %237 = vector.broadcast %cst_127 : f32 to vector<6x1xf32>
    %238 = arith.divf %236, %237 : vector<6x1xf32>
    %cst_128 = arith.constant 9.99999974E-6 : f32
    %239 = vector.broadcast %cst_128 : f32 to vector<6x1xf32>
    %240 = arith.addf %238, %239 : vector<6x1xf32>
    %241 = math.rsqrt %240 : vector<6x1xf32>
    %242 = vector.broadcast %241 : vector<6x1xf32> to vector<6x32xf32>
    %243 = arith.mulf %233, %242 : vector<6x32xf32>
    %244 = vector.broadcast %225 : vector<1x32xf32> to vector<6x32xf32>
    %245 = arith.mulf %243, %244 : vector<6x32xf32>
    %246 = vector.broadcast %227 : vector<1x32xf32> to vector<6x32xf32>
    %247 = arith.addf %245, %246 : vector<6x32xf32>
    %c0_129 = arith.constant 0 : index
    %c0_130 = arith.constant 0 : index
    %248 = vector.load %arg20[%c0_129, %c0_130] : memref<1x32xf32, #tpu.memory_space<vmem>>, vector<1x32xf32>
    %249 = vector.broadcast %248 : vector<1x32xf32> to vector<6x32xf32>
    %250 = arith.mulf %247, %249 : vector<6x32xf32>
    %cst_131 = arith.constant dense<0.000000e+00> : vector<6xf32>
    %251 = vector.multi_reduction <add>, %250, %cst_131 [1] : vector<6x32xf32> to vector<6xf32>
    %252 = vector.shape_cast %251 : vector<6xf32> to vector<6x1xf32>
    %c0_132 = arith.constant 0 : index
    %c0_133 = arith.constant 0 : index
    %253 = vector.load %arg21[%c0_132, %c0_133] : memref<1x1xf32, #tpu.memory_space<vmem>>, vector<1x1xf32>
    %254 = vector.broadcast %253 : vector<1x1xf32> to vector<6x1xf32>
    %255 = arith.addf %252, %254 : vector<6x1xf32>
    %256 = vector.extract_strided_slice %247 {offsets = [0, 0], sizes = [2, 32], strides = [1, 1]} : vector<6x32xf32> to vector<2x32xf32>
    %257 = vector.extract_strided_slice %247 {offsets = [2, 0], sizes = [2, 32], strides = [1, 1]} : vector<6x32xf32> to vector<2x32xf32>
    %258 = vector.extract_strided_slice %247 {offsets = [4, 0], sizes = [2, 32], strides = [1, 1]} : vector<6x32xf32> to vector<2x32xf32>
    %259 = vector.extract_strided_slice %255 {offsets = [0, 0], sizes = [2, 1], strides = [1, 1]} : vector<6x1xf32> to vector<2x1xf32>
    %260 = vector.extract_strided_slice %255 {offsets = [2, 0], sizes = [2, 1], strides = [1, 1]} : vector<6x1xf32> to vector<2x1xf32>
    %261 = vector.extract_strided_slice %255 {offsets = [4, 0], sizes = [2, 1], strides = [1, 1]} : vector<6x1xf32> to vector<2x1xf32>
    %262 = arith.maximumf %259, %260 : vector<2x1xf32>
    %263 = arith.maximumf %262, %261 : vector<2x1xf32>
    %264 = arith.subf %259, %263 : vector<2x1xf32>
    %265 = math.exp %264 : vector<2x1xf32>
    %266 = arith.subf %260, %263 : vector<2x1xf32>
    %267 = math.exp %266 : vector<2x1xf32>
    %268 = arith.subf %261, %263 : vector<2x1xf32>
    %269 = math.exp %268 : vector<2x1xf32>
    %270 = arith.addf %265, %267 : vector<2x1xf32>
    %271 = arith.addf %270, %269 : vector<2x1xf32>
    %272 = tpu.reciprocal %271 {approx = true} : vector<2x1xf32> -> vector<2x1xf32>
    %273 = vector.broadcast %265 : vector<2x1xf32> to vector<2x32xf32>
    %274 = arith.mulf %273, %256 : vector<2x32xf32>
    %275 = vector.broadcast %267 : vector<2x1xf32> to vector<2x32xf32>
    %276 = arith.mulf %275, %257 : vector<2x32xf32>
    %277 = arith.addf %274, %276 : vector<2x32xf32>
    %278 = vector.broadcast %269 : vector<2x1xf32> to vector<2x32xf32>
    %279 = arith.mulf %278, %258 : vector<2x32xf32>
    %280 = arith.addf %277, %279 : vector<2x32xf32>
    %281 = vector.broadcast %272 : vector<2x1xf32> to vector<2x32xf32>
    %282 = arith.mulf %280, %281 : vector<2x32xf32>
    %c0_134 = arith.constant 0 : index
    %c0_135 = arith.constant 0 : index
    %283 = vector.load %arg22[%c0_134, %c0_135] : memref<2x32xf32, #tpu.memory_space<vmem>>, vector<2x32xf32>
    tpu.vector_store %arg22[%c0_134, %c0_135], %282 {strides = array<i32>} : memref<2x32xf32, #tpu.memory_space<vmem>>, vector<2x32xf32>,
    return
  }
}

</mosaic_0001>

<llo_original>
// kernel: multimodal_feature_block.1
$region0: #{multimodal_feature_block.1}
  #allocation0 [shape = 'u32[]', space=smem, size = 0x4, offset = 0x4, fixed_abs, tag = 'smem constant byte address 0x4 - core index']
  #allocation1 [shape = 'u32[144,128]{1,0:T(1,128)}', space=vmem, size = 0x12000, scoped, tag = 'internal scratch']
  #allocation2 [shape = 'f32[1,1]{1,0:T(1,128)S(1)}', space=vmem, size = 0x200, scoped, tag = 'scoped memory for multimodal_feature_block.1']
  %s0 = inlined_call_operand.vmem [shape: f32[16,48], index: 0, kind: input, shape index: {}]
  %s1 = inlined_call_operand.vmem [shape: f32[6,16], index: 1, kind: input, shape index: {}]
  %s2 = inlined_call_operand.vmem [shape: f32[6,48], index: 2, kind: input, shape index: {}]
  %s3 = inlined_call_operand.vmem [shape: f32[6,32], index: 3, kind: input, shape index: {}]
  %s4 = inlined_call_operand.vmem [shape: bf16[48,32], index: 4, kind: input, shape index: {}]
  %s5 = inlined_call_operand.vmem [shape: bf16[32,32], index: 5, kind: input, shape index: {}]
  %s6 = inlined_call_operand.vmem [shape: f32[24,6], index: 6, kind: input, shape index: {}]
  %s7 = inlined_call_operand.vmem [shape: f32[24,6], index: 7, kind: input, shape index: {}]
  %s8 = inlined_call_operand.vmem [shape: bf16[2,32,96], index: 8, kind: input, shape index: {}]
  %s9 = inlined_call_operand.vmem [shape: f32[2,1,96], index: 9, kind: input, shape index: {}]
  %s10 = inlined_call_operand.vmem [shape: bf16[2,32,32], index: 10, kind: input, shape index: {}]
  %s11 = inlined_call_operand.vmem [shape: f32[2,1,32], index: 11, kind: input, shape index: {}]
  %s12 = inlined_call_operand.vmem [shape: f32[2,1,32], index: 12, kind: input, shape index: {}]
  %s13 = inlined_call_operand.vmem [shape: f32[2,1,32], index: 13, kind: input, shape index: {}]
  %s14 = inlined_call_operand.vmem [shape: bf16[2,32,2048], index: 14, kind: input, shape index: {}]
  %s15 = inlined_call_operand.vmem [shape: f32[2,1,2048], index: 15, kind: input, shape index: {}]
  %s16 = inlined_call_operand.vmem [shape: bf16[2,2048,32], index: 16, kind: input, shape index: {}]
  %s17 = inlined_call_operand.vmem [shape: f32[2,1,32], index: 17, kind: input, shape index: {}]
  %s18 = inlined_call_operand.vmem [shape: f32[2,1,32], index: 18, kind: input, shape index: {}]
  %s19 = inlined_call_operand.vmem [shape: f32[2,1,32], index: 19, kind: input, shape index: {}]
  %s20 = inlined_call_operand.vmem [shape: f32[1,32], index: 20, kind: input, shape index: {}]
  %s21 = inlined_call_operand.<no memory space> [shape: f32[1,1], index: 21, kind: input, shape index: {}]
  %s22 = inlined_call_operand.hbm [shape: f32[2,32], index: 22, kind: output, shape index: {}]
  %s23 = sld [smem:[#allocation0]]
  $region98: #{multimodal_feature_block.1} parent=0
    _
  %s25 = ssub.s32 1, %s23
  %s26 = scalar_select 0, %s25, %s23
  %v27 = vstv %s21
  %28 = vst [vmem:[#allocation2] sm:$0x1] %v27
  $region1: #{multimodal_feature_block.1} parent=0
    #allocation3 [shape = 'u8[1024]{0}', space=vmem, size = 0x400, scoped, tag = 'output window, operand 0, single buffered']
    #allocation4 [shape = 's32[1]{0}', space=sflag, size = 0x4, scoped, tag = 'scoped memory for multimodal_feature_block.1']
    %29 = vsyncpa [#allocation4], 0
    // Predicated region
    $region2: #{multimodal_feature_block.1} parent=1 // pred_check
      _
    $region3: #{multimodal_feature_block.1} parent=1 // pred_check_branch
      %31 = sbr.rel (0) target = $region5
    $region4: #{multimodal_feature_block.1} parent=1 // pred_region
      _
    $region5: #{multimodal_feature_block.1} parent=1 // pred_fallthru
      _
    // Predicated region
    $region6: #{multimodal_feature_block.1} parent=1 // pred_check
      _
    $region7: #{multimodal_feature_block.1} parent=1 // pred_check_branch
      %33 = sbr.rel (0) target = $region9
    $region8: #{multimodal_feature_block.1} parent=1 // pred_region
      _
    $region9: #{multimodal_feature_block.1} parent=1 // pred_fallthru
      _
    // Predicated region
    $region10: #{multimodal_feature_block.1} parent=1 // pred_check
      _
    $region11: #{multimodal_feature_block.1} parent=1 // pred_check_branch
      %35 = sbr.rel (0) target = $region13
    $region12: #{multimodal_feature_block.1} parent=1 // pred_region
      _
    $region13: #{multimodal_feature_block.1} parent=1 // pred_fallthru
      _
    // Predicated region
    $region14: #{multimodal_feature_block.1} parent=1 // pred_check
      _
    $region15: #{multimodal_feature_block.1} parent=1 // pred_check_branch
      %37 = sbr.rel (0) target = $region17
    $region16: #{multimodal_feature_block.1} parent=1 // pred_region
      _
    $region17: #{multimodal_feature_block.1} parent=1 // pred_fallthru
      _
    // Predicated region
    $region18: #{multimodal_feature_block.1} parent=1 // pred_check
      _
    $region19: #{multimodal_feature_block.1} parent=1 // pred_check_branch
      %39 = sbr.rel (0) target = $region21
    $region20: #{multimodal_feature_block.1} parent=1 // pred_region
      _
    $region21: #{multimodal_feature_block.1} parent=1 // pred_fallthru
      _
    // Predicated region
    $region22: #{multimodal_feature_block.1} parent=1 // pred_check
      _
    $region23: #{multimodal_feature_block.1} parent=1 // pred_check_branch
      %41 = sbr.rel (0) target = $region25
    $region24: #{multimodal_feature_block.1} parent=1 // pred_region
      _
    $region25: #{multimodal_feature_block.1} parent=1 // pred_fallthru
      _
    // Predicated region
    $region26: #{multimodal_feature_block.1} parent=1 // pred_check
      _
    $region27: #{multimodal_feature_block.1} parent=1 // pred_check_branch
      %43 = sbr.rel (0) target = $region29
    $region28: #{multimodal_feature_block.1} parent=1 // pred_region
      _
    $region29: #{multimodal_feature_block.1} parent=1 // pred_fallthru
      _
    // Predicated region
    $region30: #{multimodal_feature_block.1} parent=1 // pred_check
      _
    $region31: #{multimodal_feature_block.1} parent=1 // pred_check_branch
      %45 = sbr.rel (0) target = $region33
    $region32: #{multimodal_feature_block.1} parent=1 // pred_region
      _
    $region33: #{multimodal_feature_block.1} parent=1 // pred_fallthru
      _
    // Predicated region
    $region34: #{multimodal_feature_block.1} parent=1 // pred_check
      _
    $region35: #{multimodal_feature_block.1} parent=1 // pred_check_branch
      %47 = sbr.rel (0) target = $region37
    $region36: #{multimodal_feature_block.1} parent=1 // pred_region
      _
    $region37: #{multimodal_feature_block.1} parent=1 // pred_fallthru
      _
    // Predicated region
    $region38: #{multimodal_feature_block.1} parent=1 // pred_check
      _
    $region39: #{multimodal_feature_block.1} parent=1 // pred_check_branch
      %49 = sbr.rel (0) target = $region41
    $region40: #{multimodal_feature_block.1} parent=1 // pred_region
      _
    $region41: #{multimodal_feature_block.1} parent=1 // pred_fallthru
      _
    // Predicated region
    $region42: #{multimodal_feature_block.1} parent=1 // pred_check
      _
    $region43: #{multimodal_feature_block.1} parent=1 // pred_check_branch
      %51 = sbr.rel (0) target = $region45
    $region44: #{multimodal_feature_block.1} parent=1 // pred_region
      _
    $region45: #{multimodal_feature_block.1} parent=1 // pred_fallthru
      _
    // Predicated region
    $region46: #{multimodal_feature_block.1} parent=1 // pred_check
      _
    $region47: #{multimodal_feature_block.1} parent=1 // pred_check_branch
      %53 = sbr.rel (0) target = $region49
    $region48: #{multimodal_feature_block.1} parent=1 // pred_region
      _
    $region49: #{multimodal_feature_block.1} parent=1 // pred_fallthru
      _
    // Predicated region
    $region50: #{multimodal_feature_block.1} parent=1 // pred_check
      _
    $region51: #{multimodal_feature_block.1} parent=1 // pred_check_branch
      %55 = sbr.rel (0) target = $region53
    $region52: #{multimodal_feature_block.1} parent=1 // pred_region
      _
    $region53: #{multimodal_feature_block.1} parent=1 // pred_fallthru
      _
    // Predicated region
    $region54: #{multimodal_feature_block.1} parent=1 // pred_check
      _
    $region55: #{multimodal_feature_block.1} parent=1 // pred_check_branch
      %57 = sbr.rel (0) target = $region57
    $region56: #{multimodal_feature_block.1} parent=1 // pred_region
      _
    $region57: #{multimodal_feature_block.1} parent=1 // pred_fallthru
      _
    // Predicated region
    $region58: #{multimodal_feature_block.1} parent=1 // pred_check
      _
    $region59: #{multimodal_feature_block.1} parent=1 // pred_check_branch
      %59 = sbr.rel (0) target = $region61
    $region60: #{multimodal_feature_block.1} parent=1 // pred_region
      _
    $region61: #{multimodal_feature_block.1} parent=1 // pred_fallthru
      _
    // Predicated region
    $region62: #{multimodal_feature_block.1} parent=1 // pred_check
      _
    $region63: #{multimodal_feature_block.1} parent=1 // pred_check_branch
      %61 = sbr.rel (0) target = $region65
    $region64: #{multimodal_feature_block.1} parent=1 // pred_region
      _
    $region65: #{multimodal_feature_block.1} parent=1 // pred_fallthru
      _
    // Predicated region
    $region66: #{multimodal_feature_block.1} parent=1 // pred_check
      _
    $region67: #{multimodal_feature_block.1} parent=1 // pred_check_branch
      %63 = sbr.rel (0) target = $region69
    $region68: #{multimodal_feature_block.1} parent=1 // pred_region
      _
    $region69: #{multimodal_feature_block.1} parent=1 // pred_fallthru
      _
    // Predicated region
    $region70: #{multimodal_feature_block.1} parent=1 // pred_check
      _
    $region71: #{multimodal_feature_block.1} parent=1 // pred_check_branch
      %65 = sbr.rel (0) target = $region73
    $region72: #{multimodal_feature_block.1} parent=1 // pred_region
      _
    $region73: #{multimodal_feature_block.1} parent=1 // pred_fallthru
      _
    // Predicated region
    $region74: #{multimodal_feature_block.1} parent=1 // pred_check
      _
    $region75: #{multimodal_feature_block.1} parent=1 // pred_check_branch
      %67 = sbr.rel (0) target = $region77
    $region76: #{multimodal_feature_block.1} parent=1 // pred_region
      _
    $region77: #{multimodal_feature_block.1} parent=1 // pred_fallthru
      _
    // Predicated region
    $region78: #{multimodal_feature_block.1} parent=1 // pred_check
      _
    $region79: #{multimodal_feature_block.1} parent=1 // pred_check_branch
      %69 = sbr.rel (0) target = $region81
    $region80: #{multimodal_feature_block.1} parent=1 // pred_region
      _
    $region81: #{multimodal_feature_block.1} parent=1 // pred_fallthru
      _
    // Predicated region
    $region82: #{multimodal_feature_block.1} parent=1 // pred_check
      _
    $region83: #{multimodal_feature_block.1} parent=1 // pred_check_branch
      %71 = sbr.rel (0) target = $region85
    $region84: #{multimodal_feature_block.1} parent=1 // pred_region
      _
    $region85: #{multimodal_feature_block.1} parent=1 // pred_fallthru
      _
    // Predicated region
    $region86: #{multimodal_feature_block.1} parent=1 // pred_check
      _
    $region87: #{multimodal_feature_block.1} parent=1 // pred_check_branch
      %73 = sbr.rel (0) target = $region89
    $region88: #{multimodal_feature_block.1} parent=1 // pred_region
      _
    $region89: #{multimodal_feature_block.1} parent=1 // pred_fallthru
      _
    %v75 = vld [vmem:[%s1] sm:$0x3f]
    %v76 = vld [vmem:[%s0] sm:$0xff]
    %v77 = vld [vmem:[%s0 + $0x8] sm:$0xff]
    %vm78 = vcmask 130048
    %v80 = vsel %vm78, %v75, 0
    %82 = vmatprep.subr.mxu0 0.0
    %83 = vmatpush1.msra.mxu0 %v76
    %84 = vmatprep.subr.mxu0 0.0
    %85 = vmatpush1.msra.mxu0 %v77
    %86 = vmatprep.subr.mxu0 0.0
    %87 = vmatpush1.msra.mxu0 0.0
    %88 = vmatprep.subr.mxu0 0.0
    %89 = vmatpush1.msra.mxu0 0.0
    %90 = vmatprep.subr.mxu0 0.0
    %91 = vmatpush1.msra.mxu0 0.0
    %92 = vmatprep.subr.mxu0 0.0
    %93 = vmatpush1.msra.mxu0 0.0
    %94 = vmatprep.subr.mxu0 0.0
    %95 = vmatpush1.msra.mxu0 0.0
    %96 = vmatprep.subr.mxu0 0.0
    %97 = vmatpush1.msra.mxu0 0.0
    %98 = vmatprep.subr.mxu0 0.0
    %99 = vmatpush1.msra.mxu0 0.0
    %100 = vmatprep.subr.mxu0 0.0
    %101 = vmatpush1.msra.mxu0 0.0
    %102 = vmatprep.subr.mxu0 0.0
    %103 = vmatpush1.msra.mxu0 0.0
    %104 = vmatprep.subr.mxu0 0.0
    %105 = vmatpush1.msra.mxu0 0.0
    %106 = vmatprep.subr.mxu0 0.0
    %107 = vmatpush1.msra.mxu0 0.0
    %108 = vmatprep.subr.mxu0 0.0
    %109 = vmatpush1.msra.mxu0 0.0
    %110 = vmatprep.subr.mxu0 0.0
    %111 = vmatpush1.msra.mxu0 0.0
    %112 = vmatprep.subr.mxu0 0.0
    %113 = vmatpush1.msra.mxu0 0.0
    %114 = vmatprep.subr.mxu0 0.0
    %115 = vmatpush1.msra.mxu0 0.0
    %116 = vmatprep.subr.mxu0 0.0
    %117 = vmatpush1.msra.mxu0 0.0
    %118 = vmatprep.subr.mxu0 0.0
    %119 = vmatpush1.msra.mxu0 0.0
    %120 = vmatprep.subr.mxu0 0.0
    %121 = vmatpush1.msra.mxu0 0.0
    %122 = vmatprep.subr.mxu0 0.0
    %123 = vmatpush1.msra.mxu0 0.0
    %124 = vmatprep.subr.mxu0 0.0
    %125 = vmatpush1.msra.mxu0 0.0
    %126 = vmatprep.subr.mxu0 0.0
    %127 = vmatpush1.msra.mxu0 0.0
    %128 = vmatprep.subr.mxu0 0.0
    %129 = vmatpush1.msra.mxu0 0.0
    %130 = vmatprep.subr.mxu0 0.0
    %131 = vmatpush1.msra.mxu0 0.0
    %132 = vmatprep.subr.mxu0 0.0
    %133 = vmatpush1.msra.mxu0 0.0
    %134 = vmatprep.subr.mxu0 0.0
    %135 = vmatpush1.msra.mxu0 0.0
    %136 = vmatprep.subr.mxu0 0.0
    %137 = vmatpush1.msra.mxu0 0.0
    %138 = vmatprep.subr.mxu0 0.0
    %139 = vmatpush1.msra.mxu0 0.0
    %140 = vmatprep.subr.mxu0 0.0
    %141 = vmatpush1.msra.mxu0 0.0
    %142 = vmatprep.subr.mxu0 0.0
    %143 = vmatpush1.msra.mxu0 0.0
    %144 = vmatprep.subr.mxu0 0.0
    %145 = vmatpush1.msra.mxu0 0.0
    %146 = vmatprep.mubr.f32.mxu0 0.0
    %147 = vmatmul.mubr.f32.gmra.mrb[0].mxu0 %v80
    %v148 = vpop.f32.mrb[0].mxu0
    %v149 = vadd.f32 0.0, %v148
    %v150 = vpop.f32.mrb[0].mxu0
    %151 = vdwg.mxu0
    %v152 = vld [vmem:[%s2] sm:$0x3f]
    %v153 = vmul.f32 %v149, %v152
    %v154 = vpack.c.bf16 %v153, %v153
    %v155 = vld [vmem:[%s4] sm:$0xf]
    %v156 = vld [vmem:[%s4 + $0x4] sm:$0xf]
    %v157 = vld [vmem:[%s4 + $0x8] sm:$0xf]
    %v158 = vld [vmem:[%s4 + $0xc] sm:$0xf]
    %v159 = vld [vmem:[%s4 + $0x10] sm:$0xf]
    %v160 = vld [vmem:[%s4 + $0x14] sm:$0xf]
    %v161 = vld [vmem:[%s3] sm:$0x3f]
    %v168 = vunpack.c.l.b16 %v155
    %v169 = vunpack.c.l.b16 %v156
    %v170 = vunpack.c.l.b16 %v157
    %v171 = vunpack.c.l.b16 %v158
    %v172 = vunpack.c.l.b16 %v159
    %v173 = vunpack.c.l.b16 %v160
    %v174 = vpack.c.b16 %v169, %v168
    %v175 = vpack.c.b16 %v171, %v170
    %v176 = vpack.c.b16 %v173, %v172
    %vm180 = vcmask 392192
    %v182 = vsel %vm180, %v154, 0
    %184 = vmatprep.subr.bf16.mxu0 0
    %185 = vmatpush1.bf16.msra.mxu0 %v174
    %186 = vmatprep.subr.bf16.mxu0 0
    %187 = vmatpush1.bf16.msra.mxu0 %v175
    %188 = vmatprep.subr.bf16.mxu0 0
    %189 = vmatpush1.bf16.msra.mxu0 %v176
    %190 = vmatprep.subr.bf16.mxu0 0
    %191 = vmatpush1.bf16.msra.mxu0 0
    %192 = vmatprep.subr.bf16.mxu0 0
    %193 = vmatpush1.bf16.msra.mxu0 0
    %194 = vmatprep.subr.bf16.mxu0 0
    %195 = vmatpush1.bf16.msra.mxu0 0
    %196 = vmatprep.subr.bf16.mxu0 0
    %197 = vmatpush1.bf16.msra.mxu0 0
    %198 = vmatprep.subr.bf16.mxu0 0
    %199 = vmatpush1.bf16.msra.mxu0 0
    %200 = vmatprep.subr.bf16.mxu0 0
    %201 = vmatpush1.bf16.msra.mxu0 0
    %202 = vmatprep.subr.bf16.mxu0 0
    %203 = vmatpush1.bf16.msra.mxu0 0
    %204 = vmatprep.subr.bf16.mxu0 0
    %205 = vmatpush1.bf16.msra.mxu0 0
    %206 = vmatprep.subr.bf16.mxu0 0
    %207 = vmatpush1.bf16.msra.mxu0 0
    %208 = vmatprep.subr.bf16.mxu0 0
    %209 = vmatpush1.bf16.msra.mxu0 0
    %210 = vmatprep.subr.bf16.mxu0 0
    %211 = vmatpush1.bf16.msra.mxu0 0
    %212 = vmatprep.subr.bf16.mxu0 0
    %213 = vmatpush1.bf16.msra.mxu0 0
    %214 = vmatprep.subr.bf16.mxu0 0
    %215 = vmatpush1.bf16.msra.mxu0 0
    %216 = vmatprep.mubr.bf16.mxu0 0
    %217 = vmatmul.mubr.bf16.gmra.mrb[0].mxu0 %v182
    %v218 = vpop.f32.mrb[0].mxu0
    %v219 = vadd.f32 %v161, %v218
    %v220 = vpop.f32.mrb[0].mxu0
    %v221 = vpop.f32.mrb[0].mxu0
    %v222 = vpop.f32.mrb[0].mxu0
    %223 = vdwg.mxu0
    %v224 = vpack.c.bf16 %v219, %v219
    %v225 = vld [vmem:[%s8] sm:$0xf]
    %v226 = vld [vmem:[%s8 + $0x4] sm:$0xf]
    %v227 = vld [vmem:[%s8 + $0x8] sm:$0xf]
    %v228 = vld [vmem:[%s8 + $0xc] sm:$0xf]
    %v229 = vld [vmem:[%s9] sm:$0x1]
    %v231 = vlaneseq
    %v232 = vshrl.u32 %v231, 7
    %v233 = vsub.s32 0, %v232
    %v234 = vrot.slane %v229, %v233
    %v240 = vunpack.c.l.b16 %v225
    %v241 = vunpack.c.l.b16 %v226
    %v242 = vunpack.c.l.b16 %v227
    %v243 = vunpack.c.l.b16 %v228
    %v244 = vpack.c.b16 %v241, %v240
    %v245 = vpack.c.b16 %v243, %v242
    %vm248 = vcmask 261120
    %v250 = vsel %vm248, %v224, 0
    %252 = vmatprep.subr.bf16.mxu0 0
    %253 = vmatpush1.bf16.msra.mxu0 %v244
    %254 = vmatprep.subr.bf16.mxu0 0
    %255 = vmatpush1.bf16.msra.mxu0 %v245
    %256 = vmatprep.subr.bf16.mxu0 0
    %257 = vmatpush1.bf16.msra.mxu0 0
    %258 = vmatprep.subr.bf16.mxu0 0
    %259 = vmatpush1.bf16.msra.mxu0 0
    %260 = vmatprep.subr.bf16.mxu0 0
    %261 = vmatpush1.bf16.msra.mxu0 0
    %262 = vmatprep.subr.bf16.mxu0 0
    %263 = vmatpush1.bf16.msra.mxu0 0
    %264 = vmatprep.subr.bf16.mxu0 0
    %265 = vmatpush1.bf16.msra.mxu0 0
    %266 = vmatprep.subr.bf16.mxu0 0
    %267 = vmatpush1.bf16.msra.mxu0 0
    %268 = vmatprep.subr.bf16.mxu0 0
    %269 = vmatpush1.bf16.msra.mxu0 0
    %270 = vmatprep.subr.bf16.mxu0 0
    %271 = vmatpush1.bf16.msra.mxu0 0
    %272 = vmatprep.subr.bf16.mxu0 0
    %273 = vmatpush1.bf16.msra.mxu0 0
    %274 = vmatprep.subr.bf16.mxu0 0
    %275 = vmatpush1.bf16.msra.mxu0 0
    %276 = vmatprep.subr.bf16.mxu0 0
    %277 = vmatpush1.bf16.msra.mxu0 0
    %278 = vmatprep.subr.bf16.mxu0 0
    %279 = vmatpush1.bf16.msra.mxu0 0
    %280 = vmatprep.subr.bf16.mxu0 0
    %281 = vmatpush1.bf16.msra.mxu0 0
    %282 = vmatprep.subr.bf16.mxu0 0
    %283 = vmatpush1.bf16.msra.mxu0 0
    %284 = vmatprep.mubr.bf16.mxu0 0
    %285 = vmatmul.mubr.bf16.gmra.mrb[0].mxu0 %v250
    %v286 = vpop.f32.mrb[0].mxu0
    %v287 = vadd.f32 %v234, %v286
    %v288 = vpop.f32.mrb[0].mxu0
    %v289 = vpop.f32.mrb[0].mxu0
    %v290 = vpop.f32.mrb[0].mxu0
    %291 = vdwg.mxu0
    %v292 = vld [vmem:[%s6] sm:$0xff]
    %v293 = vld [vmem:[%s6 + $0x8] sm:$0xff]
    %v294 = vld [vmem:[%s6 + $0x10] sm:$0xff]
    %vm295 = vcmask 48128
    %v297 = vsel %vm295, %v292, 0
    %v300 = vsel %vm295, %v293, 0
    %v303 = vsel %vm295, %v294, 0
    %vm305 = vcmask 1045504
    %v307 = vsel %vm305, %v287, 0
    %309 = vmatprep.subr.mxu0 0.0
    %310 = vmatpush1.msra.mxu0 %v307
    %311 = vmatprep.subr.mxu0 0.0
    %312 = vmatpush1.msra.mxu0 0.0
    %313 = vmatprep.subr.mxu0 0.0
    %314 = vmatpush1.msra.mxu0 0.0
    %315 = vmatprep.subr.mxu0 0.0
    %316 = vmatpush1.msra.mxu0 0.0
    %317 = vmatprep.subr.mxu0 0.0
    %318 = vmatpush1.msra.mxu0 0.0
    %319 = vmatprep.subr.mxu0 0.0
    %320 = vmatpush1.msra.mxu0 0.0
    %321 = vmatprep.subr.mxu0 0.0
    %322 = vmatpush1.msra.mxu0 0.0
    %323 = vmatprep.subr.mxu0 0.0
    %324 = vmatpush1.msra.mxu0 0.0
    %325 = vmatprep.subr.mxu0 0.0
    %326 = vmatpush1.msra.mxu0 0.0
    %327 = vmatprep.subr.mxu0 0.0
    %328 = vmatpush1.msra.mxu0 0.0
    %329 = vmatprep.subr.mxu0 0.0
    %330 = vmatpush1.msra.mxu0 0.0
    %331 = vmatprep.subr.mxu0 0.0
    %332 = vmatpush1.msra.mxu0 0.0
    %333 = vmatprep.subr.mxu0 0.0
    %334 = vmatpush1.msra.mxu0 0.0
    %335 = vmatprep.subr.mxu0 0.0
    %336 = vmatpush1.msra.mxu0 0.0
    %337 = vmatprep.subr.mxu0 0.0
    %338 = vmatpush1.msra.mxu0 0.0
    %339 = vmatprep.subr.mxu0 0.0
    %340 = vmatpush1.msra.mxu0 0.0
    %341 = vmatprep.subr.mxu0 0.0
    %342 = vmatpush1.msra.mxu0 0.0
    %343 = vmatprep.subr.mxu0 0.0
    %344 = vmatpush1.msra.mxu0 0.0
    %345 = vmatprep.subr.mxu0 0.0
    %346 = vmatpush1.msra.mxu0 0.0
    %347 = vmatprep.subr.mxu0 0.0
    %348 = vmatpush1.msra.mxu0 0.0
    %349 = vmatprep.subr.mxu0 0.0
    %350 = vmatpush1.msra.mxu0 0.0
    %351 = vmatprep.subr.mxu0 0.0
    %352 = vmatpush1.msra.mxu0 0.0
    %353 = vmatprep.subr.mxu0 0.0
    %354 = vmatpush1.msra.mxu0 0.0
    %355 = vmatprep.subr.mxu0 0.0
    %356 = vmatpush1.msra.mxu0 0.0
    %357 = vmatprep.subr.mxu0 0.0
    %358 = vmatpush1.msra.mxu0 0.0
    %359 = vmatprep.subr.mxu0 0.0
    %360 = vmatpush1.msra.mxu0 0.0
    %361 = vmatprep.subr.mxu0 0.0
    %362 = vmatpush1.msra.mxu0 0.0
    %363 = vmatprep.subr.mxu0 0.0
    %364 = vmatpush1.msra.mxu0 0.0
    %365 = vmatprep.subr.mxu0 0.0
    %366 = vmatpush1.msra.mxu0 0.0
    %367 = vmatprep.subr.mxu0 0.0
    %368 = vmatpush1.msra.mxu0 0.0
    %369 = vmatprep.subr.mxu0 0.0
    %370 = vmatpush1.msra.mxu0 0.0
    %371 = vmatprep.subr.mxu0 0.0
    %372 = vmatpush1.msra.mxu0 0.0
    %373 = vmatprep.mubr.f32.mxu0 0.0
    %374 = vmatmul.mubr.f32.gmra.mrb[0].mxu0 %v297
    %v375 = vpop.f32.mrb[0].mxu0
    %v376 = vadd.f32 0.0, %v375
    %v377 = vpop.f32.mrb[0].mxu0
    %378 = vmatprep.mubr.f32.mxu0 0.0
    %379 = vmatmul.mubr.f32.gmra.mrb[0].mxu0 %v300
    %v380 = vpop.f32.mrb[0].mxu0
    %v381 = vadd.f32 0.0, %v380
    %v382 = vpop.f32.mrb[0].mxu0
    %383 = vmatprep.mubr.f32.mxu0 0.0
    %384 = vmatmul.mubr.f32.gmra.mrb[0].mxu0 %v303
    %v385 = vpop.f32.mrb[0].mxu0
    %v386 = vadd.f32 0.0, %v385
    %v387 = vpop.f32.mrb[0].mxu0
    %388 = vdwg.mxu0
    %v389 = vld [vmem:[%s7] sm:$0xff]
    %v390 = vld [vmem:[%s7 + $0x8] sm:$0xff]
    %v391 = vld [vmem:[%s7 + $0x10] sm:$0xff]
    %392 = vrot.lane.b32.xlu0 %v287, 96
    %v393 = vpop.permute.xlu0 %392
    %v395 = vsel %vm295, %v389, 0
    %v398 = vsel %vm295, %v390, 0
    %v401 = vsel %vm295, %v391, 0
    %v403 = vsel %vm305, %v393, 0
    %405 = vmatprep.subr.mxu0 0.0
    %406 = vmatpush1.msra.mxu0 %v403
    %407 = vmatprep.subr.mxu0 0.0
    %408 = vmatpush1.msra.mxu0 0.0
    %409 = vmatprep.subr.mxu0 0.0
    %410 = vmatpush1.msra.mxu0 0.0
    %411 = vmatprep.subr.mxu0 0.0
    %412 = vmatpush1.msra.mxu0 0.0
    %413 = vmatprep.subr.mxu0 0.0
    %414 = vmatpush1.msra.mxu0 0.0
    %415 = vmatprep.subr.mxu0 0.0
    %416 = vmatpush1.msra.mxu0 0.0
    %417 = vmatprep.subr.mxu0 0.0
    %418 = vmatpush1.msra.mxu0 0.0
    %419 = vmatprep.subr.mxu0 0.0
    %420 = vmatpush1.msra.mxu0 0.0
    %421 = vmatprep.subr.mxu0 0.0
    %422 = vmatpush1.msra.mxu0 0.0
    %423 = vmatprep.subr.mxu0 0.0
    %424 = vmatpush1.msra.mxu0 0.0
    %425 = vmatprep.subr.mxu0 0.0
    %426 = vmatpush1.msra.mxu0 0.0
    %427 = vmatprep.subr.mxu0 0.0
    %428 = vmatpush1.msra.mxu0 0.0
    %429 = vmatprep.subr.mxu0 0.0
    %430 = vmatpush1.msra.mxu0 0.0
    %431 = vmatprep.subr.mxu0 0.0
    %432 = vmatpush1.msra.mxu0 0.0
    %433 = vmatprep.subr.mxu0 0.0
    %434 = vmatpush1.msra.mxu0 0.0
    %435 = vmatprep.subr.mxu0 0.0
    %436 = vmatpush1.msra.mxu0 0.0
    %437 = vmatprep.subr.mxu0 0.0
    %438 = vmatpush1.msra.mxu0 0.0
    %439 = vmatprep.subr.mxu0 0.0
    %440 = vmatpush1.msra.mxu0 0.0
    %441 = vmatprep.subr.mxu0 0.0
    %442 = vmatpush1.msra.mxu0 0.0
    %443 = vmatprep.subr.mxu0 0.0
    %444 = vmatpush1.msra.mxu0 0.0
    %445 = vmatprep.subr.mxu0 0.0
    %446 = vmatpush1.msra.mxu0 0.0
    %447 = vmatprep.subr.mxu0 0.0
    %448 = vmatpush1.msra.mxu0 0.0
    %449 = vmatprep.subr.mxu0 0.0
    %450 = vmatpush1.msra.mxu0 0.0
    %451 = vmatprep.subr.mxu0 0.0
    %452 = vmatpush1.msra.mxu0 0.0
    %453 = vmatprep.subr.mxu0 0.0
    %454 = vmatpush1.msra.mxu0 0.0
    %455 = vmatprep.subr.mxu0 0.0
    %456 = vmatpush1.msra.mxu0 0.0
    %457 = vmatprep.subr.mxu0 0.0
    %458 = vmatpush1.msra.mxu0 0.0
    %459 = vmatprep.subr.mxu0 0.0
    %460 = vmatpush1.msra.mxu0 0.0
    %461 = vmatprep.subr.mxu0 0.0
    %462 = vmatpush1.msra.mxu0 0.0
    %463 = vmatprep.subr.mxu0 0.0
    %464 = vmatpush1.msra.mxu0 0.0
    %465 = vmatprep.subr.mxu0 0.0
    %466 = vmatpush1.msra.mxu0 0.0
    %467 = vmatprep.subr.mxu0 0.0
    %468 = vmatpush1.msra.mxu0 0.0
    %469 = vmatprep.mubr.f32.mxu0 0.0
    %470 = vmatmul.mubr.f32.gmra.mrb[0].mxu0 %v395
    %v471 = vpop.f32.mrb[0].mxu0
    %v472 = vadd.f32 0.0, %v471
    %v473 = vpop.f32.mrb[0].mxu0
    %474 = vmatprep.mubr.f32.mxu0 0.0
    %475 = vmatmul.mubr.f32.gmra.mrb[0].mxu0 %v398
    %v476 = vpop.f32.mrb[0].mxu0
    %v477 = vadd.f32 0.0, %v476
    %v478 = vpop.f32.mrb[0].mxu0
    %479 = vmatprep.mubr.f32.mxu0 0.0
    %480 = vmatmul.mubr.f32.gmra.mrb[0].mxu0 %v401
    %v481 = vpop.f32.mrb[0].mxu0
    %v482 = vadd.f32 0.0, %v481
    %v483 = vpop.f32.mrb[0].mxu0
    %484 = vdwg.mxu0
    %v485 = vmul.f32 %v376, %v472
    %v486 = vmul.f32 %v381, %v477
    %v487 = vmul.f32 %v386, %v482
    %v488 = vpack.c.bf16 %v486, %v485
    %v489 = vpack.c.bf16 %v487, %v487
    %v490 = vld [vmem:[%s5] sm:$0xf]
    %v491 = vld [vmem:[%s5 + $0x4] sm:$0xf]
    %v492 = vld [vmem:[%s5 + $0x8] sm:$0xf]
    %v493 = vld [vmem:[%s5 + $0xc] sm:$0xf]
    %v498 = vunpack.c.l.b16 %v490
    %v499 = vunpack.c.l.b16 %v491
    %v500 = vunpack.c.l.b16 %v492
    %v501 = vunpack.c.l.b16 %v493
    %v502 = vpack.c.b16 %v499, %v498
    %v503 = vpack.c.b16 %v501, %v500
    %v507 = vsel %vm248, %v488, 0
    %v510 = vsel %vm248, %v489, 0
    %512 = vmatprep.subr.bf16.mxu0 0
    %513 = vmatpush1.bf16.msra.mxu0 %v502
    %514 = vmatprep.subr.bf16.mxu0 0
    %515 = vmatpush1.bf16.msra.mxu0 %v503
    %516 = vmatprep.subr.bf16.mxu0 0
    %517 = vmatpush1.bf16.msra.mxu0 0
    %518 = vmatprep.subr.bf16.mxu0 0
    %519 = vmatpush1.bf16.msra.mxu0 0
    %520 = vmatprep.subr.bf16.mxu0 0
    %521 = vmatpush1.bf16.msra.mxu0 0
    %522 = vmatprep.subr.bf16.mxu0 0
    %523 = vmatpush1.bf16.msra.mxu0 0
    %524 = vmatprep.subr.bf16.mxu0 0
    %525 = vmatpush1.bf16.msra.mxu0 0
    %526 = vmatprep.subr.bf16.mxu0 0
    %527 = vmatpush1.bf16.msra.mxu0 0
    %528 = vmatprep.subr.bf16.mxu0 0
    %529 = vmatpush1.bf16.msra.mxu0 0
    %530 = vmatprep.subr.bf16.mxu0 0
    %531 = vmatpush1.bf16.msra.mxu0 0
    %532 = vmatprep.subr.bf16.mxu0 0
    %533 = vmatpush1.bf16.msra.mxu0 0
    %534 = vmatprep.subr.bf16.mxu0 0
    %535 = vmatpush1.bf16.msra.mxu0 0
    %536 = vmatprep.subr.bf16.mxu0 0
    %537 = vmatpush1.bf16.msra.mxu0 0
    %538 = vmatprep.subr.bf16.mxu0 0
    %539 = vmatpush1.bf16.msra.mxu0 0
    %540 = vmatprep.subr.bf16.mxu0 0
    %541 = vmatpush1.bf16.msra.mxu0 0
    %542 = vmatprep.subr.bf16.mxu0 0
    %543 = vmatpush1.bf16.msra.mxu0 0
    %544 = vmatprep.mubr.bf16.mxu0 0
    %545 = vmatmul.mubr.bf16.gmra.mrb[0].mxu0 %v507
    %v546 = vpop.f32.mrb[0].mxu0
    %v547 = vadd.f32 0.0, %v546
    %v548 = vpop.f32.mrb[0].mxu0
    %v549 = vpop.f32.mrb[0].mxu0
    %v550 = vadd.f32 0.0, %v549
    %v551 = vpop.f32.mrb[0].mxu0
    %552 = vmatprep.mubr.bf16.mxu0 0
    %553 = vmatmul.mubr.bf16.gmra.mrb[0].mxu0 %v510
    %v554 = vpop.f32.mrb[0].mxu0
    %v555 = vadd.f32 0.0, %v554
    %v556 = vpop.f32.mrb[0].mxu0
    %v557 = vpop.f32.mrb[0].mxu0
    %v558 = vpop.f32.mrb[0].mxu0
    %559 = vdwg.mxu0
    %v560 = vmax.f32 %v547, %v550
    %v561 = vmax.f32 %v560, %v555
    %v562 = vsub.f32 %v547, %v561
    %v563 = vmul.f32 %v562, 1.442695
    %v564 = vpow.pop %v563
    %v565 = vsub.f32 %v550, %v561
    %v566 = vmul.f32 %v565, 1.442695
    %v567 = vpow.pop %v566
    %v568 = vsub.f32 %v555, %v561
    %v569 = vmul.f32 %v568, 1.442695
    %v570 = vpow.pop %v569
    %v571 = vadd.f32 %v564, %v567
    %v572 = vadd.f32 %v571, %v570
    %v573 = vrcp.pop %v572
    %575 = vrot.lane.b32.xlu0 %v472, 96
    %v576 = vpop.permute.xlu0 %575
    %v578 = vmul.f32 %v564, %v576
    %580 = vrot.lane.b32.xlu0 %v477, 96
    %v581 = vpop.permute.xlu0 %580
    %v583 = vmul.f32 %v567, %v581
    %v584 = vadd.f32 %v578, %v583
    %586 = vrot.lane.b32.xlu0 %v482, 96
    %v587 = vpop.permute.xlu0 %586
    %v589 = vmul.f32 %v570, %v587
    %v590 = vadd.f32 %v584, %v589
    %v591 = vmul.f32 %v590, %v573
    %v592 = vpack.c.bf16 %v591, %v591
    %v593 = vld [vmem:[%s10] sm:$0xf]
    %v594 = vld [vmem:[%s10 + $0x4] sm:$0xf]
    %v595 = vld [vmem:[%s10 + $0x8] sm:$0xf]
    %v596 = vld [vmem:[%s10 + $0xc] sm:$0xf]
    %v597 = vld [vmem:[%s11] sm:$0x1]
    %v599 = vlaneseq
    %v600 = vshrl.u32 %v599, 7
    %v601 = vsub.s32 0, %v600
    %v602 = vrot.slane %v597, %v601
    %v608 = vunpack.c.l.b16 %v593
    %v609 = vunpack.c.l.b16 %v594
    %v610 = vunpack.c.l.b16 %v595
    %v611 = vunpack.c.l.b16 %v596
    %v612 = vpack.c.b16 %v609, %v608
    %v613 = vpack.c.b16 %v611, %v610
    %v617 = vsel %vm248, %v592, 0
    %619 = vmatprep.subr.bf16.mxu0 0
    %620 = vmatpush1.bf16.msra.mxu0 %v612
    %621 = vmatprep.subr.bf16.mxu0 0
    %622 = vmatpush1.bf16.msra.mxu0 %v613
    %623 = vmatprep.subr.bf16.mxu0 0
    %624 = vmatpush1.bf16.msra.mxu0 0
    %625 = vmatprep.subr.bf16.mxu0 0
    %626 = vmatpush1.bf16.msra.mxu0 0
    %627 = vmatprep.subr.bf16.mxu0 0
    %628 = vmatpush1.bf16.msra.mxu0 0
    %629 = vmatprep.subr.bf16.mxu0 0
    %630 = vmatpush1.bf16.msra.mxu0 0
    %631 = vmatprep.subr.bf16.mxu0 0
    %632 = vmatpush1.bf16.msra.mxu0 0
    %633 = vmatprep.subr.bf16.mxu0 0
    %634 = vmatpush1.bf16.msra.mxu0 0
    %635 = vmatprep.subr.bf16.mxu0 0
    %636 = vmatpush1.bf16.msra.mxu0 0
    %637 = vmatprep.subr.bf16.mxu0 0
    %638 = vmatpush1.bf16.msra.mxu0 0
    %639 = vmatprep.subr.bf16.mxu0 0
    %640 = vmatpush1.bf16.msra.mxu0 0
    %641 = vmatprep.subr.bf16.mxu0 0
    %642 = vmatpush1.bf16.msra.mxu0 0
    %643 = vmatprep.subr.bf16.mxu0 0
    %644 = vmatpush1.bf16.msra.mxu0 0
    %645 = vmatprep.subr.bf16.mxu0 0
    %646 = vmatpush1.bf16.msra.mxu0 0
    %647 = vmatprep.subr.bf16.mxu0 0
    %648 = vmatpush1.bf16.msra.mxu0 0
    %649 = vmatprep.subr.bf16.mxu0 0
    %650 = vmatpush1.bf16.msra.mxu0 0
    %651 = vmatprep.mubr.bf16.mxu0 0
    %652 = vmatmul.mubr.bf16.gmra.mrb[0].mxu0 %v617
    %v653 = vpop.f32.mrb[0].mxu0
    %v654 = vadd.f32 %v602, %v653
    %v655 = vpop.f32.mrb[0].mxu0
    %v656 = vpop.f32.mrb[0].mxu0
    %v657 = vpop.f32.mrb[0].mxu0
    %658 = vdwg.mxu0
    %v659 = vadd.f32 %v219, %v654
    %v660 = vld [vmem:[%s12] sm:$0x1]
    %v661 = vld [vmem:[%s13] sm:$0x1]
    %vm662 = vcmask 259072
    %v663 = vsel %vm662, %v659, 0.0
    %664 = vadd.xlane.f32.xlu0 %v663
    %v665 = vpop.xlane.xlu0 %664
    %v666 = vrcp.pop 32.0
    %v667 = vmul.f32 %v665, %v666
    %v668 = vsub.f32 %v659, %v667
    %v669 = vmul.f32 %v668, %v668
    %v670 = vsel %vm662, %v669, 0.0
    %671 = vadd.xlane.f32.xlu0 %v670
    %v672 = vpop.xlane.xlu0 %671
    %v673 = vmul.f32 %v672, %v666
    %v674 = vadd.f32 %v673, 1e-05
    %v675 = vrsqrt.pop %v674
    %v676 = vmul.f32 %v668, %v675
    %v678 = vlaneseq
    %v679 = vshrl.u32 %v678, 7
    %v680 = vsub.s32 0, %v679
    %v681 = vrot.slane %v660, %v680
    %v683 = vmul.f32 %v676, %v681
    %v685 = vlaneseq
    %v686 = vshrl.u32 %v685, 7
    %v687 = vsub.s32 0, %v686
    %v688 = vrot.slane %v661, %v687
    %v690 = vadd.f32 %v683, %v688
    %v691 = vpack.c.bf16 %v690, %v690
    %v692 = vld [vmem:[%s14] sm:$0xff]
    %v693 = vld [vmem:[%s14 + $0x8] sm:$0xff]
    %v694 = vld [vmem:[%s14 + $0x10] sm:$0xff]
    %v695 = vld [vmem:[%s14 + $0x18] sm:$0xff]
    %v696 = vld [vmem:[%s14 + $0x20] sm:$0xff]
    %v697 = vld [vmem:[%s14 + $0x28] sm:$0xff]
    %v698 = vld [vmem:[%s14 + $0x30] sm:$0xff]
    %v699 = vld [vmem:[%s14 + $0x38] sm:$0xff]
    %v700 = vld [vmem:[%s14 + $0x40] sm:$0xff]
    %v701 = vld [vmem:[%s14 + $0x48] sm:$0xff]
    %v702 = vld [vmem:[%s14 + $0x50] sm:$0xff]
    %v703 = vld [vmem:[%s14 + $0x58] sm:$0xff]
    %v704 = vld [vmem:[%s14 + $0x60] sm:$0xff]
    %v705 = vld [vmem:[%s14 + $0x68] sm:$0xff]
    %v706 = vld [vmem:[%s14 + $0x70] sm:$0xff]
    %v707 = vld [vmem:[%s14 + $0x78] sm:$0xff]
    %v708 = vld [vmem:[%s14 + $0x80] sm:$0xff]
    %v709 = vld [vmem:[%s14 + $0x88] sm:$0xff]
    %v710 = vld [vmem:[%s14 + $0x90] sm:$0xff]
    %v711 = vld [vmem:[%s14 + $0x98] sm:$0xff]
    %v712 = vld [vmem:[%s14 + $0xa0] sm:$0xff]
    %v713 = vld [vmem:[%s14 + $0xa8] sm:$0xff]
    %v714 = vld [vmem:[%s14 + $0xb0] sm:$0xff]
    %v715 = vld [vmem:[%s14 + $0xb8] sm:$0xff]
    %v716 = vld [vmem:[%s14 + $0xc0] sm:$0xff]
    %v717 = vld [vmem:[%s14 + $0xc8] sm:$0xff]
    %v718 = vld [vmem:[%s14 + $0xd0] sm:$0xff]
    %v719 = vld [vmem:[%s14 + $0xd8] sm:$0xff]
    %v720 = vld [vmem:[%s14 + $0xe0] sm:$0xff]
    %v721 = vld [vmem:[%s14 + $0xe8] sm:$0xff]
    %v722 = vld [vmem:[%s14 + $0xf0] sm:$0xff]
    %v723 = vld [vmem:[%s14 + $0xf8] sm:$0xff]
    %v724 = vld [vmem:[%s15] sm:$0xff]
    %v725 = vld [vmem:[%s15 + $0x8] sm:$0xff]
    %v728 = vlaneseq
    %v729 = vshrl.u32 %v728, 7
    %v730 = vsub.s32 0, %v729
    %v731 = vrot.slane %v724, %v730
    %v732 = vlaneseq
    %v733 = vshrl.u32 %v732, 7
    %v734 = vsub.s32 1, %v733
    %v735 = vrot.slane %v724, %v734
    %v736 = vlaneseq
    %v737 = vshrl.u32 %v736, 7
    %v738 = vsub.s32 2, %v737
    %v739 = vrot.slane %v724, %v738
    %v740 = vlaneseq
    %v741 = vshrl.u32 %v740, 7
    %v742 = vsub.s32 3, %v741
    %v743 = vrot.slane %v724, %v742
    %v744 = vlaneseq
    %v745 = vshrl.u32 %v744, 7
    %v746 = vsub.s32 4, %v745
    %v747 = vrot.slane %v724, %v746
    %v748 = vlaneseq
    %v749 = vshrl.u32 %v748, 7
    %v750 = vsub.s32 5, %v749
    %v751 = vrot.slane %v724, %v750
    %v752 = vlaneseq
    %v753 = vshrl.u32 %v752, 7
    %v754 = vsub.s32 6, %v753
    %v755 = vrot.slane %v724, %v754
    %v756 = vlaneseq
    %v757 = vshrl.u32 %v756, 7
    %v758 = vsub.s32 7, %v757
    %v759 = vrot.slane %v724, %v758
    %v760 = vlaneseq
    %v761 = vshrl.u32 %v760, 7
    %v762 = vsub.s32 0, %v761
    %v763 = vrot.slane %v725, %v762
    %v764 = vlaneseq
    %v765 = vshrl.u32 %v764, 7
    %v766 = vsub.s32 1, %v765
    %v767 = vrot.slane %v725, %v766
    %v768 = vlaneseq
    %v769 = vshrl.u32 %v768, 7
    %v770 = vsub.s32 2, %v769
    %v771 = vrot.slane %v725, %v770
    %v772 = vlaneseq
    %v773 = vshrl.u32 %v772, 7
    %v774 = vsub.s32 3, %v773
    %v775 = vrot.slane %v725, %v774
    %v776 = vlaneseq
    %v777 = vshrl.u32 %v776, 7
    %v778 = vsub.s32 4, %v777
    %v779 = vrot.slane %v725, %v778
    %v780 = vlaneseq
    %v781 = vshrl.u32 %v780, 7
    %v782 = vsub.s32 5, %v781
    %v783 = vrot.slane %v725, %v782
    %v784 = vlaneseq
    %v785 = vshrl.u32 %v784, 7
    %v786 = vsub.s32 6, %v785
    %v787 = vrot.slane %v725, %v786
    %v788 = vlaneseq
    %v789 = vshrl.u32 %v788, 7
    %v790 = vsub.s32 7, %v789
    %v791 = vrot.slane %v725, %v790
    %v840 = vunpack.c.l.b16 %v692
    %v841 = vunpack.c.h.b16 %v692
    %v842 = vunpack.c.l.b16 %v693
    %v843 = vunpack.c.h.b16 %v693
    %v844 = vunpack.c.l.b16 %v694
    %v845 = vunpack.c.h.b16 %v694
    %v846 = vunpack.c.l.b16 %v695
    %v847 = vunpack.c.h.b16 %v695
    %v848 = vunpack.c.l.b16 %v696
    %v849 = vunpack.c.h.b16 %v696
    %v850 = vunpack.c.l.b16 %v697
    %v851 = vunpack.c.h.b16 %v697
    %v852 = vunpack.c.l.b16 %v698
    %v853 = vunpack.c.h.b16 %v698
    %v854 = vunpack.c.l.b16 %v699
    %v855 = vunpack.c.h.b16 %v699
    %v856 = vunpack.c.l.b16 %v700
    %v857 = vunpack.c.h.b16 %v700
    %v858 = vunpack.c.l.b16 %v701
    %v859 = vunpack.c.h.b16 %v701
    %v860 = vunpack.c.l.b16 %v702
    %v861 = vunpack.c.h.b16 %v702
    %v862 = vunpack.c.l.b16 %v703
    %v863 = vunpack.c.h.b16 %v703
    %v864 = vunpack.c.l.b16 %v704
    %v865 = vunpack.c.h.b16 %v704
    %v866 = vunpack.c.l.b16 %v705
    %v867 = vunpack.c.h.b16 %v705
    %v868 = vunpack.c.l.b16 %v706
    %v869 = vunpack.c.h.b16 %v706
    %v870 = vunpack.c.l.b16 %v707
    %v871 = vunpack.c.h.b16 %v707
    %v872 = vunpack.c.l.b16 %v708
    %v873 = vunpack.c.h.b16 %v708
    %v874 = vunpack.c.l.b16 %v709
    %v875 = vunpack.c.h.b16 %v709
    %v876 = vunpack.c.l.b16 %v710
    %v877 = vunpack.c.h.b16 %v710
    %v878 = vunpack.c.l.b16 %v711
    %v879 = vunpack.c.h.b16 %v711
    %v880 = vunpack.c.l.b16 %v712
    %v881 = vunpack.c.h.b16 %v712
    %v882 = vunpack.c.l.b16 %v713
    %v883 = vunpack.c.h.b16 %v713
    %v884 = vunpack.c.l.b16 %v714
    %v885 = vunpack.c.h.b16 %v714
    %v886 = vunpack.c.l.b16 %v715
    %v887 = vunpack.c.h.b16 %v715
    %v888 = vunpack.c.l.b16 %v716
    %v889 = vunpack.c.h.b16 %v716
    %v890 = vunpack.c.l.b16 %v717
    %v891 = vunpack.c.h.b16 %v717
    %v892 = vunpack.c.l.b16 %v718
    %v893 = vunpack.c.h.b16 %v718
    %v894 = vunpack.c.l.b16 %v719
    %v895 = vunpack.c.h.b16 %v719
    %v896 = vunpack.c.l.b16 %v720
    %v897 = vunpack.c.h.b16 %v720
    %v898 = vunpack.c.l.b16 %v721
    %v899 = vunpack.c.h.b16 %v721
    %v900 = vunpack.c.l.b16 %v722
    %v901 = vunpack.c.h.b16 %v722
    %v902 = vunpack.c.l.b16 %v723
    %v903 = vunpack.c.h.b16 %v723
    %v904 = vpack.c.b16 %v856, %v840
    %v905 = vpack.c.b16 %v857, %v841
    %v906 = vpack.c.b16 %v858, %v842
    %v907 = vpack.c.b16 %v859, %v843
    %v908 = vpack.c.b16 %v860, %v844
    %v909 = vpack.c.b16 %v861, %v845
    %v910 = vpack.c.b16 %v862, %v846
    %v911 = vpack.c.b16 %v863, %v847
    %v912 = vpack.c.b16 %v864, %v848
    %v913 = vpack.c.b16 %v865, %v849
    %v914 = vpack.c.b16 %v866, %v850
    %v915 = vpack.c.b16 %v867, %v851
    %v916 = vpack.c.b16 %v868, %v852
    %v917 = vpack.c.b16 %v869, %v853
    %v918 = vpack.c.b16 %v870, %v854
    %v919 = vpack.c.b16 %v871, %v855
    %v920 = vpack.c.b16 %v888, %v872
    %v921 = vpack.c.b16 %v889, %v873
    %v922 = vpack.c.b16 %v890, %v874
    %v923 = vpack.c.b16 %v891, %v875
    %v924 = vpack.c.b16 %v892, %v876
    %v925 = vpack.c.b16 %v893, %v877
    %v926 = vpack.c.b16 %v894, %v878
    %v927 = vpack.c.b16 %v895, %v879
    %v928 = vpack.c.b16 %v896, %v880
    %v929 = vpack.c.b16 %v897, %v881
    %v930 = vpack.c.b16 %v898, %v882
    %v931 = vpack.c.b16 %v899, %v883
    %v932 = vpack.c.b16 %v900, %v884
    %v933 = vpack.c.b16 %v901, %v885
    %v934 = vpack.c.b16 %v902, %v886
    %v935 = vpack.c.b16 %v903, %v887
    %v969 = vsel %vm248, %v691, 0
    %971 = vmatprep.subr.bf16.mxu0 %v905
    %972 = vmatpush1.bf16.msra.mxu0 %v904
    %973 = vmatprep.subr.bf16.mxu0 %v921
    %974 = vmatpush1.bf16.msra.mxu0 %v920
    %975 = vmatprep.subr.bf16.mxu0 0
    %976 = vmatpush1.bf16.msra.mxu0 0
    %977 = vmatprep.subr.bf16.mxu0 0
    %978 = vmatpush1.bf16.msra.mxu0 0
    %979 = vmatprep.subr.bf16.mxu0 0
    %980 = vmatpush1.bf16.msra.mxu0 0
    %981 = vmatprep.subr.bf16.mxu0 0
    %982 = vmatpush1.bf16.msra.mxu0 0
    %983 = vmatprep.subr.bf16.mxu0 0
    %984 = vmatpush1.bf16.msra.mxu0 0
    %985 = vmatprep.subr.bf16.mxu0 0
    %986 = vmatpush1.bf16.msra.mxu0 0
    %987 = vmatprep.subr.bf16.mxu0 0
    %988 = vmatpush1.bf16.msra.mxu0 0
    %989 = vmatprep.subr.bf16.mxu0 0
    %990 = vmatpush1.bf16.msra.mxu0 0
    %991 = vmatprep.subr.bf16.mxu0 0
    %992 = vmatpush1.bf16.msra.mxu0 0
    %993 = vmatprep.subr.bf16.mxu0 0
    %994 = vmatpush1.bf16.msra.mxu0 0
    %995 = vmatprep.subr.bf16.mxu0 0
    %996 = vmatpush1.bf16.msra.mxu0 0
    %997 = vmatprep.subr.bf16.mxu0 0
    %998 = vmatpush1.bf16.msra.mxu0 0
    %999 = vmatprep.subr.bf16.mxu0 0
    %1000 = vmatpush1.bf16.msra.mxu0 0
    %1001 = vmatprep.subr.bf16.mxu0 0
    %1002 = vmatpush1.bf16.msra.mxu0 0
    %1003 = vmatprep.mubr.bf16.mxu0 0
    %1004 = vmatmul.mubr.bf16.gmra.mrb[0].mxu0 %v969
    %v1005 = vpop.f32.mrb[0].mxu0
    %v1006 = vadd.f32 %v731, %v1005
    %v1007 = vpop.f32.mrb[0].mxu0
    %v1008 = vadd.f32 %v735, %v1007
    %v1009 = vpop.f32.mrb[0].mxu0
    %v1010 = vpop.f32.mrb[0].mxu0
    %1011 = vdwg.mxu0
    %1012 = vmatprep.subr.bf16.mxu0 %v907
    %1013 = vmatpush1.bf16.msra.mxu0 %v906
    %1014 = vmatprep.subr.bf16.mxu0 %v923
    %1015 = vmatpush1.bf16.msra.mxu0 %v922
    %1016 = vmatprep.subr.bf16.mxu0 0
    %1017 = vmatpush1.bf16.msra.mxu0 0
    %1018 = vmatprep.subr.bf16.mxu0 0
    %1019 = vmatpush1.bf16.msra.mxu0 0
    %1020 = vmatprep.subr.bf16.mxu0 0
    %1021 = vmatpush1.bf16.msra.mxu0 0
    %1022 = vmatprep.subr.bf16.mxu0 0
    %1023 = vmatpush1.bf16.msra.mxu0 0
    %1024 = vmatprep.subr.bf16.mxu0 0
    %1025 = vmatpush1.bf16.msra.mxu0 0
    %1026 = vmatprep.subr.bf16.mxu0 0
    %1027 = vmatpush1.bf16.msra.mxu0 0
    %1028 = vmatprep.subr.bf16.mxu0 0
    %1029 = vmatpush1.bf16.msra.mxu0 0
    %1030 = vmatprep.subr.bf16.mxu0 0
    %1031 = vmatpush1.bf16.msra.mxu0 0
    %1032 = vmatprep.subr.bf16.mxu0 0
    %1033 = vmatpush1.bf16.msra.mxu0 0
    %1034 = vmatprep.subr.bf16.mxu0 0
    %1035 = vmatpush1.bf16.msra.mxu0 0
    %1036 = vmatprep.subr.bf16.mxu0 0
    %1037 = vmatpush1.bf16.msra.mxu0 0
    %1038 = vmatprep.subr.bf16.mxu0 0
    %1039 = vmatpush1.bf16.msra.mxu0 0
    %1040 = vmatprep.subr.bf16.mxu0 0
    %1041 = vmatpush1.bf16.msra.mxu0 0
    %1042 = vmatprep.subr.bf16.mxu0 0
    %1043 = vmatpush1.bf16.msra.mxu0 0
    %1044 = vmatprep.mubr.bf16.mxu0 0
    %1045 = vmatmul.mubr.bf16.gmra.mrb[0].mxu0 %v969
    %v1046 = vpop.f32.mrb[0].mxu0
    %v1047 = vadd.f32 %v739, %v1046
    %v1048 = vpop.f32.mrb[0].mxu0
    %v1049 = vadd.f32 %v743, %v1048
    %v1050 = vpop.f32.mrb[0].mxu0
    %v1051 = vpop.f32.mrb[0].mxu0
    %1052 = vdwg.mxu0
    %1053 = vmatprep.subr.bf16.mxu0 %v909
    %1054 = vmatpush1.bf16.msra.mxu0 %v908
    %1055 = vmatprep.subr.bf16.mxu0 %v925
    %1056 = vmatpush1.bf16.msra.mxu0 %v924
    %1057 = vmatprep.subr.bf16.mxu0 0
    %1058 = vmatpush1.bf16.msra.mxu0 0
    %1059 = vmatprep.subr.bf16.mxu0 0
    %1060 = vmatpush1.bf16.msra.mxu0 0
    %1061 = vmatprep.subr.bf16.mxu0 0
    %1062 = vmatpush1.bf16.msra.mxu0 0
    %1063 = vmatprep.subr.bf16.mxu0 0
    %1064 = vmatpush1.bf16.msra.mxu0 0
    %1065 = vmatprep.subr.bf16.mxu0 0
    %1066 = vmatpush1.bf16.msra.mxu0 0
    %1067 = vmatprep.subr.bf16.mxu0 0
    %1068 = vmatpush1.bf16.msra.mxu0 0
    %1069 = vmatprep.subr.bf16.mxu0 0
    %1070 = vmatpush1.bf16.msra.mxu0 0
    %1071 = vmatprep.subr.bf16.mxu0 0
    %1072 = vmatpush1.bf16.msra.mxu0 0
    %1073 = vmatprep.subr.bf16.mxu0 0
    %1074 = vmatpush1.bf16.msra.mxu0 0
    %1075 = vmatprep.subr.bf16.mxu0 0
    %1076 = vmatpush1.bf16.msra.mxu0 0
    %1077 = vmatprep.subr.bf16.mxu0 0
    %1078 = vmatpush1.bf16.msra.mxu0 0
    %1079 = vmatprep.subr.bf16.mxu0 0
    %1080 = vmatpush1.bf16.msra.mxu0 0
    %1081 = vmatprep.subr.bf16.mxu0 0
    %1082 = vmatpush1.bf16.msra.mxu0 0
    %1083 = vmatprep.subr.bf16.mxu0 0
    %1084 = vmatpush1.bf16.msra.mxu0 0
    %1085 = vmatprep.mubr.bf16.mxu0 0
    %1086 = vmatmul.mubr.bf16.gmra.mrb[0].mxu0 %v969
    %v1087 = vpop.f32.mrb[0].mxu0
    %v1088 = vadd.f32 %v747, %v1087
    %v1089 = vpop.f32.mrb[0].mxu0
    %v1090 = vadd.f32 %v751, %v1089
    %v1091 = vpop.f32.mrb[0].mxu0
    %v1092 = vpop.f32.mrb[0].mxu0
    %1093 = vdwg.mxu0
    %1094 = vmatprep.subr.bf16.mxu0 %v911
    %1095 = vmatpush1.bf16.msra.mxu0 %v910
    %1096 = vmatprep.subr.bf16.mxu0 %v927
    %1097 = vmatpush1.bf16.msra.mxu0 %v926
    %1098 = vmatprep.subr.bf16.mxu0 0
    %1099 = vmatpush1.bf16.msra.mxu0 0
    %1100 = vmatprep.subr.bf16.mxu0 0
    %1101 = vmatpush1.bf16.msra.mxu0 0
    %1102 = vmatprep.subr.bf16.mxu0 0
    %1103 = vmatpush1.bf16.msra.mxu0 0
    %1104 = vmatprep.subr.bf16.mxu0 0
    %1105 = vmatpush1.bf16.msra.mxu0 0
    %1106 = vmatprep.subr.bf16.mxu0 0
    %1107 = vmatpush1.bf16.msra.mxu0 0
    %1108 = vmatprep.subr.bf16.mxu0 0
    %1109 = vmatpush1.bf16.msra.mxu0 0
    %1110 = vmatprep.subr.bf16.mxu0 0
    %1111 = vmatpush1.bf16.msra.mxu0 0
    %1112 = vmatprep.subr.bf16.mxu0 0
    %1113 = vmatpush1.bf16.msra.mxu0 0
    %1114 = vmatprep.subr.bf16.mxu0 0
    %1115 = vmatpush1.bf16.msra.mxu0 0
    %1116 = vmatprep.subr.bf16.mxu0 0
    %1117 = vmatpush1.bf16.msra.mxu0 0
    %1118 = vmatprep.subr.bf16.mxu0 0
    %1119 = vmatpush1.bf16.msra.mxu0 0
    %1120 = vmatprep.subr.bf16.mxu0 0
    %1121 = vmatpush1.bf16.msra.mxu0 0
    %1122 = vmatprep.subr.bf16.mxu0 0
    %1123 = vmatpush1.bf16.msra.mxu0 0
    %1124 = vmatprep.subr.bf16.mxu0 0
    %1125 = vmatpush1.bf16.msra.mxu0 0
    %1126 = vmatprep.mubr.bf16.mxu0 0
    %1127 = vmatmul.mubr.bf16.gmra.mrb[0].mxu0 %v969
    %v1128 = vpop.f32.mrb[0].mxu0
    %v1129 = vadd.f32 %v755, %v1128
    %v1130 = vpop.f32.mrb[0].mxu0
    %v1131 = vadd.f32 %v759, %v1130
    %v1132 = vpop.f32.mrb[0].mxu0
    %v1133 = vpop.f32.mrb[0].mxu0
    %1134 = vdwg.mxu0
    %1135 = vmatprep.subr.bf16.mxu0 %v913
    %1136 = vmatpush1.bf16.msra.mxu0 %v912
    %1137 = vmatprep.subr.bf16.mxu0 %v929
    %1138 = vmatpush1.bf16.msra.mxu0 %v928
    %1139 = vmatprep.subr.bf16.mxu0 0
    %1140 = vmatpush1.bf16.msra.mxu0 0
    %1141 = vmatprep.subr.bf16.mxu0 0
    %1142 = vmatpush1.bf16.msra.mxu0 0
    %1143 = vmatprep.subr.bf16.mxu0 0
    %1144 = vmatpush1.bf16.msra.mxu0 0
    %1145 = vmatprep.subr.bf16.mxu0 0
    %1146 = vmatpush1.bf16.msra.mxu0 0
    %1147 = vmatprep.subr.bf16.mxu0 0
    %1148 = vmatpush1.bf16.msra.mxu0 0
    %1149 = vmatprep.subr.bf16.mxu0 0
    %1150 = vmatpush1.bf16.msra.mxu0 0
    %1151 = vmatprep.subr.bf16.mxu0 0
    %1152 = vmatpush1.bf16.msra.mxu0 0
    %1153 = vmatprep.subr.bf16.mxu0 0
    %1154 = vmatpush1.bf16.msra.mxu0 0
    %1155 = vmatprep.subr.bf16.mxu0 0
    %1156 = vmatpush1.bf16.msra.mxu0 0
    %1157 = vmatprep.subr.bf16.mxu0 0
    %1158 = vmatpush1.bf16.msra.mxu0 0
    %1159 = vmatprep.subr.bf16.mxu0 0
    %1160 = vmatpush1.bf16.msra.mxu0 0
    %1161 = vmatprep.subr.bf16.mxu0 0
    %1162 = vmatpush1.bf16.msra.mxu0 0
    %1163 = vmatprep.subr.bf16.mxu0 0
    %1164 = vmatpush1.bf16.msra.mxu0 0
    %1165 = vmatprep.subr.bf16.mxu0 0
    %1166 = vmatpush1.bf16.msra.mxu0 0
    %1167 = vmatprep.mubr.bf16.mxu0 0
    %1168 = vmatmul.mubr.bf16.gmra.mrb[0].mxu0 %v969
    %v1169 = vpop.f32.mrb[0].mxu0
    %v1170 = vadd.f32 %v763, %v1169
    %v1171 = vpop.f32.mrb[0].mxu0
    %v1172 = vadd.f32 %v767, %v1171
    %v1173 = vpop.f32.mrb[0].mxu0
    %v1174 = vpop.f32.mrb[0].mxu0
    %1175 = vdwg.mxu0
    %1176 = vmatprep.subr.bf16.mxu0 %v915
    %1177 = vmatpush1.bf16.msra.mxu0 %v914
    %1178 = vmatprep.subr.bf16.mxu0 %v931
    %1179 = vmatpush1.bf16.msra.mxu0 %v930
    %1180 = vmatprep.subr.bf16.mxu0 0
    %1181 = vmatpush1.bf16.msra.mxu0 0
    %1182 = vmatprep.subr.bf16.mxu0 0
    %1183 = vmatpush1.bf16.msra.mxu0 0
    %1184 = vmatprep.subr.bf16.mxu0 0
    %1185 = vmatpush1.bf16.msra.mxu0 0
    %1186 = vmatprep.subr.bf16.mxu0 0
    %1187 = vmatpush1.bf16.msra.mxu0 0
    %1188 = vmatprep.subr.bf16.mxu0 0
    %1189 = vmatpush1.bf16.msra.mxu0 0
    %1190 = vmatprep.subr.bf16.mxu0 0
    %1191 = vmatpush1.bf16.msra.mxu0 0
    %1192 = vmatprep.subr.bf16.mxu0 0
    %1193 = vmatpush1.bf16.msra.mxu0 0
    %1194 = vmatprep.subr.bf16.mxu0 0
    %1195 = vmatpush1.bf16.msra.mxu0 0
    %1196 = vmatprep.subr.bf16.mxu0 0
    %1197 = vmatpush1.bf16.msra.mxu0 0
    %1198 = vmatprep.subr.bf16.mxu0 0
    %1199 = vmatpush1.bf16.msra.mxu0 0
    %1200 = vmatprep.subr.bf16.mxu0 0
    %1201 = vmatpush1.bf16.msra.mxu0 0
    %1202 = vmatprep.subr.bf16.mxu0 0
    %1203 = vmatpush1.bf16.msra.mxu0 0
    %1204 = vmatprep.subr.bf16.mxu0 0
    %1205 = vmatpush1.bf16.msra.mxu0 0
    %1206 = vmatprep.subr.bf16.mxu0 0
    %1207 = vmatpush1.bf16.msra.mxu0 0
    %1208 = vmatprep.mubr.bf16.mxu0 0
    %1209 = vmatmul.mubr.bf16.gmra.mrb[0].mxu0 %v969
    %v1210 = vpop.f32.mrb[0].mxu0
    %v1211 = vadd.f32 %v771, %v1210
    %v1212 = vpop.f32.mrb[0].mxu0
    %v1213 = vadd.f32 %v775, %v1212
    %v1214 = vpop.f32.mrb[0].mxu0
    %v1215 = vpop.f32.mrb[0].mxu0
    %1216 = vdwg.mxu0
    %1217 = vmatprep.subr.bf16.mxu0 %v917
    %1218 = vmatpush1.bf16.msra.mxu0 %v916
    %1219 = vmatprep.subr.bf16.mxu0 %v933
    %1220 = vmatpush1.bf16.msra.mxu0 %v932
    %1221 = vmatprep.subr.bf16.mxu0 0
    %1222 = vmatpush1.bf16.msra.mxu0 0
    %1223 = vmatprep.subr.bf16.mxu0 0
    %1224 = vmatpush1.bf16.msra.mxu0 0
    %1225 = vmatprep.subr.bf16.mxu0 0
    %1226 = vmatpush1.bf16.msra.mxu0 0
    %1227 = vmatprep.subr.bf16.mxu0 0
    %1228 = vmatpush1.bf16.msra.mxu0 0
    %1229 = vmatprep.subr.bf16.mxu0 0
    %1230 = vmatpush1.bf16.msra.mxu0 0
    %1231 = vmatprep.subr.bf16.mxu0 0
    %1232 = vmatpush1.bf16.msra.mxu0 0
    %1233 = vmatprep.subr.bf16.mxu0 0
    %1234 = vmatpush1.bf16.msra.mxu0 0
    %1235 = vmatprep.subr.bf16.mxu0 0
    %1236 = vmatpush1.bf16.msra.mxu0 0
    %1237 = vmatprep.subr.bf16.mxu0 0
    %1238 = vmatpush1.bf16.msra.mxu0 0
    %1239 = vmatprep.subr.bf16.mxu0 0
    %1240 = vmatpush1.bf16.msra.mxu0 0
    %1241 = vmatprep.subr.bf16.mxu0 0
    %1242 = vmatpush1.bf16.msra.mxu0 0
    %1243 = vmatprep.subr.bf16.mxu0 0
    %1244 = vmatpush1.bf16.msra.mxu0 0
    %1245 = vmatprep.subr.bf16.mxu0 0
    %1246 = vmatpush1.bf16.msra.mxu0 0
    %1247 = vmatprep.subr.bf16.mxu0 0
    %1248 = vmatpush1.bf16.msra.mxu0 0
    %1249 = vmatprep.mubr.bf16.mxu0 0
    %1250 = vmatmul.mubr.bf16.gmra.mrb[0].mxu0 %v969
    %v1251 = vpop.f32.mrb[0].mxu0
    %v1252 = vadd.f32 %v779, %v1251
    %v1253 = vpop.f32.mrb[0].mxu0
    %v1254 = vadd.f32 %v783, %v1253
    %v1255 = vpop.f32.mrb[0].mxu0
    %v1256 = vpop.f32.mrb[0].mxu0
    %1257 = vdwg.mxu0
    %1258 = vmatprep.subr.bf16.mxu0 %v919
    %1259 = vmatpush1.bf16.msra.mxu0 %v918
    %1260 = vmatprep.subr.bf16.mxu0 %v935
    %1261 = vmatpush1.bf16.msra.mxu0 %v934
    %1262 = vmatprep.subr.bf16.mxu0 0
    %1263 = vmatpush1.bf16.msra.mxu0 0
    %1264 = vmatprep.subr.bf16.mxu0 0
    %1265 = vmatpush1.bf16.msra.mxu0 0
    %1266 = vmatprep.subr.bf16.mxu0 0
    %1267 = vmatpush1.bf16.msra.mxu0 0
    %1268 = vmatprep.subr.bf16.mxu0 0
    %1269 = vmatpush1.bf16.msra.mxu0 0
    %1270 = vmatprep.subr.bf16.mxu0 0
    %1271 = vmatpush1.bf16.msra.mxu0 0
    %1272 = vmatprep.subr.bf16.mxu0 0
    %1273 = vmatpush1.bf16.msra.mxu0 0
    %1274 = vmatprep.subr.bf16.mxu0 0
    %1275 = vmatpush1.bf16.msra.mxu0 0
    %1276 = vmatprep.subr.bf16.mxu0 0
    %1277 = vmatpush1.bf16.msra.mxu0 0
    %1278 = vmatprep.subr.bf16.mxu0 0
    %1279 = vmatpush1.bf16.msra.mxu0 0
    %1280 = vmatprep.subr.bf16.mxu0 0
    %1281 = vmatpush1.bf16.msra.mxu0 0
    %1282 = vmatprep.subr.bf16.mxu0 0
    %1283 = vmatpush1.bf16.msra.mxu0 0
    %1284 = vmatprep.subr.bf16.mxu0 0
    %1285 = vmatpush1.bf16.msra.mxu0 0
    %1286 = vmatprep.subr.bf16.mxu0 0
    %1287 = vmatpush1.bf16.msra.mxu0 0
    %1288 = vmatprep.subr.bf16.mxu0 0
    %1289 = vmatpush1.bf16.msra.mxu0 0
    %1290 = vmatprep.mubr.bf16.mxu0 0
    %1291 = vmatmul.mubr.bf16.gmra.mrb[0].mxu0 %v969
    %v1292 = vpop.f32.mrb[0].mxu0
    %v1293 = vadd.f32 %v787, %v1292
    %v1294 = vpop.f32.mrb[0].mxu0
    %v1295 = vadd.f32 %v791, %v1294
    %v1296 = vpop.f32.mrb[0].mxu0
    %v1297 = vpop.f32.mrb[0].mxu0
    %1298 = vdwg.mxu0
    %v1299 = vmax.f32 %v1006, 0.0
    %v1300 = vmax.f32 %v1008, 0.0
    %v1301 = vmax.f32 %v1047, 0.0
    %v1302 = vmax.f32 %v1049, 0.0
    %v1303 = vmax.f32 %v1088, 0.0
    %v1304 = vmax.f32 %v1090, 0.0
    %v1305 = vmax.f32 %v1129, 0.0
    %v1306 = vmax.f32 %v1131, 0.0
    %v1307 = vmax.f32 %v1170, 0.0
    %v1308 = vmax.f32 %v1172, 0.0
    %v1309 = vmax.f32 %v1211, 0.0
    %v1310 = vmax.f32 %v1213, 0.0
    %v1311 = vmax.f32 %v1252, 0.0
    %v1312 = vmax.f32 %v1254, 0.0
    %v1313 = vmax.f32 %v1293, 0.0
    %v1314 = vmax.f32 %v1295, 0.0
    %v1315 = vpack.c.bf16 %v1299, %v1299
    %v1316 = vpack.c.bf16 %v1300, %v1300
    %v1317 = vpack.c.bf16 %v1301, %v1301
    %v1318 = vpack.c.bf16 %v1302, %v1302
    %v1319 = vpack.c.bf16 %v1303, %v1303
    %v1320 = vpack.c.bf16 %v1304, %v1304
    %v1321 = vpack.c.bf16 %v1305, %v1305
    %v1322 = vpack.c.bf16 %v1306, %v1306
    %v1323 = vpack.c.bf16 %v1307, %v1307
    %v1324 = vpack.c.bf16 %v1308, %v1308
    %v1325 = vpack.c.bf16 %v1309, %v1309
    %v1326 = vpack.c.bf16 %v1310, %v1310
    %v1327 = vpack.c.bf16 %v1311, %v1311
    %v1328 = vpack.c.bf16 %v1312, %v1312
    %v1329 = vpack.c.bf16 %v1313, %v1313
    %v1330 = vpack.c.bf16 %v1314, %v1314
    %v1331 = vld [vmem:[%s16] sm:$0xf]
    %v1332 = vld [vmem:[%s16 + $0x4] sm:$0xf]
    %v1333 = vld [vmem:[%s16 + $0x8] sm:$0xf]
    %v1334 = vld [vmem:[%s16 + $0xc] sm:$0xf]
    %v1335 = vld [vmem:[%s16 + $0x10] sm:$0xf]
    %v1336 = vld [vmem:[%s16 + $0x14] sm:$0xf]
    %v1337 = vld [vmem:[%s16 + $0x18] sm:$0xf]
    %v1338 = vld [vmem:[%s16 + $0x1c] sm:$0xf]
    %v1339 = vld [vmem:[%s16 + $0x20] sm:$0xf]
    %v1340 = vld [vmem:[%s16 + $0x24] sm:$0xf]
    %v1341 = vld [vmem:[%s16 + $0x28] sm:$0xf]
    %v1342 = vld [vmem:[%s16 + $0x2c] sm:$0xf]
    %v1343 = vld [vmem:[%s16 + $0x30] sm:$0xf]
    %v1344 = vld [vmem:[%s16 + $0x34] sm:$0xf]
    %v1345 = vld [vmem:[%s16 + $0x38] sm:$0xf]
    %v1346 = vld [vmem:[%s16 + $0x3c] sm:$0xf]
    %v1347 = vld [vmem:[%s16 + $0x40] sm:$0xf]
    %v1348 = vld [vmem:[%s16 + $0x44] sm:$0xf]
    %v1349 = vld [vmem:[%s16 + $0x48] sm:$0xf]
    %v1350 = vld [vmem:[%s16 + $0x4c] sm:$0xf]
    %v1351 = vld [vmem:[%s16 + $0x50] sm:$0xf]
    %v1352 = vld [vmem:[%s16 + $0x54] sm:$0xf]
    %v1353 = vld [vmem:[%s16 + $0x58] sm:$0xf]
    %v1354 = vld [vmem:[%s16 + $0x5c] sm:$0xf]
    %v1355 = vld [vmem:[%s16 + $0x60] sm:$0xf]
    %v1356 = vld [vmem:[%s16 + $0x64] sm:$0xf]
    %v1357 = vld [vmem:[%s16 + $0x68] sm:$0xf]
    %v1358 = vld [vmem:[%s16 + $0x6c] sm:$0xf]
    %v1359 = vld [vmem:[%s16 + $0x70] sm:$0xf]
    %v1360 = vld [vmem:[%s16 + $0x74] sm:$0xf]
    %v1361 = vld [vmem:[%s16 + $0x78] sm:$0xf]
    %v1362 = vld [vmem:[%s16 + $0x7c] sm:$0xf]
    %v1363 = vld [vmem:[%s16 + $0x80] sm:$0xf]
    %v1364 = vld [vmem:[%s16 + $0x84] sm:$0xf]
    %v1365 = vld [vmem:[%s16 + $0x88] sm:$0xf]
    %v1366 = vld [vmem:[%s16 + $0x8c] sm:$0xf]
    %v1367 = vld [vmem:[%s16 + $0x90] sm:$0xf]
    %v1368 = vld [vmem:[%s16 + $0x94] sm:$0xf]
    %v1369 = vld [vmem:[%s16 + $0x98] sm:$0xf]
    %v1370 = vld [vmem:[%s16 + $0x9c] sm:$0xf]
    %v1371 = vld [vmem:[%s16 + $0xa0] sm:$0xf]
    %v1372 = vld [vmem:[%s16 + $0xa4] sm:$0xf]
    %v1373 = vld [vmem:[%s16 + $0xa8] sm:$0xf]
    %v1374 = vld [vmem:[%s16 + $0xac] sm:$0xf]
    %v1375 = vld [vmem:[%s16 + $0xb0] sm:$0xf]
    %v1376 = vld [vmem:[%s16 + $0xb4] sm:$0xf]
    %v1377 = vld [vmem:[%s16 + $0xb8] sm:$0xf]
    %v1378 = vld [vmem:[%s16 + $0xbc] sm:$0xf]
    %v1379 = vld [vmem:[%s16 + $0xc0] sm:$0xf]
    %v1380 = vld [vmem:[%s16 + $0xc4] sm:$0xf]
    %v1381 = vld [vmem:[%s16 + $0xc8] sm:$0xf]
    %v1382 = vld [vmem:[%s16 + $0xcc] sm:$0xf]
    %v1383 = vld [vmem:[%s16 + $0xd0] sm:$0xf]
    %v1384 = vld [vmem:[%s16 + $0xd4] sm:$0xf]
    %v1385 = vld [vmem:[%s16 + $0xd8] sm:$0xf]
    %v1386 = vld [vmem:[%s16 + $0xdc] sm:$0xf]
    %v1387 = vld [vmem:[%s16 + $0xe0] sm:$0xf]
    %v1388 = vld [vmem:[%s16 + $0xe4] sm:$0xf]
    %v1389 = vld [vmem:[%s16 + $0xe8] sm:$0xf]
    %v1390 = vld [vmem:[%s16 + $0xec] sm:$0xf]
    %v1391 = vld [vmem:[%s16 + $0xf0] sm:$0xf]
    %v1392 = vld [vmem:[%s16 + $0xf4] sm:$0xf]
    %v1393 = vld [vmem:[%s16 + $0xf8] sm:$0xf]
    %v1394 = vld [vmem:[%s16 + $0xfc] sm:$0xf]
    %v1395 = vld [vmem:[%s16 + $0x100] sm:$0xf]
    %v1396 = vld [vmem:[%s16 + $0x104] sm:$0xf]
    %v1397 = vld [vmem:[%s16 + $0x108] sm:$0xf]
    %v1398 = vld [vmem:[%s16 + $0x10c] sm:$0xf]
    %v1399 = vld [vmem:[%s16 + $0x110] sm:$0xf]
    %v1400 = vld [vmem:[%s16 + $0x114] sm:$0xf]
    %v1401 = vld [vmem:[%s16 + $0x118] sm:$0xf]
    %v1402 = vld [vmem:[%s16 + $0x11c] sm:$0xf]
    %v1403 = vld [vmem:[%s16 + $0x120] sm:$0xf]
    %v1404 = vld [vmem:[%s16 + $0x124] sm:$0xf]
    %v1405 = vld [vmem:[%s16 + $0x128] sm:$0xf]
    %v1406 = vld [vmem:[%s16 + $0x12c] sm:$0xf]
    %v1407 = vld [vmem:[%s16 + $0x130] sm:$0xf]
    %v1408 = vld [vmem:[%s16 + $0x134] sm:$0xf]
    %v1409 = vld [vmem:[%s16 + $0x138] sm:$0xf]
    %v1410 = vld [vmem:[%s16 + $0x13c] sm:$0xf]
    %v1411 = vld [vmem:[%s16 + $0x140] sm:$0xf]
    %v1412 = vld [vmem:[%s16 + $0x144] sm:$0xf]
    %v1413 = vld [vmem:[%s16 + $0x148] sm:$0xf]
    %v1414 = vld [vmem:[%s16 + $0x14c] sm:$0xf]
    %v1415 = vld [vmem:[%s16 + $0x150] sm:$0xf]
    %v1416 = vld [vmem:[%s16 + $0x154] sm:$0xf]
    %v1417 = vld [vmem:[%s16 + $0x158] sm:$0xf]
    %v1418 = vld [vmem:[%s16 + $0x15c] sm:$0xf]
    %v1419 = vld [vmem:[%s16 + $0x160] sm:$0xf]
    %v1420 = vld [vmem:[%s16 + $0x164] sm:$0xf]
    %v1421 = vld [vmem:[%s16 + $0x168] sm:$0xf]
    %v1422 = vld [vmem:[%s16 + $0x16c] sm:$0xf]
    %v1423 = vld [vmem:[%s16 + $0x170] sm:$0xf]
    %v1424 = vld [vmem:[%s16 + $0x174] sm:$0xf]
    %v1425 = vld [vmem:[%s16 + $0x178] sm:$0xf]
    %v1426 = vld [vmem:[%s16 + $0x17c] sm:$0xf]
    %v1427 = vld [vmem:[%s16 + $0x180] sm:$0xf]
    %v1428 = vld [vmem:[%s16 + $0x184] sm:$0xf]
    %v1429 = vld [vmem:[%s16 + $0x188] sm:$0xf]
    %v1430 = vld [vmem:[%s16 + $0x18c] sm:$0xf]
    %v1431 = vld [vmem:[%s16 + $0x190] sm:$0xf]
    %v1432 = vld [vmem:[%s16 + $0x194] sm:$0xf]
    %v1433 = vld [vmem:[%s16 + $0x198] sm:$0xf]
    %v1434 = vld [vmem:[%s16 + $0x19c] sm:$0xf]
    %v1435 = vld [vmem:[%s16 + $0x1a0] sm:$0xf]
    %v1436 = vld [vmem:[%s16 + $0x1a4] sm:$0xf]
    %v1437 = vld [vmem:[%s16 + $0x1a8] sm:$0xf]
    %v1438 = vld [vmem:[%s16 + $0x1ac] sm:$0xf]
    %v1439 = vld [vmem:[%s16 + $0x1b0] sm:$0xf]
    %v1440 = vld [vmem:[%s16 + $0x1b4] sm:$0xf]
    %v1441 = vld [vmem:[%s16 + $0x1b8] sm:$0xf]
    %v1442 = vld [vmem:[%s16 + $0x1bc] sm:$0xf]
    %v1443 = vld [vmem:[%s16 + $0x1c0] sm:$0xf]
    %v1444 = vld [vmem:[%s16 + $0x1c4] sm:$0xf]
    %v1445 = vld [vmem:[%s16 + $0x1c8] sm:$0xf]
    %v1446 = vld [vmem:[%s16 + $0x1cc] sm:$0xf]
    %v1447 = vld [vmem:[%s16 + $0x1d0] sm:$0xf]
    %v1448 = vld [vmem:[%s16 + $0x1d4] sm:$0xf]
    %v1449 = vld [vmem:[%s16 + $0x1d8] sm:$0xf]
    %v1450 = vld [vmem:[%s16 + $0x1dc] sm:$0xf]
    %v1451 = vld [vmem:[%s16 + $0x1e0] sm:$0xf]
    %v1452 = vld [vmem:[%s16 + $0x1e4] sm:$0xf]
    %v1453 = vld [vmem:[%s16 + $0x1e8] sm:$0xf]
    %v1454 = vld [vmem:[%s16 + $0x1ec] sm:$0xf]
    %v1455 = vld [vmem:[%s16 + $0x1f0] sm:$0xf]
    %v1456 = vld [vmem:[%s16 + $0x1f4] sm:$0xf]
    %v1457 = vld [vmem:[%s16 + $0x1f8] sm:$0xf]
    %v1458 = vld [vmem:[%s16 + $0x1fc] sm:$0xf]
    %v1459 = vld [vmem:[%s16 + $0x200] sm:$0xf]
    %v1460 = vld [vmem:[%s16 + $0x204] sm:$0xf]
    %v1461 = vld [vmem:[%s16 + $0x208] sm:$0xf]
    %v1462 = vld [vmem:[%s16 + $0x20c] sm:$0xf]
    %v1463 = vld [vmem:[%s16 + $0x210] sm:$0xf]
    %v1464 = vld [vmem:[%s16 + $0x214] sm:$0xf]
    %v1465 = vld [vmem:[%s16 + $0x218] sm:$0xf]
    %v1466 = vld [vmem:[%s16 + $0x21c] sm:$0xf]
    %v1467 = vld [vmem:[%s16 + $0x220] sm:$0xf]
    %v1468 = vld [vmem:[%s16 + $0x224] sm:$0xf]
    %v1469 = vld [vmem:[%s16 + $0x228] sm:$0xf]
    %v1470 = vld [vmem:[%s16 + $0x22c] sm:$0xf]
    %v1471 = vld [vmem:[%s16 + $0x230] sm:$0xf]
    %v1472 = vld [vmem:[%s16 + $0x234] sm:$0xf]
    %v1473 = vld [vmem:[%s16 + $0x238] sm:$0xf]
    %v1474 = vld [vmem:[%s16 + $0x23c] sm:$0xf]
    %v1475 = vld [vmem:[%s16 + $0x240] sm:$0xf]
    %v1476 = vld [vmem:[%s16 + $0x244] sm:$0xf]
    %v1477 = vld [vmem:[%s16 + $0x248] sm:$0xf]
    %v1478 = vld [vmem:[%s16 + $0x24c] sm:$0xf]
    %v1479 = vld [vmem:[%s16 + $0x250] sm:$0xf]
    %v1480 = vld [vmem:[%s16 + $0x254] sm:$0xf]
    %v1481 = vld [vmem:[%s16 + $0x258] sm:$0xf]
    %v1482 = vld [vmem:[%s16 + $0x25c] sm:$0xf]
    %v1483 = vld [vmem:[%s16 + $0x260] sm:$0xf]
    %v1484 = vld [vmem:[%s16 + $0x264] sm:$0xf]
    %v1485 = vld [vmem:[%s16 + $0x268] sm:$0xf]
    %v1486 = vld [vmem:[%s16 + $0x26c] sm:$0xf]
    %v1487 = vld [vmem:[%s16 + $0x270] sm:$0xf]
    %v1488 = vld [vmem:[%s16 + $0x274] sm:$0xf]
    %v1489 = vld [vmem:[%s16 + $0x278] sm:$0xf]
    %v1490 = vld [vmem:[%s16 + $0x27c] sm:$0xf]
    %v1491 = vld [vmem:[%s16 + $0x280] sm:$0xf]
    %v1492 = vld [vmem:[%s16 + $0x284] sm:$0xf]
    %v1493 = vld [vmem:[%s16 + $0x288] sm:$0xf]
    %v1494 = vld [vmem:[%s16 + $0x28c] sm:$0xf]
    %v1495 = vld [vmem:[%s16 + $0x290] sm:$0xf]
    %v1496 = vld [vmem:[%s16 + $0x294] sm:$0xf]
    %v1497 = vld [vmem:[%s16 + $0x298] sm:$0xf]
    %v1498 = vld [vmem:[%s16 + $0x29c] sm:$0xf]
    %v1499 = vld [vmem:[%s16 + $0x2a0] sm:$0xf]
    %v1500 = vld [vmem:[%s16 + $0x2a4] sm:$0xf]
    %v1501 = vld [vmem:[%s16 + $0x2a8] sm:$0xf]
    %v1502 = vld [vmem:[%s16 + $0x2ac] sm:$0xf]
    %v1503 = vld [vmem:[%s16 + $0x2b0] sm:$0xf]
    %v1504 = vld [vmem:[%s16 + $0x2b4] sm:$0xf]
    %v1505 = vld [vmem:[%s16 + $0x2b8] sm:$0xf]
    %v1506 = vld [vmem:[%s16 + $0x2bc] sm:$0xf]
    %v1507 = vld [vmem:[%s16 + $0x2c0] sm:$0xf]
    %v1508 = vld [vmem:[%s16 + $0x2c4] sm:$0xf]
    %v1509 = vld [vmem:[%s16 + $0x2c8] sm:$0xf]
    %v1510 = vld [vmem:[%s16 + $0x2cc] sm:$0xf]
    %v1511 = vld [vmem:[%s16 + $0x2d0] sm:$0xf]
    %v1512 = vld [vmem:[%s16 + $0x2d4] sm:$0xf]
    %v1513 = vld [vmem:[%s16 + $0x2d8] sm:$0xf]
    %v1514 = vld [vmem:[%s16 + $0x2dc] sm:$0xf]
    %v1515 = vld [vmem:[%s16 + $0x2e0] sm:$0xf]
    %v1516 = vld [vmem:[%s16 + $0x2e4] sm:$0xf]
    %v1517 = vld [vmem:[%s16 + $0x2e8] sm:$0xf]
    %v1518 = vld [vmem:[%s16 + $0x2ec] sm:$0xf]
    %v1519 = vld [vmem:[%s16 + $0x2f0] sm:$0xf]
    %v1520 = vld [vmem:[%s16 + $0x2f4] sm:$0xf]
    %v1521 = vld [vmem:[%s16 + $0x2f8] sm:$0xf]
    %v1522 = vld [vmem:[%s16 + $0x2fc] sm:$0xf]
    %v1523 = vld [vmem:[%s16 + $0x300] sm:$0xf]
    %v1524 = vld [vmem:[%s16 + $0x304] sm:$0xf]
    %v1525 = vld [vmem:[%s16 + $0x308] sm:$0xf]
    %v1526 = vld [vmem:[%s16 + $0x30c] sm:$0xf]
    %v1527 = vld [vmem:[%s16 + $0x310] sm:$0xf]
    %v1528 = vld [vmem:[%s16 + $0x314] sm:$0xf]
    %v1529 = vld [vmem:[%s16 + $0x318] sm:$0xf]
    %v1530 = vld [vmem:[%s16 + $0x31c] sm:$0xf]
    %v1531 = vld [vmem:[%s16 + $0x320] sm:$0xf]
    %v1532 = vld [vmem:[%s16 + $0x324] sm:$0xf]
    %v1533 = vld [vmem:[%s16 + $0x328] sm:$0xf]
    %v1534 = vld [vmem:[%s16 + $0x32c] sm:$0xf]
    %v1535 = vld [vmem:[%s16 + $0x330] sm:$0xf]
    %v1536 = vld [vmem:[%s16 + $0x334] sm:$0xf]
    %v1537 = vld [vmem:[%s16 + $0x338] sm:$0xf]
    %v1538 = vld [vmem:[%s16 + $0x33c] sm:$0xf]
    %v1539 = vld [vmem:[%s16 + $0x340] sm:$0xf]
    %v1540 = vld [vmem:[%s16 + $0x344] sm:$0xf]
    %v1541 = vld [vmem:[%s16 + $0x348] sm:$0xf]
    %v1542 = vld [vmem:[%s16 + $0x34c] sm:$0xf]
    %v1543 = vld [vmem:[%s16 + $0x350] sm:$0xf]
    %v1544 = vld [vmem:[%s16 + $0x354] sm:$0xf]
    %v1545 = vld [vmem:[%s16 + $0x358] sm:$0xf]
    %v1546 = vld [vmem:[%s16 + $0x35c] sm:$0xf]
    %v1547 = vld [vmem:[%s16 + $0x360] sm:$0xf]
    %v1548 = vld [vmem:[%s16 + $0x364] sm:$0xf]
    %v1549 = vld [vmem:[%s16 + $0x368] sm:$0xf]
    %v1550 = vld [vmem:[%s16 + $0x36c] sm:$0xf]
    %v1551 = vld [vmem:[%s16 + $0x370] sm:$0xf]
    %v1552 = vld [vmem:[%s16 + $0x374] sm:$0xf]
    %v1553 = vld [vmem:[%s16 + $0x378] sm:$0xf]
    %v1554 = vld [vmem:[%s16 + $0x37c] sm:$0xf]
    %v1555 = vld [vmem:[%s16 + $0x380] sm:$0xf]
    %v1556 = vld [vmem:[%s16 + $0x384] sm:$0xf]
    %v1557 = vld [vmem:[%s16 + $0x388] sm:$0xf]
    %v1558 = vld [vmem:[%s16 + $0x38c] sm:$0xf]
    %v1559 = vld [vmem:[%s16 + $0x390] sm:$0xf]
    %v1560 = vld [vmem:[%s16 + $0x394] sm:$0xf]
    %v1561 = vld [vmem:[%s16 + $0x398] sm:$0xf]
    %v1562 = vld [vmem:[%s16 + $0x39c] sm:$0xf]
    %v1563 = vld [vmem:[%s16 + $0x3a0] sm:$0xf]
    %v1564 = vld [vmem:[%s16 + $0x3a4] sm:$0xf]
    %v1565 = vld [vmem:[%s16 + $0x3a8] sm:$0xf]
    %v1566 = vld [vmem:[%s16 + $0x3ac] sm:$0xf]
    %v1567 = vld [vmem:[%s16 + $0x3b0] sm:$0xf]
    %v1568 = vld [vmem:[%s16 + $0x3b4] sm:$0xf]
    %v1569 = vld [vmem:[%s16 + $0x3b8] sm:$0xf]
    %v1570 = vld [vmem:[%s16 + $0x3bc] sm:$0xf]
    %v1571 = vld [vmem:[%s16 + $0x3c0] sm:$0xf]
    %v1572 = vld [vmem:[%s16 + $0x3c4] sm:$0xf]
    %v1573 = vld [vmem:[%s16 + $0x3c8] sm:$0xf]
    %v1574 = vld [vmem:[%s16 + $0x3cc] sm:$0xf]
    %v1575 = vld [vmem:[%s16 + $0x3d0] sm:$0xf]
    %v1576 = vld [vmem:[%s16 + $0x3d4] sm:$0xf]
    %v1577 = vld [vmem:[%s16 + $0x3d8] sm:$0xf]
    %v1578 = vld [vmem:[%s16 + $0x3dc] sm:$0xf]
    %v1579 = vld [vmem:[%s16 + $0x3e0] sm:$0xf]
    %v1580 = vld [vmem:[%s16 + $0x3e4] sm:$0xf]
    %v1581 = vld [vmem:[%s16 + $0x3e8] sm:$0xf]
    %v1582 = vld [vmem:[%s16 + $0x3ec] sm:$0xf]
    %v1583 = vld [vmem:[%s16 + $0x3f0] sm:$0xf]
    %v1584 = vld [vmem:[%s16 + $0x3f4] sm:$0xf]
    %v1585 = vld [vmem:[%s16 + $0x3f8] sm:$0xf]
    %v1586 = vld [vmem:[%s16 + $0x3fc] sm:$0xf]
    %v1587 = vld [vmem:[%s17] sm:$0x1]
    %v1589 = vlaneseq
    %v1590 = vshrl.u32 %v1589, 7
    %v1591 = vsub.s32 0, %v1590
    %v1592 = vrot.slane %v1587, %v1591
    %v1850 = vunpack.c.l.b16 %v1331
    %v1851 = vunpack.c.l.b16 %v1332
    %v1852 = vunpack.c.l.b16 %v1333
    %v1853 = vunpack.c.l.b16 %v1334
    %v1854 = vunpack.c.l.b16 %v1335
    %v1855 = vunpack.c.l.b16 %v1336
    %v1856 = vunpack.c.l.b16 %v1337
    %v1857 = vunpack.c.l.b16 %v1338
    %v1858 = vunpack.c.l.b16 %v1339
    %v1859 = vunpack.c.l.b16 %v1340
    %v1860 = vunpack.c.l.b16 %v1341
    %v1861 = vunpack.c.l.b16 %v1342
    %v1862 = vunpack.c.l.b16 %v1343
    %v1863 = vunpack.c.l.b16 %v1344
    %v1864 = vunpack.c.l.b16 %v1345
    %v1865 = vunpack.c.l.b16 %v1346
    %v1866 = vunpack.c.l.b16 %v1347
    %v1867 = vunpack.c.l.b16 %v1348
    %v1868 = vunpack.c.l.b16 %v1349
    %v1869 = vunpack.c.l.b16 %v1350
    %v1870 = vunpack.c.l.b16 %v1351
    %v1871 = vunpack.c.l.b16 %v1352
    %v1872 = vunpack.c.l.b16 %v1353
    %v1873 = vunpack.c.l.b16 %v1354
    %v1874 = vunpack.c.l.b16 %v1355
    %v1875 = vunpack.c.l.b16 %v1356
    %v1876 = vunpack.c.l.b16 %v1357
    %v1877 = vunpack.c.l.b16 %v1358
    %v1878 = vunpack.c.l.b16 %v1359
    %v1879 = vunpack.c.l.b16 %v1360
    %v1880 = vunpack.c.l.b16 %v1361
    %v1881 = vunpack.c.l.b16 %v1362
    %v1882 = vunpack.c.l.b16 %v1363
    %v1883 = vunpack.c.l.b16 %v1364
    %v1884 = vunpack.c.l.b16 %v1365
    %v1885 = vunpack.c.l.b16 %v1366
    %v1886 = vunpack.c.l.b16 %v1367
    %v1887 = vunpack.c.l.b16 %v1368
    %v1888 = vunpack.c.l.b16 %v1369
    %v1889 = vunpack.c.l.b16 %v1370
    %v1890 = vunpack.c.l.b16 %v1371
    %v1891 = vunpack.c.l.b16 %v1372
    %v1892 = vunpack.c.l.b16 %v1373
    %v1893 = vunpack.c.l.b16 %v1374
    %v1894 = vunpack.c.l.b16 %v1375
    %v1895 = vunpack.c.l.b16 %v1376
    %v1896 = vunpack.c.l.b16 %v1377
    %v1897 = vunpack.c.l.b16 %v1378
    %v1898 = vunpack.c.l.b16 %v1379
    %v1899 = vunpack.c.l.b16 %v1380
    %v1900 = vunpack.c.l.b16 %v1381
    %v1901 = vunpack.c.l.b16 %v1382
    %v1902 = vunpack.c.l.b16 %v1383
    %v1903 = vunpack.c.l.b16 %v1384
    %v1904 = vunpack.c.l.b16 %v1385
    %v1905 = vunpack.c.l.b16 %v1386
    %v1906 = vunpack.c.l.b16 %v1387
    %v1907 = vunpack.c.l.b16 %v1388
    %v1908 = vunpack.c.l.b16 %v1389
    %v1909 = vunpack.c.l.b16 %v1390
    %v1910 = vunpack.c.l.b16 %v1391
    %v1911 = vunpack.c.l.b16 %v1392
    %v1912 = vunpack.c.l.b16 %v1393
    %v1913 = vunpack.c.l.b16 %v1394
    %v1914 = vunpack.c.l.b16 %v1395
    %v1915 = vunpack.c.l.b16 %v1396
    %v1916 = vunpack.c.l.b16 %v1397
    %v1917 = vunpack.c.l.b16 %v1398
    %v1918 = vunpack.c.l.b16 %v1399
    %v1919 = vunpack.c.l.b16 %v1400
    %v1920 = vunpack.c.l.b16 %v1401
    %v1921 = vunpack.c.l.b16 %v1402
    %v1922 = vunpack.c.l.b16 %v1403
    %v1923 = vunpack.c.l.b16 %v1404
    %v1924 = vunpack.c.l.b16 %v1405
    %v1925 = vunpack.c.l.b16 %v1406
    %v1926 = vunpack.c.l.b16 %v1407
    %v1927 = vunpack.c.l.b16 %v1408
    %v1928 = vunpack.c.l.b16 %v1409
    %v1929 = vunpack.c.l.b16 %v1410
    %v1930 = vunpack.c.l.b16 %v1411
    %v1931 = vunpack.c.l.b16 %v1412
    %v1932 = vunpack.c.l.b16 %v1413
    %v1933 = vunpack.c.l.b16 %v1414
    %v1934 = vunpack.c.l.b16 %v1415
    %v1935 = vunpack.c.l.b16 %v1416
    %v1936 = vunpack.c.l.b16 %v1417
    %v1937 = vunpack.c.l.b16 %v1418
    %v1938 = vunpack.c.l.b16 %v1419
    %v1939 = vunpack.c.l.b16 %v1420
    %v1940 = vunpack.c.l.b16 %v1421
    %v1941 = vunpack.c.l.b16 %v1422
    %v1942 = vunpack.c.l.b16 %v1423
    %v1943 = vunpack.c.l.b16 %v1424
    %v1944 = vunpack.c.l.b16 %v1425
    %v1945 = vunpack.c.l.b16 %v1426
    %v1946 = vunpack.c.l.b16 %v1427
    %v1947 = vunpack.c.l.b16 %v1428
    %v1948 = vunpack.c.l.b16 %v1429
    %v1949 = vunpack.c.l.b16 %v1430
    %v1950 = vunpack.c.l.b16 %v1431
    %v1951 = vunpack.c.l.b16 %v1432
    %v1952 = vunpack.c.l.b16 %v1433
    %v1953 = vunpack.c.l.b16 %v1434
    %v1954 = vunpack.c.l.b16 %v1435
    %v1955 = vunpack.c.l.b16 %v1436
    %v1956 = vunpack.c.l.b16 %v1437
    %v1957 = vunpack.c.l.b16 %v1438
    %v1958 = vunpack.c.l.b16 %v1439
    %v1959 = vunpack.c.l.b16 %v1440
    %v1960 = vunpack.c.l.b16 %v1441
    %v1961 = vunpack.c.l.b16 %v1442
    %v1962 = vunpack.c.l.b16 %v1443
    %v1963 = vunpack.c.l.b16 %v1444
    %v1964 = vunpack.c.l.b16 %v1445
    %v1965 = vunpack.c.l.b16 %v1446
    %v1966 = vunpack.c.l.b16 %v1447
    %v1967 = vunpack.c.l.b16 %v1448
    %v1968 = vunpack.c.l.b16 %v1449
    %v1969 = vunpack.c.l.b16 %v1450
    %v1970 = vunpack.c.l.b16 %v1451
    %v1971 = vunpack.c.l.b16 %v1452
    %v1972 = vunpack.c.l.b16 %v1453
    %v1973 = vunpack.c.l.b16 %v1454
    %v1974 = vunpack.c.l.b16 %v1455
    %v1975 = vunpack.c.l.b16 %v1456
    %v1976 = vunpack.c.l.b16 %v1457
    %v1977 = vunpack.c.l.b16 %v1458
    %v1978 = vunpack.c.l.b16 %v1459
    %v1979 = vunpack.c.l.b16 %v1460
    %v1980 = vunpack.c.l.b16 %v1461
    %v1981 = vunpack.c.l.b16 %v1462
    %v1982 = vunpack.c.l.b16 %v1463
    %v1983 = vunpack.c.l.b16 %v1464
    %v1984 = vunpack.c.l.b16 %v1465
    %v1985 = vunpack.c.l.b16 %v1466
    %v1986 = vunpack.c.l.b16 %v1467
    %v1987 = vunpack.c.l.b16 %v1468
    %v1988 = vunpack.c.l.b16 %v1469
    %v1989 = vunpack.c.l.b16 %v1470
    %v1990 = vunpack.c.l.b16 %v1471
    %v1991 = vunpack.c.l.b16 %v1472
    %v1992 = vunpack.c.l.b16 %v1473
    %v1993 = vunpack.c.l.b16 %v1474
    %v1994 = vunpack.c.l.b16 %v1475
    %v1995 = vunpack.c.l.b16 %v1476
    %v1996 = vunpack.c.l.b16 %v1477
    %v1997 = vunpack.c.l.b16 %v1478
    %v1998 = vunpack.c.l.b16 %v1479
    %v1999 = vunpack.c.l.b16 %v1480
    %v2000 = vunpack.c.l.b16 %v1481
    %v2001 = vunpack.c.l.b16 %v1482
    %v2002 = vunpack.c.l.b16 %v1483
    %v2003 = vunpack.c.l.b16 %v1484
    %v2004 = vunpack.c.l.b16 %v1485
    %v2005 = vunpack.c.l.b16 %v1486
    %v2006 = vunpack.c.l.b16 %v1487
    %v2007 = vunpack.c.l.b16 %v1488
    %v2008 = vunpack.c.l.b16 %v1489
    %v2009 = vunpack.c.l.b16 %v1490
    %v2010 = vunpack.c.l.b16 %v1491
    %v2011 = vunpack.c.l.b16 %v1492
    %v2012 = vunpack.c.l.b16 %v1493
    %v2013 = vunpack.c.l.b16 %v1494
    %v2014 = vunpack.c.l.b16 %v1495
    %v2015 = vunpack.c.l.b16 %v1496
    %v2016 = vunpack.c.l.b16 %v1497
    %v2017 = vunpack.c.l.b16 %v1498
    %v2018 = vunpack.c.l.b16 %v1499
    %v2019 = vunpack.c.l.b16 %v1500
    %v2020 = vunpack.c.l.b16 %v1501
    %v2021 = vunpack.c.l.b16 %v1502
    %v2022 = vunpack.c.l.b16 %v1503
    %v2023 = vunpack.c.l.b16 %v1504
    %v2024 = vunpack.c.l.b16 %v1505
    %v2025 = vunpack.c.l.b16 %v1506
    %v2026 = vunpack.c.l.b16 %v1507
    %v2027 = vunpack.c.l.b16 %v1508
    %v2028 = vunpack.c.l.b16 %v1509
    %v2029 = vunpack.c.l.b16 %v1510
    %v2030 = vunpack.c.l.b16 %v1511
    %v2031 = vunpack.c.l.b16 %v1512
    %v2032 = vunpack.c.l.b16 %v1513
    %v2033 = vunpack.c.l.b16 %v1514
    %v2034 = vunpack.c.l.b16 %v1515
    %v2035 = vunpack.c.l.b16 %v1516
    %v2036 = vunpack.c.l.b16 %v1517
    %v2037 = vunpack.c.l.b16 %v1518
    %v2038 = vunpack.c.l.b16 %v1519
    %v2039 = vunpack.c.l.b16 %v1520
    %v2040 = vunpack.c.l.b16 %v1521
    %v2041 = vunpack.c.l.b16 %v1522
    %v2042 = vunpack.c.l.b16 %v1523
    %v2043 = vunpack.c.l.b16 %v1524
    %v2044 = vunpack.c.l.b16 %v1525
    %v2045 = vunpack.c.l.b16 %v1526
    %v2046 = vunpack.c.l.b16 %v1527
    %v2047 = vunpack.c.l.b16 %v1528
    %v2048 = vunpack.c.l.b16 %v1529
    %v2049 = vunpack.c.l.b16 %v1530
    %v2050 = vunpack.c.l.b16 %v1531
    %v2051 = vunpack.c.l.b16 %v1532
    %v2052 = vunpack.c.l.b16 %v1533
    %v2053 = vunpack.c.l.b16 %v1534
    %v2054 = vunpack.c.l.b16 %v1535
    %v2055 = vunpack.c.l.b16 %v1536
    %v2056 = vunpack.c.l.b16 %v1537
    %v2057 = vunpack.c.l.b16 %v1538
    %v2058 = vunpack.c.l.b16 %v1539
    %v2059 = vunpack.c.l.b16 %v1540
    %v2060 = vunpack.c.l.b16 %v1541
    %v2061 = vunpack.c.l.b16 %v1542
    %v2062 = vunpack.c.l.b16 %v1543
    %v2063 = vunpack.c.l.b16 %v1544
    %v2064 = vunpack.c.l.b16 %v1545
    %v2065 = vunpack.c.l.b16 %v1546
    %v2066 = vunpack.c.l.b16 %v1547
    %v2067 = vunpack.c.l.b16 %v1548
    %v2068 = vunpack.c.l.b16 %v1549
    %v2069 = vunpack.c.l.b16 %v1550
    %v2070 = vunpack.c.l.b16 %v1551
    %v2071 = vunpack.c.l.b16 %v1552
    %v2072 = vunpack.c.l.b16 %v1553
    %v2073 = vunpack.c.l.b16 %v1554
    %v2074 = vunpack.c.l.b16 %v1555
    %v2075 = vunpack.c.l.b16 %v1556
    %v2076 = vunpack.c.l.b16 %v1557
    %v2077 = vunpack.c.l.b16 %v1558
    %v2078 = vunpack.c.l.b16 %v1559
    %v2079 = vunpack.c.l.b16 %v1560
    %v2080 = vunpack.c.l.b16 %v1561
    %v2081 = vunpack.c.l.b16 %v1562
    %v2082 = vunpack.c.l.b16 %v1563
    %v2083 = vunpack.c.l.b16 %v1564
    %v2084 = vunpack.c.l.b16 %v1565
    %v2085 = vunpack.c.l.b16 %v1566
    %v2086 = vunpack.c.l.b16 %v1567
    %v2087 = vunpack.c.l.b16 %v1568
    %v2088 = vunpack.c.l.b16 %v1569
    %v2089 = vunpack.c.l.b16 %v1570
    %v2090 = vunpack.c.l.b16 %v1571
    %v2091 = vunpack.c.l.b16 %v1572
    %v2092 = vunpack.c.l.b16 %v1573
    %v2093 = vunpack.c.l.b16 %v1574
    %v2094 = vunpack.c.l.b16 %v1575
    %v2095 = vunpack.c.l.b16 %v1576
    %v2096 = vunpack.c.l.b16 %v1577
    %v2097 = vunpack.c.l.b16 %v1578
    %v2098 = vunpack.c.l.b16 %v1579
    %v2099 = vunpack.c.l.b16 %v1580
    %v2100 = vunpack.c.l.b16 %v1581
    %v2101 = vunpack.c.l.b16 %v1582
    %v2102 = vunpack.c.l.b16 %v1583
    %v2103 = vunpack.c.l.b16 %v1584
    %v2104 = vunpack.c.l.b16 %v1585
    %v2105 = vunpack.c.l.b16 %v1586
    %v2106 = vpack.c.b16 %v1851, %v1850
    %v2107 = vpack.c.b16 %v1853, %v1852
    %v2108 = vpack.c.b16 %v1855, %v1854
    %v2109 = vpack.c.b16 %v1857, %v1856
    %v2110 = vpack.c.b16 %v1859, %v1858
    %v2111 = vpack.c.b16 %v1861, %v1860
    %v2112 = vpack.c.b16 %v1863, %v1862
    %v2113 = vpack.c.b16 %v1865, %v1864
    %v2114 = vpack.c.b16 %v1867, %v1866
    %v2115 = vpack.c.b16 %v1869, %v1868
    %v2116 = vpack.c.b16 %v1871, %v1870
    %v2117 = vpack.c.b16 %v1873, %v1872
    %v2118 = vpack.c.b16 %v1875, %v1874
    %v2119 = vpack.c.b16 %v1877, %v1876
    %v2120 = vpack.c.b16 %v1879, %v1878
    %v2121 = vpack.c.b16 %v1881, %v1880
    %v2122 = vpack.c.b16 %v1883, %v1882
    %v2123 = vpack.c.b16 %v1885, %v1884
    %v2124 = vpack.c.b16 %v1887, %v1886
    %v2125 = vpack.c.b16 %v1889, %v1888
    %v2126 = vpack.c.b16 %v1891, %v1890
    %v2127 = vpack.c.b16 %v1893, %v1892
    %v2128 = vpack.c.b16 %v1895, %v1894
    %v2129 = vpack.c.b16 %v1897, %v1896
    %v2130 = vpack.c.b16 %v1899, %v1898
    %v2131 = vpack.c.b16 %v1901, %v1900
    %v2132 = vpack.c.b16 %v1903, %v1902
    %v2133 = vpack.c.b16 %v1905, %v1904
    %v2134 = vpack.c.b16 %v1907, %v1906
    %v2135 = vpack.c.b16 %v1909, %v1908
    %v2136 = vpack.c.b16 %v1911, %v1910
    %v2137 = vpack.c.b16 %v1913, %v1912
    %v2138 = vpack.c.b16 %v1915, %v1914
    %v2139 = vpack.c.b16 %v1917, %v1916
    %v2140 = vpack.c.b16 %v1919, %v1918
    %v2141 = vpack.c.b16 %v1921, %v1920
    %v2142 = vpack.c.b16 %v1923, %v1922
    %v2143 = vpack.c.b16 %v1925, %v1924
    %v2144 = vpack.c.b16 %v1927, %v1926
    %v2145 = vpack.c.b16 %v1929, %v1928
    %v2146 = vpack.c.b16 %v1931, %v1930
    %v2147 = vpack.c.b16 %v1933, %v1932
    %v2148 = vpack.c.b16 %v1935, %v1934
    %v2149 = vpack.c.b16 %v1937, %v1936
    %v2150 = vpack.c.b16 %v1939, %v1938
    %v2151 = vpack.c.b16 %v1941, %v1940
    %v2152 = vpack.c.b16 %v1943, %v1942
    %v2153 = vpack.c.b16 %v1945, %v1944
    %v2154 = vpack.c.b16 %v1947, %v1946
    %v2155 = vpack.c.b16 %v1949, %v1948
    %v2156 = vpack.c.b16 %v1951, %v1950
    %v2157 = vpack.c.b16 %v1953, %v1952
    %v2158 = vpack.c.b16 %v1955, %v1954
    %v2159 = vpack.c.b16 %v1957, %v1956
    %v2160 = vpack.c.b16 %v1959, %v1958
    %v2161 = vpack.c.b16 %v1961, %v1960
    %v2162 = vpack.c.b16 %v1963, %v1962
    %v2163 = vpack.c.b16 %v1965, %v1964
    %v2164 = vpack.c.b16 %v1967, %v1966
    %v2165 = vpack.c.b16 %v1969, %v1968
    %v2166 = vpack.c.b16 %v1971, %v1970
    %v2167 = vpack.c.b16 %v1973, %v1972
    %v2168 = vpack.c.b16 %v1975, %v1974
    %v2169 = vpack.c.b16 %v1977, %v1976
    %v2170 = vpack.c.b16 %v1979, %v1978
    %v2171 = vpack.c.b16 %v1981, %v1980
    %v2172 = vpack.c.b16 %v1983, %v1982
    %v2173 = vpack.c.b16 %v1985, %v1984
    %v2174 = vpack.c.b16 %v1987, %v1986
    %v2175 = vpack.c.b16 %v1989, %v1988
    %v2176 = vpack.c.b16 %v1991, %v1990
    %v2177 = vpack.c.b16 %v1993, %v1992
    %v2178 = vpack.c.b16 %v1995, %v1994
    %v2179 = vpack.c.b16 %v1997, %v1996
    %v2180 = vpack.c.b16 %v1999, %v1998
    %v2181 = vpack.c.b16 %v2001, %v2000
    %v2182 = vpack.c.b16 %v2003, %v2002
    %v2183 = vpack.c.b16 %v2005, %v2004
    %v2184 = vpack.c.b16 %v2007, %v2006
    %v2185 = vpack.c.b16 %v2009, %v2008
    %v2186 = vpack.c.b16 %v2011, %v2010
    %v2187 = vpack.c.b16 %v2013, %v2012
    %v2188 = vpack.c.b16 %v2015, %v2014
    %v2189 = vpack.c.b16 %v2017, %v2016
    %v2190 = vpack.c.b16 %v2019, %v2018
    %v2191 = vpack.c.b16 %v2021, %v2020
    %v2192 = vpack.c.b16 %v2023, %v2022
    %v2193 = vpack.c.b16 %v2025, %v2024
    %v2194 = vpack.c.b16 %v2027, %v2026
    %v2195 = vpack.c.b16 %v2029, %v2028
    %v2196 = vpack.c.b16 %v2031, %v2030
    %v2197 = vpack.c.b16 %v2033, %v2032
    %v2198 = vpack.c.b16 %v2035, %v2034
    %v2199 = vpack.c.b16 %v2037, %v2036
    %v2200 = vpack.c.b16 %v2039, %v2038
    %v2201 = vpack.c.b16 %v2041, %v2040
    %v2202 = vpack.c.b16 %v2043, %v2042
    %v2203 = vpack.c.b16 %v2045, %v2044
    %v2204 = vpack.c.b16 %v2047, %v2046
    %v2205 = vpack.c.b16 %v2049, %v2048
    %v2206 = vpack.c.b16 %v2051, %v2050
    %v2207 = vpack.c.b16 %v2053, %v2052
    %v2208 = vpack.c.b16 %v2055, %v2054
    %v2209 = vpack.c.b16 %v2057, %v2056
    %v2210 = vpack.c.b16 %v2059, %v2058
    %v2211 = vpack.c.b16 %v2061, %v2060
    %v2212 = vpack.c.b16 %v2063, %v2062
    %v2213 = vpack.c.b16 %v2065, %v2064
    %v2214 = vpack.c.b16 %v2067, %v2066
    %v2215 = vpack.c.b16 %v2069, %v2068
    %v2216 = vpack.c.b16 %v2071, %v2070
    %v2217 = vpack.c.b16 %v2073, %v2072
    %v2218 = vpack.c.b16 %v2075, %v2074
    %v2219 = vpack.c.b16 %v2077, %v2076
    %v2220 = vpack.c.b16 %v2079, %v2078
    %v2221 = vpack.c.b16 %v2081, %v2080
    %v2222 = vpack.c.b16 %v2083, %v2082
    %v2223 = vpack.c.b16 %v2085, %v2084
    %v2224 = vpack.c.b16 %v2087, %v2086
    %v2225 = vpack.c.b16 %v2089, %v2088
    %v2226 = vpack.c.b16 %v2091, %v2090
    %v2227 = vpack.c.b16 %v2093, %v2092
    %v2228 = vpack.c.b16 %v2095, %v2094
    %v2229 = vpack.c.b16 %v2097, %v2096
    %v2230 = vpack.c.b16 %v2099, %v2098
    %v2231 = vpack.c.b16 %v2101, %v2100
    %v2232 = vpack.c.b16 %v2103, %v2102
    %v2233 = vpack.c.b16 %v2105, %v2104
    %2362 = vmatprep.subr.bf16.mxu0 0
    %2363 = vmatpush1.bf16.msra.mxu0 %v2106
    %2364 = vmatprep.subr.bf16.mxu0 0
    %2365 = vmatpush1.bf16.msra.mxu0 %v2107
    %2366 = vmatprep.subr.bf16.mxu0 0
    %2367 = vmatpush1.bf16.msra.mxu0 %v2108
    %2368 = vmatprep.subr.bf16.mxu0 0
    %2369 = vmatpush1.bf16.msra.mxu0 %v2109
    %2370 = vmatprep.subr.bf16.mxu0 0
    %2371 = vmatpush1.bf16.msra.mxu0 %v2110
    %2372 = vmatprep.subr.bf16.mxu0 0
    %2373 = vmatpush1.bf16.msra.mxu0 %v2111
    %2374 = vmatprep.subr.bf16.mxu0 0
    %2375 = vmatpush1.bf16.msra.mxu0 %v2112
    %2376 = vmatprep.subr.bf16.mxu0 0
    %2377 = vmatpush1.bf16.msra.mxu0 %v2113
    %2378 = vmatprep.subr.bf16.mxu0 0
    %2379 = vmatpush1.bf16.msra.mxu0 %v2114
    %2380 = vmatprep.subr.bf16.mxu0 0
    %2381 = vmatpush1.bf16.msra.mxu0 %v2115
    %2382 = vmatprep.subr.bf16.mxu0 0
    %2383 = vmatpush1.bf16.msra.mxu0 %v2116
    %2384 = vmatprep.subr.bf16.mxu0 0
    %2385 = vmatpush1.bf16.msra.mxu0 %v2117
    %2386 = vmatprep.subr.bf16.mxu0 0
    %2387 = vmatpush1.bf16.msra.mxu0 %v2118
    %2388 = vmatprep.subr.bf16.mxu0 0
    %2389 = vmatpush1.bf16.msra.mxu0 %v2119
    %2390 = vmatprep.subr.bf16.mxu0 0
    %2391 = vmatpush1.bf16.msra.mxu0 %v2120
    %2392 = vmatprep.subr.bf16.mxu0 0
    %2393 = vmatpush1.bf16.msra.mxu0 %v2121
    %2394 = vmatprep.mubr.bf16.mxu0 %v1316
    %2395 = vmatmul.mubr.bf16.gmra.mrb[0].mxu0 %v1315
    %v2396 = vpop.f32.mrb[0].mxu0
    %v2397 = vadd.f32 %v1592, %v2396
    %v2398 = vpop.f32.mrb[0].mxu0
    %v2399 = vpop.f32.mrb[0].mxu0
    %v2400 = vpop.f32.mrb[0].mxu0
    %2401 = vdwg.mxu0
    %2402 = vmatprep.subr.bf16.mxu0 0
    %2403 = vmatpush1.bf16.msra.mxu0 %v2122
    %2404 = vmatprep.subr.bf16.mxu0 0
    %2405 = vmatpush1.bf16.msra.mxu0 %v2123
    %2406 = vmatprep.subr.bf16.mxu0 0
    %2407 = vmatpush1.bf16.msra.mxu0 %v2124
    %2408 = vmatprep.subr.bf16.mxu0 0
    %2409 = vmatpush1.bf16.msra.mxu0 %v2125
    %2410 = vmatprep.subr.bf16.mxu0 0
    %2411 = vmatpush1.bf16.msra.mxu0 %v2126
    %2412 = vmatprep.subr.bf16.mxu0 0
    %2413 = vmatpush1.bf16.msra.mxu0 %v2127
    %2414 = vmatprep.subr.bf16.mxu0 0
    %2415 = vmatpush1.bf16.msra.mxu0 %v2128
    %2416 = vmatprep.subr.bf16.mxu0 0
    %2417 = vmatpush1.bf16.msra.mxu0 %v2129
    %2418 = vmatprep.subr.bf16.mxu0 0
    %2419 = vmatpush1.bf16.msra.mxu0 %v2130
    %2420 = vmatprep.subr.bf16.mxu0 0
    %2421 = vmatpush1.bf16.msra.mxu0 %v2131
    %2422 = vmatprep.subr.bf16.mxu0 0
    %2423 = vmatpush1.bf16.msra.mxu0 %v2132
    %2424 = vmatprep.subr.bf16.mxu0 0
    %2425 = vmatpush1.bf16.msra.mxu0 %v2133
    %2426 = vmatprep.subr.bf16.mxu0 0
    %2427 = vmatpush1.bf16.msra.mxu0 %v2134
    %2428 = vmatprep.subr.bf16.mxu0 0
    %2429 = vmatpush1.bf16.msra.mxu0 %v2135
    %2430 = vmatprep.subr.bf16.mxu0 0
    %2431 = vmatpush1.bf16.msra.mxu0 %v2136
    %2432 = vmatprep.subr.bf16.mxu0 0
    %2433 = vmatpush1.bf16.msra.mxu0 %v2137
    %2434 = vmatprep.mubr.bf16.mxu0 %v1318
    %2435 = vmatmul.mubr.bf16.gmra.mrb[0].mxu0 %v1317
    %v2436 = vpop.f32.mrb[0].mxu0
    %v2437 = vadd.f32 %v2397, %v2436
    %v2438 = vpop.f32.mrb[0].mxu0
    %v2439 = vpop.f32.mrb[0].mxu0
    %v2440 = vpop.f32.mrb[0].mxu0
    %2441 = vdwg.mxu0
    %2442 = vmatprep.subr.bf16.mxu0 0
    %2443 = vmatpush1.bf16.msra.mxu0 %v2138
    %2444 = vmatprep.subr.bf16.mxu0 0
    %2445 = vmatpush1.bf16.msra.mxu0 %v2139
    %2446 = vmatprep.subr.bf16.mxu0 0
    %2447 = vmatpush1.bf16.msra.mxu0 %v2140
    %2448 = vmatprep.subr.bf16.mxu0 0
    %2449 = vmatpush1.bf16.msra.mxu0 %v2141
    %2450 = vmatprep.subr.bf16.mxu0 0
    %2451 = vmatpush1.bf16.msra.mxu0 %v2142
    %2452 = vmatprep.subr.bf16.mxu0 0
    %2453 = vmatpush1.bf16.msra.mxu0 %v2143
    %2454 = vmatprep.subr.bf16.mxu0 0
    %2455 = vmatpush1.bf16.msra.mxu0 %v2144
    %2456 = vmatprep.subr.bf16.mxu0 0
    %2457 = vmatpush1.bf16.msra.mxu0 %v2145
    %2458 = vmatprep.subr.bf16.mxu0 0
    %2459 = vmatpush1.bf16.msra.mxu0 %v2146
    %2460 = vmatprep.subr.bf16.mxu0 0
    %2461 = vmatpush1.bf16.msra.mxu0 %v2147
    %2462 = vmatprep.subr.bf16.mxu0 0
    %2463 = vmatpush1.bf16.msra.mxu0 %v2148
    %2464 = vmatprep.subr.bf16.mxu0 0
    %2465 = vmatpush1.bf16.msra.mxu0 %v2149
    %2466 = vmatprep.subr.bf16.mxu0 0
    %2467 = vmatpush1.bf16.msra.mxu0 %v2150
    %2468 = vmatprep.subr.bf16.mxu0 0
    %2469 = vmatpush1.bf16.msra.mxu0 %v2151
    %2470 = vmatprep.subr.bf16.mxu0 0
    %2471 = vmatpush1.bf16.msra.mxu0 %v2152
    %2472 = vmatprep.subr.bf16.mxu0 0
    %2473 = vmatpush1.bf16.msra.mxu0 %v2153
    %2474 = vmatprep.mubr.bf16.mxu0 %v1320
    %2475 = vmatmul.mubr.bf16.gmra.mrb[0].mxu0 %v1319
    %v2476 = vpop.f32.mrb[0].mxu0
    %v2477 = vadd.f32 %v2437, %v2476
    %v2478 = vpop.f32.mrb[0].mxu0
    %v2479 = vpop.f32.mrb[0].mxu0
    %v2480 = vpop.f32.mrb[0].mxu0
    %2481 = vdwg.mxu0
    %2482 = vmatprep.subr.bf16.mxu0 0
    %2483 = vmatpush1.bf16.msra.mxu0 %v2154
    %2484 = vmatprep.subr.bf16.mxu0 0
    %2485 = vmatpush1.bf16.msra.mxu0 %v2155
    %2486 = vmatprep.subr.bf16.mxu0 0
    %2487 = vmatpush1.bf16.msra.mxu0 %v2156
    %2488 = vmatprep.subr.bf16.mxu0 0
    %2489 = vmatpush1.bf16.msra.mxu0 %v2157
    %2490 = vmatprep.subr.bf16.mxu0 0
    %2491 = vmatpush1.bf16.msra.mxu0 %v2158
    %2492 = vmatprep.subr.bf16.mxu0 0
    %2493 = vmatpush1.bf16.msra.mxu0 %v2159
    %2494 = vmatprep.subr.bf16.mxu0 0
    %2495 = vmatpush1.bf16.msra.mxu0 %v2160
    %2496 = vmatprep.subr.bf16.mxu0 0
    %2497 = vmatpush1.bf16.msra.mxu0 %v2161
    %2498 = vmatprep.subr.bf16.mxu0 0
    %2499 = vmatpush1.bf16.msra.mxu0 %v2162
    %2500 = vmatprep.subr.bf16.mxu0 0
    %2501 = vmatpush1.bf16.msra.mxu0 %v2163
    %2502 = vmatprep.subr.bf16.mxu0 0
    %2503 = vmatpush1.bf16.msra.mxu0 %v2164
    %2504 = vmatprep.subr.bf16.mxu0 0
    %2505 = vmatpush1.bf16.msra.mxu0 %v2165
    %2506 = vmatprep.subr.bf16.mxu0 0
    %2507 = vmatpush1.bf16.msra.mxu0 %v2166
    %2508 = vmatprep.subr.bf16.mxu0 0
    %2509 = vmatpush1.bf16.msra.mxu0 %v2167
    %2510 = vmatprep.subr.bf16.mxu0 0
    %2511 = vmatpush1.bf16.msra.mxu0 %v2168
    %2512 = vmatprep.subr.bf16.mxu0 0
    %2513 = vmatpush1.bf16.msra.mxu0 %v2169
    %2514 = vmatprep.mubr.bf16.mxu0 %v1322
    %2515 = vmatmul.mubr.bf16.gmra.mrb[0].mxu0 %v1321
    %v2516 = vpop.f32.mrb[0].mxu0
    %v2517 = vadd.f32 %v2477, %v2516
    %v2518 = vpop.f32.mrb[0].mxu0
    %v2519 = vpop.f32.mrb[0].mxu0
    %v2520 = vpop.f32.mrb[0].mxu0
    %2521 = vdwg.mxu0
    %2522 = vmatprep.subr.bf16.mxu0 0
    %2523 = vmatpush1.bf16.msra.mxu0 %v2170
    %2524 = vmatprep.subr.bf16.mxu0 0
    %2525 = vmatpush1.bf16.msra.mxu0 %v2171
    %2526 = vmatprep.subr.bf16.mxu0 0
    %2527 = vmatpush1.bf16.msra.mxu0 %v2172
    %2528 = vmatprep.subr.bf16.mxu0 0
    %2529 = vmatpush1.bf16.msra.mxu0 %v2173
    %2530 = vmatprep.subr.bf16.mxu0 0
    %2531 = vmatpush1.bf16.msra.mxu0 %v2174
    %2532 = vmatprep.subr.bf16.mxu0 0
    %2533 = vmatpush1.bf16.msra.mxu0 %v2175
    %2534 = vmatprep.subr.bf16.mxu0 0
    %2535 = vmatpush1.bf16.msra.mxu0 %v2176
    %2536 = vmatprep.subr.bf16.mxu0 0
    %2537 = vmatpush1.bf16.msra.mxu0 %v2177
    %2538 = vmatprep.subr.bf16.mxu0 0
    %2539 = vmatpush1.bf16.msra.mxu0 %v2178
    %2540 = vmatprep.subr.bf16.mxu0 0
    %2541 = vmatpush1.bf16.msra.mxu0 %v2179
    %2542 = vmatprep.subr.bf16.mxu0 0
    %2543 = vmatpush1.bf16.msra.mxu0 %v2180
    %2544 = vmatprep.subr.bf16.mxu0 0
    %2545 = vmatpush1.bf16.msra.mxu0 %v2181
    %2546 = vmatprep.subr.bf16.mxu0 0
    %2547 = vmatpush1.bf16.msra.mxu0 %v2182
    %2548 = vmatprep.subr.bf16.mxu0 0
    %2549 = vmatpush1.bf16.msra.mxu0 %v2183
    %2550 = vmatprep.subr.bf16.mxu0 0
    %2551 = vmatpush1.bf16.msra.mxu0 %v2184
    %2552 = vmatprep.subr.bf16.mxu0 0
    %2553 = vmatpush1.bf16.msra.mxu0 %v2185
    %2554 = vmatprep.mubr.bf16.mxu0 %v1324
    %2555 = vmatmul.mubr.bf16.gmra.mrb[0].mxu0 %v1323
    %v2556 = vpop.f32.mrb[0].mxu0
    %v2557 = vadd.f32 %v2517, %v2556
    %v2558 = vpop.f32.mrb[0].mxu0
    %v2559 = vpop.f32.mrb[0].mxu0
    %v2560 = vpop.f32.mrb[0].mxu0
    %2561 = vdwg.mxu0
    %2562 = vmatprep.subr.bf16.mxu0 0
    %2563 = vmatpush1.bf16.msra.mxu0 %v2186
    %2564 = vmatprep.subr.bf16.mxu0 0
    %2565 = vmatpush1.bf16.msra.mxu0 %v2187
    %2566 = vmatprep.subr.bf16.mxu0 0
    %2567 = vmatpush1.bf16.msra.mxu0 %v2188
    %2568 = vmatprep.subr.bf16.mxu0 0
    %2569 = vmatpush1.bf16.msra.mxu0 %v2189
    %2570 = vmatprep.subr.bf16.mxu0 0
    %2571 = vmatpush1.bf16.msra.mxu0 %v2190
    %2572 = vmatprep.subr.bf16.mxu0 0
    %2573 = vmatpush1.bf16.msra.mxu0 %v2191
    %2574 = vmatprep.subr.bf16.mxu0 0
    %2575 = vmatpush1.bf16.msra.mxu0 %v2192
    %2576 = vmatprep.subr.bf16.mxu0 0
    %2577 = vmatpush1.bf16.msra.mxu0 %v2193
    %2578 = vmatprep.subr.bf16.mxu0 0
    %2579 = vmatpush1.bf16.msra.mxu0 %v2194
    %2580 = vmatprep.subr.bf16.mxu0 0
    %2581 = vmatpush1.bf16.msra.mxu0 %v2195
    %2582 = vmatprep.subr.bf16.mxu0 0
    %2583 = vmatpush1.bf16.msra.mxu0 %v2196
    %2584 = vmatprep.subr.bf16.mxu0 0
    %2585 = vmatpush1.bf16.msra.mxu0 %v2197
    %2586 = vmatprep.subr.bf16.mxu0 0
    %2587 = vmatpush1.bf16.msra.mxu0 %v2198
    %2588 = vmatprep.subr.bf16.mxu0 0
    %2589 = vmatpush1.bf16.msra.mxu0 %v2199
    %2590 = vmatprep.subr.bf16.mxu0 0
    %2591 = vmatpush1.bf16.msra.mxu0 %v2200
    %2592 = vmatprep.subr.bf16.mxu0 0
    %2593 = vmatpush1.bf16.msra.mxu0 %v2201
    %2594 = vmatprep.mubr.bf16.mxu0 %v1326
    %2595 = vmatmul.mubr.bf16.gmra.mrb[0].mxu0 %v1325
    %v2596 = vpop.f32.mrb[0].mxu0
    %v2597 = vadd.f32 %v2557, %v2596
    %v2598 = vpop.f32.mrb[0].mxu0
    %v2599 = vpop.f32.mrb[0].mxu0
    %v2600 = vpop.f32.mrb[0].mxu0
    %2601 = vdwg.mxu0
    %2602 = vmatprep.subr.bf16.mxu0 0
    %2603 = vmatpush1.bf16.msra.mxu0 %v2202
    %2604 = vmatprep.subr.bf16.mxu0 0
    %2605 = vmatpush1.bf16.msra.mxu0 %v2203
    %2606 = vmatprep.subr.bf16.mxu0 0
    %2607 = vmatpush1.bf16.msra.mxu0 %v2204
    %2608 = vmatprep.subr.bf16.mxu0 0
    %2609 = vmatpush1.bf16.msra.mxu0 %v2205
    %2610 = vmatprep.subr.bf16.mxu0 0
    %2611 = vmatpush1.bf16.msra.mxu0 %v2206
    %2612 = vmatprep.subr.bf16.mxu0 0
    %2613 = vmatpush1.bf16.msra.mxu0 %v2207
    %2614 = vmatprep.subr.bf16.mxu0 0
    %2615 = vmatpush1.bf16.msra.mxu0 %v2208
    %2616 = vmatprep.subr.bf16.mxu0 0
    %2617 = vmatpush1.bf16.msra.mxu0 %v2209
    %2618 = vmatprep.subr.bf16.mxu0 0
    %2619 = vmatpush1.bf16.msra.mxu0 %v2210
    %2620 = vmatprep.subr.bf16.mxu0 0
    %2621 = vmatpush1.bf16.msra.mxu0 %v2211
    %2622 = vmatprep.subr.bf16.mxu0 0
    %2623 = vmatpush1.bf16.msra.mxu0 %v2212
    %2624 = vmatprep.subr.bf16.mxu0 0
    %2625 = vmatpush1.bf16.msra.mxu0 %v2213
    %2626 = vmatprep.subr.bf16.mxu0 0
    %2627 = vmatpush1.bf16.msra.mxu0 %v2214
    %2628 = vmatprep.subr.bf16.mxu0 0
    %2629 = vmatpush1.bf16.msra.mxu0 %v2215
    %2630 = vmatprep.subr.bf16.mxu0 0
    %2631 = vmatpush1.bf16.msra.mxu0 %v2216
    %2632 = vmatprep.subr.bf16.mxu0 0
    %2633 = vmatpush1.bf16.msra.mxu0 %v2217
    %2634 = vmatprep.mubr.bf16.mxu0 %v1328
    %2635 = vmatmul.mubr.bf16.gmra.mrb[0].mxu0 %v1327
    %v2636 = vpop.f32.mrb[0].mxu0
    %v2637 = vadd.f32 %v2597, %v2636
    %v2638 = vpop.f32.mrb[0].mxu0
    %v2639 = vpop.f32.mrb[0].mxu0
    %v2640 = vpop.f32.mrb[0].mxu0
    %2641 = vdwg.mxu0
    %2642 = vmatprep.subr.bf16.mxu0 0
    %2643 = vmatpush1.bf16.msra.mxu0 %v2218
    %2644 = vmatprep.subr.bf16.mxu0 0
    %2645 = vmatpush1.bf16.msra.mxu0 %v2219
    %2646 = vmatprep.subr.bf16.mxu0 0
    %2647 = vmatpush1.bf16.msra.mxu0 %v2220
    %2648 = vmatprep.subr.bf16.mxu0 0
    %2649 = vmatpush1.bf16.msra.mxu0 %v2221
    %2650 = vmatprep.subr.bf16.mxu0 0
    %2651 = vmatpush1.bf16.msra.mxu0 %v2222
    %2652 = vmatprep.subr.bf16.mxu0 0
    %2653 = vmatpush1.bf16.msra.mxu0 %v2223
    %2654 = vmatprep.subr.bf16.mxu0 0
    %2655 = vmatpush1.bf16.msra.mxu0 %v2224
    %2656 = vmatprep.subr.bf16.mxu0 0
    %2657 = vmatpush1.bf16.msra.mxu0 %v2225
    %2658 = vmatprep.subr.bf16.mxu0 0
    %2659 = vmatpush1.bf16.msra.mxu0 %v2226
    %2660 = vmatprep.subr.bf16.mxu0 0
    %2661 = vmatpush1.bf16.msra.mxu0 %v2227
    %2662 = vmatprep.subr.bf16.mxu0 0
    %2663 = vmatpush1.bf16.msra.mxu0 %v2228
    %2664 = vmatprep.subr.bf16.mxu0 0
    %2665 = vmatpush1.bf16.msra.mxu0 %v2229
    %2666 = vmatprep.subr.bf16.mxu0 0
    %2667 = vmatpush1.bf16.msra.mxu0 %v2230
    %2668 = vmatprep.subr.bf16.mxu0 0
    %2669 = vmatpush1.bf16.msra.mxu0 %v2231
    %2670 = vmatprep.subr.bf16.mxu0 0
    %2671 = vmatpush1.bf16.msra.mxu0 %v2232
    %2672 = vmatprep.subr.bf16.mxu0 0
    %2673 = vmatpush1.bf16.msra.mxu0 %v2233
    %2674 = vmatprep.mubr.bf16.mxu0 %v1330
    %2675 = vmatmul.mubr.bf16.gmra.mrb[0].mxu0 %v1329
    %v2676 = vpop.f32.mrb[0].mxu0
    %v2677 = vadd.f32 %v2637, %v2676
    %v2678 = vpop.f32.mrb[0].mxu0
    %v2679 = vpop.f32.mrb[0].mxu0
    %v2680 = vpop.f32.mrb[0].mxu0
    %2681 = vdwg.mxu0
    %v2682 = vadd.f32 %v690, %v2677
    %v2683 = vld [vmem:[%s18] sm:$0x1]
    %v2684 = vld [vmem:[%s19] sm:$0x1]
    %v2685 = vsel %vm662, %v2682, 0.0
    %2686 = vadd.xlane.f32.xlu0 %v2685
    %v2687 = vpop.xlane.xlu0 %2686
    %v2688 = vmul.f32 %v2687, %v666
    %v2689 = vsub.f32 %v2682, %v2688
    %v2690 = vmul.f32 %v2689, %v2689
    %v2691 = vsel %vm662, %v2690, 0.0
    %2692 = vadd.xlane.f32.xlu0 %v2691
    %v2693 = vpop.xlane.xlu0 %2692
    %v2694 = vmul.f32 %v2693, %v666
    %v2695 = vadd.f32 %v2694, 1e-05
    %v2696 = vrsqrt.pop %v2695
    %v2697 = vmul.f32 %v2689, %v2696
    %v2699 = vlaneseq
    %v2700 = vshrl.u32 %v2699, 7
    %v2701 = vsub.s32 0, %v2700
    %v2702 = vrot.slane %v2683, %v2701
    %v2704 = vmul.f32 %v2697, %v2702
    %v2706 = vlaneseq
    %v2707 = vshrl.u32 %v2706, 7
    %v2708 = vsub.s32 0, %v2707
    %v2709 = vrot.slane %v2684, %v2708
    %v2711 = vadd.f32 %v2704, %v2709
    %v2712 = vpack.c.bf16 %v2711, %v2711
    %s2713 = scalar_lea.vmem %s8, 16
    %v2714 = vld [vmem:[%s2713] sm:$0xf]
    %v2715 = vld [vmem:[%s2713 + $0x4] sm:$0xf]
    %v2716 = vld [vmem:[%s2713 + $0x8] sm:$0xf]
    %v2717 = vld [vmem:[%s2713 + $0xc] sm:$0xf]
    %s2718 = scalar_lea.vmem %s9, 1
    %v2719 = vld [vmem:[%s2718] sm:$0x1]
    %v2721 = vlaneseq
    %v2722 = vshrl.u32 %v2721, 7
    %v2723 = vsub.s32 0, %v2722
    %v2724 = vrot.slane %v2719, %v2723
    %v2730 = vunpack.c.l.b16 %v2714
    %v2731 = vunpack.c.l.b16 %v2715
    %v2732 = vunpack.c.l.b16 %v2716
    %v2733 = vunpack.c.l.b16 %v2717
    %v2734 = vpack.c.b16 %v2731, %v2730
    %v2735 = vpack.c.b16 %v2733, %v2732
    %v2739 = vsel %vm248, %v2712, 0
    %2741 = vmatprep.subr.bf16.mxu0 0
    %2742 = vmatpush1.bf16.msra.mxu0 %v2734
    %2743 = vmatprep.subr.bf16.mxu0 0
    %2744 = vmatpush1.bf16.msra.mxu0 %v2735
    %2745 = vmatprep.subr.bf16.mxu0 0
    %2746 = vmatpush1.bf16.msra.mxu0 0
    %2747 = vmatprep.subr.bf16.mxu0 0
    %2748 = vmatpush1.bf16.msra.mxu0 0
    %2749 = vmatprep.subr.bf16.mxu0 0
    %2750 = vmatpush1.bf16.msra.mxu0 0
    %2751 = vmatprep.subr.bf16.mxu0 0
    %2752 = vmatpush1.bf16.msra.mxu0 0
    %2753 = vmatprep.subr.bf16.mxu0 0
    %2754 = vmatpush1.bf16.msra.mxu0 0
    %2755 = vmatprep.subr.bf16.mxu0 0
    %2756 = vmatpush1.bf16.msra.mxu0 0
    %2757 = vmatprep.subr.bf16.mxu0 0
    %2758 = vmatpush1.bf16.msra.mxu0 0
    %2759 = vmatprep.subr.bf16.mxu0 0
    %2760 = vmatpush1.bf16.msra.mxu0 0
    %2761 = vmatprep.subr.bf16.mxu0 0
    %2762 = vmatpush1.bf16.msra.mxu0 0
    %2763 = vmatprep.subr.bf16.mxu0 0
    %2764 = vmatpush1.bf16.msra.mxu0 0
    %2765 = vmatprep.subr.bf16.mxu0 0
    %2766 = vmatpush1.bf16.msra.mxu0 0
    %2767 = vmatprep.subr.bf16.mxu0 0
    %2768 = vmatpush1.bf16.msra.mxu0 0
    %2769 = vmatprep.subr.bf16.mxu0 0
    %2770 = vmatpush1.bf16.msra.mxu0 0
    %2771 = vmatprep.subr.bf16.mxu0 0
    %2772 = vmatpush1.bf16.msra.mxu0 0
    %2773 = vmatprep.mubr.bf16.mxu0 0
    %2774 = vmatmul.mubr.bf16.gmra.mrb[0].mxu0 %v2739
    %v2775 = vpop.f32.mrb[0].mxu0
    %v2776 = vadd.f32 %v2724, %v2775
    %v2777 = vpop.f32.mrb[0].mxu0
    %v2778 = vpop.f32.mrb[0].mxu0
    %v2779 = vpop.f32.mrb[0].mxu0
    %2780 = vdwg.mxu0
    %v2782 = vsel %vm305, %v2776, 0
    %2784 = vmatprep.subr.mxu0 0.0
    %2785 = vmatpush1.msra.mxu0 %v2782
    %2786 = vmatprep.subr.mxu0 0.0
    %2787 = vmatpush1.msra.mxu0 0.0
    %2788 = vmatprep.subr.mxu0 0.0
    %2789 = vmatpush1.msra.mxu0 0.0
    %2790 = vmatprep.subr.mxu0 0.0
    %2791 = vmatpush1.msra.mxu0 0.0
    %2792 = vmatprep.subr.mxu0 0.0
    %2793 = vmatpush1.msra.mxu0 0.0
    %2794 = vmatprep.subr.mxu0 0.0
    %2795 = vmatpush1.msra.mxu0 0.0
    %2796 = vmatprep.subr.mxu0 0.0
    %2797 = vmatpush1.msra.mxu0 0.0
    %2798 = vmatprep.subr.mxu0 0.0
    %2799 = vmatpush1.msra.mxu0 0.0
    %2800 = vmatprep.subr.mxu0 0.0
    %2801 = vmatpush1.msra.mxu0 0.0
    %2802 = vmatprep.subr.mxu0 0.0
    %2803 = vmatpush1.msra.mxu0 0.0
    %2804 = vmatprep.subr.mxu0 0.0
    %2805 = vmatpush1.msra.mxu0 0.0
    %2806 = vmatprep.subr.mxu0 0.0
    %2807 = vmatpush1.msra.mxu0 0.0
    %2808 = vmatprep.subr.mxu0 0.0
    %2809 = vmatpush1.msra.mxu0 0.0
    %2810 = vmatprep.subr.mxu0 0.0
    %2811 = vmatpush1.msra.mxu0 0.0
    %2812 = vmatprep.subr.mxu0 0.0
    %2813 = vmatpush1.msra.mxu0 0.0
    %2814 = vmatprep.subr.mxu0 0.0
    %2815 = vmatpush1.msra.mxu0 0.0
    %2816 = vmatprep.subr.mxu0 0.0
    %2817 = vmatpush1.msra.mxu0 0.0
    %2818 = vmatprep.subr.mxu0 0.0
    %2819 = vmatpush1.msra.mxu0 0.0
    %2820 = vmatprep.subr.mxu0 0.0
    %2821 = vmatpush1.msra.mxu0 0.0
    %2822 = vmatprep.subr.mxu0 0.0
    %2823 = vmatpush1.msra.mxu0 0.0
    %2824 = vmatprep.subr.mxu0 0.0
    %2825 = vmatpush1.msra.mxu0 0.0
    %2826 = vmatprep.subr.mxu0 0.0
    %2827 = vmatpush1.msra.mxu0 0.0
    %2828 = vmatprep.subr.mxu0 0.0
    %2829 = vmatpush1.msra.mxu0 0.0
    %2830 = vmatprep.subr.mxu0 0.0
    %2831 = vmatpush1.msra.mxu0 0.0
    %2832 = vmatprep.subr.mxu0 0.0
    %2833 = vmatpush1.msra.mxu0 0.0
    %2834 = vmatprep.subr.mxu0 0.0
    %2835 = vmatpush1.msra.mxu0 0.0
    %2836 = vmatprep.subr.mxu0 0.0
    %2837 = vmatpush1.msra.mxu0 0.0
    %2838 = vmatprep.subr.mxu0 0.0
    %2839 = vmatpush1.msra.mxu0 0.0
    %2840 = vmatprep.subr.mxu0 0.0
    %2841 = vmatpush1.msra.mxu0 0.0
    %2842 = vmatprep.subr.mxu0 0.0
    %2843 = vmatpush1.msra.mxu0 0.0
    %2844 = vmatprep.subr.mxu0 0.0
    %2845 = vmatpush1.msra.mxu0 0.0
    %2846 = vmatprep.subr.mxu0 0.0
    %2847 = vmatpush1.msra.mxu0 0.0
    %2848 = vmatprep.mubr.f32.mxu0 0.0
    %2849 = vmatmul.mubr.f32.gmra.mrb[0].mxu0 %v297
    %v2850 = vpop.f32.mrb[0].mxu0
    %v2851 = vadd.f32 0.0, %v2850
    %v2852 = vpop.f32.mrb[0].mxu0
    %2853 = vmatprep.mubr.f32.mxu0 0.0
    %2854 = vmatmul.mubr.f32.gmra.mrb[0].mxu0 %v300
    %v2855 = vpop.f32.mrb[0].mxu0
    %v2856 = vadd.f32 0.0, %v2855
    %v2857 = vpop.f32.mrb[0].mxu0
    %2858 = vmatprep.mubr.f32.mxu0 0.0
    %2859 = vmatmul.mubr.f32.gmra.mrb[0].mxu0 %v303
    %v2860 = vpop.f32.mrb[0].mxu0
    %v2861 = vadd.f32 0.0, %v2860
    %v2862 = vpop.f32.mrb[0].mxu0
    %2863 = vdwg.mxu0
    %2864 = vrot.lane.b32.xlu0 %v2776, 96
    %v2865 = vpop.permute.xlu0 %2864
    %v2866 = vsel %vm305, %v2865, 0
    %2868 = vmatprep.subr.mxu0 0.0
    %2869 = vmatpush1.msra.mxu0 %v2866
    %2870 = vmatprep.subr.mxu0 0.0
    %2871 = vmatpush1.msra.mxu0 0.0
    %2872 = vmatprep.subr.mxu0 0.0
    %2873 = vmatpush1.msra.mxu0 0.0
    %2874 = vmatprep.subr.mxu0 0.0
    %2875 = vmatpush1.msra.mxu0 0.0
    %2876 = vmatprep.subr.mxu0 0.0
    %2877 = vmatpush1.msra.mxu0 0.0
    %2878 = vmatprep.subr.mxu0 0.0
    %2879 = vmatpush1.msra.mxu0 0.0
    %2880 = vmatprep.subr.mxu0 0.0
    %2881 = vmatpush1.msra.mxu0 0.0
    %2882 = vmatprep.subr.mxu0 0.0
    %2883 = vmatpush1.msra.mxu0 0.0
    %2884 = vmatprep.subr.mxu0 0.0
    %2885 = vmatpush1.msra.mxu0 0.0
    %2886 = vmatprep.subr.mxu0 0.0
    %2887 = vmatpush1.msra.mxu0 0.0
    %2888 = vmatprep.subr.mxu0 0.0
    %2889 = vmatpush1.msra.mxu0 0.0
    %2890 = vmatprep.subr.mxu0 0.0
    %2891 = vmatpush1.msra.mxu0 0.0
    %2892 = vmatprep.subr.mxu0 0.0
    %2893 = vmatpush1.msra.mxu0 0.0
    %2894 = vmatprep.subr.mxu0 0.0
    %2895 = vmatpush1.msra.mxu0 0.0
    %2896 = vmatprep.subr.mxu0 0.0
    %2897 = vmatpush1.msra.mxu0 0.0
    %2898 = vmatprep.subr.mxu0 0.0
    %2899 = vmatpush1.msra.mxu0 0.0
    %2900 = vmatprep.subr.mxu0 0.0
    %2901 = vmatpush1.msra.mxu0 0.0
    %2902 = vmatprep.subr.mxu0 0.0
    %2903 = vmatpush1.msra.mxu0 0.0
    %2904 = vmatprep.subr.mxu0 0.0
    %2905 = vmatpush1.msra.mxu0 0.0
    %2906 = vmatprep.subr.mxu0 0.0
    %2907 = vmatpush1.msra.mxu0 0.0
    %2908 = vmatprep.subr.mxu0 0.0
    %2909 = vmatpush1.msra.mxu0 0.0
    %2910 = vmatprep.subr.mxu0 0.0
    %2911 = vmatpush1.msra.mxu0 0.0
    %2912 = vmatprep.subr.mxu0 0.0
    %2913 = vmatpush1.msra.mxu0 0.0
    %2914 = vmatprep.subr.mxu0 0.0
    %2915 = vmatpush1.msra.mxu0 0.0
    %2916 = vmatprep.subr.mxu0 0.0
    %2917 = vmatpush1.msra.mxu0 0.0
    %2918 = vmatprep.subr.mxu0 0.0
    %2919 = vmatpush1.msra.mxu0 0.0
    %2920 = vmatprep.subr.mxu0 0.0
    %2921 = vmatpush1.msra.mxu0 0.0
    %2922 = vmatprep.subr.mxu0 0.0
    %2923 = vmatpush1.msra.mxu0 0.0
    %2924 = vmatprep.subr.mxu0 0.0
    %2925 = vmatpush1.msra.mxu0 0.0
    %2926 = vmatprep.subr.mxu0 0.0
    %2927 = vmatpush1.msra.mxu0 0.0
    %2928 = vmatprep.subr.mxu0 0.0
    %2929 = vmatpush1.msra.mxu0 0.0
    %2930 = vmatprep.subr.mxu0 0.0
    %2931 = vmatpush1.msra.mxu0 0.0
    %2932 = vmatprep.mubr.f32.mxu0 0.0
    %2933 = vmatmul.mubr.f32.gmra.mrb[0].mxu0 %v395
    %v2934 = vpop.f32.mrb[0].mxu0
    %v2935 = vadd.f32 0.0, %v2934
    %v2936 = vpop.f32.mrb[0].mxu0
    %2937 = vmatprep.mubr.f32.mxu0 0.0
    %2938 = vmatmul.mubr.f32.gmra.mrb[0].mxu0 %v398
    %v2939 = vpop.f32.mrb[0].mxu0
    %v2940 = vadd.f32 0.0, %v2939
    %v2941 = vpop.f32.mrb[0].mxu0
    %2942 = vmatprep.mubr.f32.mxu0 0.0
    %2943 = vmatmul.mubr.f32.gmra.mrb[0].mxu0 %v401
    %v2944 = vpop.f32.mrb[0].mxu0
    %v2945 = vadd.f32 0.0, %v2944
    %v2946 = vpop.f32.mrb[0].mxu0
    %2947 = vdwg.mxu0
    %v2948 = vmul.f32 %v2851, %v2935
    %v2949 = vmul.f32 %v2856, %v2940
    %v2950 = vmul.f32 %v2861, %v2945
    %v2951 = vpack.c.bf16 %v2949, %v2948
    %v2952 = vpack.c.bf16 %v2950, %v2950
    %v2954 = vsel %vm248, %v2951, 0
    %v2957 = vsel %vm248, %v2952, 0
    %2959 = vmatprep.subr.bf16.mxu0 0
    %2960 = vmatpush1.bf16.msra.mxu0 %v502
    %2961 = vmatprep.subr.bf16.mxu0 0
    %2962 = vmatpush1.bf16.msra.mxu0 %v503
    %2963 = vmatprep.subr.bf16.mxu0 0
    %2964 = vmatpush1.bf16.msra.mxu0 0
    %2965 = vmatprep.subr.bf16.mxu0 0
    %2966 = vmatpush1.bf16.msra.mxu0 0
    %2967 = vmatprep.subr.bf16.mxu0 0
    %2968 = vmatpush1.bf16.msra.mxu0 0
    %2969 = vmatprep.subr.bf16.mxu0 0
    %2970 = vmatpush1.bf16.msra.mxu0 0
    %2971 = vmatprep.subr.bf16.mxu0 0
    %2972 = vmatpush1.bf16.msra.mxu0 0
    %2973 = vmatprep.subr.bf16.mxu0 0
    %2974 = vmatpush1.bf16.msra.mxu0 0
    %2975 = vmatprep.subr.bf16.mxu0 0
    %2976 = vmatpush1.bf16.msra.mxu0 0
    %2977 = vmatprep.subr.bf16.mxu0 0
    %2978 = vmatpush1.bf16.msra.mxu0 0
    %2979 = vmatprep.subr.bf16.mxu0 0
    %2980 = vmatpush1.bf16.msra.mxu0 0
    %2981 = vmatprep.subr.bf16.mxu0 0
    %2982 = vmatpush1.bf16.msra.mxu0 0
    %2983 = vmatprep.subr.bf16.mxu0 0
    %2984 = vmatpush1.bf16.msra.mxu0 0
    %2985 = vmatprep.subr.bf16.mxu0 0
    %2986 = vmatpush1.bf16.msra.mxu0 0
    %2987 = vmatprep.subr.bf16.mxu0 0
    %2988 = vmatpush1.bf16.msra.mxu0 0
    %2989 = vmatprep.subr.bf16.mxu0 0
    %2990 = vmatpush1.bf16.msra.mxu0 0
    %2991 = vmatprep.mubr.bf16.mxu0 0
    %2992 = vmatmul.mubr.bf16.gmra.mrb[0].mxu0 %v2954
    %v2993 = vpop.f32.mrb[0].mxu0
    %v2994 = vadd.f32 0.0, %v2993
    %v2995 = vpop.f32.mrb[0].mxu0
    %v2996 = vpop.f32.mrb[0].mxu0
    %v2997 = vadd.f32 0.0, %v2996
    %v2998 = vpop.f32.mrb[0].mxu0
    %2999 = vmatprep.mubr.bf16.mxu0 0
    %3000 = vmatmul.mubr.bf16.gmra.mrb[0].mxu0 %v2957
    %v3001 = vpop.f32.mrb[0].mxu0
    %v3002 = vadd.f32 0.0, %v3001
    %v3003 = vpop.f32.mrb[0].mxu0
    %v3004 = vpop.f32.mrb[0].mxu0
    %v3005 = vpop.f32.mrb[0].mxu0
    %3006 = vdwg.mxu0
    %v3007 = vmax.f32 %v2994, %v2997
    %v3008 = vmax.f32 %v3007, %v3002
    %v3009 = vsub.f32 %v2994, %v3008
    %v3010 = vmul.f32 %v3009, 1.442695
    %v3011 = vpow.pop %v3010
    %v3012 = vsub.f32 %v2997, %v3008
    %v3013 = vmul.f32 %v3012, 1.442695
    %v3014 = vpow.pop %v3013
    %v3015 = vsub.f32 %v3002, %v3008
    %v3016 = vmul.f32 %v3015, 1.442695
    %v3017 = vpow.pop %v3016
    %v3018 = vadd.f32 %v3011, %v3014
    %v3019 = vadd.f32 %v3018, %v3017
    %v3020 = vrcp.pop %v3019
    %3022 = vrot.lane.b32.xlu0 %v2935, 96
    %v3023 = vpop.permute.xlu0 %3022
    %v3025 = vmul.f32 %v3011, %v3023
    %3027 = vrot.lane.b32.xlu0 %v2940, 96
    %v3028 = vpop.permute.xlu0 %3027
    %v3030 = vmul.f32 %v3014, %v3028
    %v3031 = vadd.f32 %v3025, %v3030
    %3033 = vrot.lane.b32.xlu0 %v2945, 96
    %v3034 = vpop.permute.xlu0 %3033
    %v3036 = vmul.f32 %v3017, %v3034
    %v3037 = vadd.f32 %v3031, %v3036
    %v3038 = vmul.f32 %v3037, %v3020
    %v3039 = vpack.c.bf16 %v3038, %v3038
    %s3040 = scalar_lea.vmem %s10, 16
    %v3041 = vld [vmem:[%s3040] sm:$0xf]
    %v3042 = vld [vmem:[%s3040 + $0x4] sm:$0xf]
    %v3043 = vld [vmem:[%s3040 + $0x8] sm:$0xf]
    %v3044 = vld [vmem:[%s3040 + $0xc] sm:$0xf]
    %s3045 = scalar_lea.vmem %s11, 1
    %v3046 = vld [vmem:[%s3045] sm:$0x1]
    %v3048 = vlaneseq
    %v3049 = vshrl.u32 %v3048, 7
    %v3050 = vsub.s32 0, %v3049
    %v3051 = vrot.slane %v3046, %v3050
    %v3057 = vunpack.c.l.b16 %v3041
    %v3058 = vunpack.c.l.b16 %v3042
    %v3059 = vunpack.c.l.b16 %v3043
    %v3060 = vunpack.c.l.b16 %v3044
    %v3061 = vpack.c.b16 %v3058, %v3057
    %v3062 = vpack.c.b16 %v3060, %v3059
    %v3066 = vsel %vm248, %v3039, 0
    %3068 = vmatprep.subr.bf16.mxu0 0
    %3069 = vmatpush1.bf16.msra.mxu0 %v3061
    %3070 = vmatprep.subr.bf16.mxu0 0
    %3071 = vmatpush1.bf16.msra.mxu0 %v3062
    %3072 = vmatprep.subr.bf16.mxu0 0
    %3073 = vmatpush1.bf16.msra.mxu0 0
    %3074 = vmatprep.subr.bf16.mxu0 0
    %3075 = vmatpush1.bf16.msra.mxu0 0
    %3076 = vmatprep.subr.bf16.mxu0 0
    %3077 = vmatpush1.bf16.msra.mxu0 0
    %3078 = vmatprep.subr.bf16.mxu0 0
    %3079 = vmatpush1.bf16.msra.mxu0 0
    %3080 = vmatprep.subr.bf16.mxu0 0
    %3081 = vmatpush1.bf16.msra.mxu0 0
    %3082 = vmatprep.subr.bf16.mxu0 0
    %3083 = vmatpush1.bf16.msra.mxu0 0
    %3084 = vmatprep.subr.bf16.mxu0 0
    %3085 = vmatpush1.bf16.msra.mxu0 0
    %3086 = vmatprep.subr.bf16.mxu0 0
    %3087 = vmatpush1.bf16.msra.mxu0 0
    %3088 = vmatprep.subr.bf16.mxu0 0
    %3089 = vmatpush1.bf16.msra.mxu0 0
    %3090 = vmatprep.subr.bf16.mxu0 0
    %3091 = vmatpush1.bf16.msra.mxu0 0
    %3092 = vmatprep.subr.bf16.mxu0 0
    %3093 = vmatpush1.bf16.msra.mxu0 0
    %3094 = vmatprep.subr.bf16.mxu0 0
    %3095 = vmatpush1.bf16.msra.mxu0 0
    %3096 = vmatprep.subr.bf16.mxu0 0
    %3097 = vmatpush1.bf16.msra.mxu0 0
    %3098 = vmatprep.subr.bf16.mxu0 0
    %3099 = vmatpush1.bf16.msra.mxu0 0
    %3100 = vmatprep.mubr.bf16.mxu0 0
    %3101 = vmatmul.mubr.bf16.gmra.mrb[0].mxu0 %v3066
    %v3102 = vpop.f32.mrb[0].mxu0
    %v3103 = vadd.f32 %v3051, %v3102
    %v3104 = vpop.f32.mrb[0].mxu0
    %v3105 = vpop.f32.mrb[0].mxu0
    %v3106 = vpop.f32.mrb[0].mxu0
    %3107 = vdwg.mxu0
    %v3108 = vadd.f32 %v2711, %v3103
    %s3109 = scalar_lea.vmem %s12, 1
    %v3110 = vld [vmem:[%s3109] sm:$0x1]
    %s3111 = scalar_lea.vmem %s13, 1
    %v3112 = vld [vmem:[%s3111] sm:$0x1]
    %v3113 = vsel %vm662, %v3108, 0.0
    %3114 = vadd.xlane.f32.xlu0 %v3113
    %v3115 = vpop.xlane.xlu0 %3114
    %v3116 = vmul.f32 %v3115, %v666
    %v3117 = vsub.f32 %v3108, %v3116
    %v3118 = vmul.f32 %v3117, %v3117
    %v3119 = vsel %vm662, %v3118, 0.0
    %3120 = vadd.xlane.f32.xlu0 %v3119
    %v3121 = vpop.xlane.xlu0 %3120
    %v3122 = vmul.f32 %v3121, %v666
    %v3123 = vadd.f32 %v3122, 1e-05
    %v3124 = vrsqrt.pop %v3123
    %v3125 = vmul.f32 %v3117, %v3124
    %v3127 = vlaneseq
    %v3128 = vshrl.u32 %v3127, 7
    %v3129 = vsub.s32 0, %v3128
    %v3130 = vrot.slane %v3110, %v3129
    %v3132 = vmul.f32 %v3125, %v3130
    %v3134 = vlaneseq
    %v3135 = vshrl.u32 %v3134, 7
    %v3136 = vsub.s32 0, %v3135
    %v3137 = vrot.slane %v3112, %v3136
    %v3139 = vadd.f32 %v3132, %v3137
    %v3140 = vpack.c.bf16 %v3139, %v3139
    %s3141 = scalar_lea.vmem %s14, 256
    %v3142 = vld [vmem:[%s3141] sm:$0xff]
    %v3143 = vld [vmem:[%s3141 + $0x8] sm:$0xff]
    %v3144 = vld [vmem:[%s3141 + $0x10] sm:$0xff]
    %v3145 = vld [vmem:[%s3141 + $0x18] sm:$0xff]
    %v3146 = vld [vmem:[%s3141 + $0x20] sm:$0xff]
    %v3147 = vld [vmem:[%s3141 + $0x28] sm:$0xff]
    %v3148 = vld [vmem:[%s3141 + $0x30] sm:$0xff]
    %v3149 = vld [vmem:[%s3141 + $0x38] sm:$0xff]
    %v3150 = vld [vmem:[%s3141 + $0x40] sm:$0xff]
    %v3151 = vld [vmem:[%s3141 + $0x48] sm:$0xff]
    %v3152 = vld [vmem:[%s3141 + $0x50] sm:$0xff]
    %v3153 = vld [vmem:[%s3141 + $0x58] sm:$0xff]
    %v3154 = vld [vmem:[%s3141 + $0x60] sm:$0xff]
    %v3155 = vld [vmem:[%s3141 + $0x68] sm:$0xff]
    %v3156 = vld [vmem:[%s3141 + $0x70] sm:$0xff]
    %v3157 = vld [vmem:[%s3141 + $0x78] sm:$0xff]
    %v3158 = vld [vmem:[%s3141 + $0x80] sm:$0xff]
    %v3159 = vld [vmem:[%s3141 + $0x88] sm:$0xff]
    %v3160 = vld [vmem:[%s3141 + $0x90] sm:$0xff]
    %v3161 = vld [vmem:[%s3141 + $0x98] sm:$0xff]
    %v3162 = vld [vmem:[%s3141 + $0xa0] sm:$0xff]
    %v3163 = vld [vmem:[%s3141 + $0xa8] sm:$0xff]
    %v3164 = vld [vmem:[%s3141 + $0xb0] sm:$0xff]
    %v3165 = vld [vmem:[%s3141 + $0xb8] sm:$0xff]
    %v3166 = vld [vmem:[%s3141 + $0xc0] sm:$0xff]
    %v3167 = vld [vmem:[%s3141 + $0xc8] sm:$0xff]
    %v3168 = vld [vmem:[%s3141 + $0xd0] sm:$0xff]
    %v3169 = vld [vmem:[%s3141 + $0xd8] sm:$0xff]
    %v3170 = vld [vmem:[%s3141 + $0xe0] sm:$0xff]
    %v3171 = vld [vmem:[%s3141 + $0xe8] sm:$0xff]
    %v3172 = vld [vmem:[%s3141 + $0xf0] sm:$0xff]
    %v3173 = vld [vmem:[%s3141 + $0xf8] sm:$0xff]
    %s3174 = scalar_lea.vmem %s15, 16
    %v3175 = vld [vmem:[%s3174] sm:$0xff]
    %v3176 = vld [vmem:[%s3174 + $0x8] sm:$0xff]
    %v3179 = vlaneseq
    %v3180 = vshrl.u32 %v3179, 7
    %v3181 = vsub.s32 0, %v3180
    %v3182 = vrot.slane %v3175, %v3181
    %v3183 = vlaneseq
    %v3184 = vshrl.u32 %v3183, 7
    %v3185 = vsub.s32 1, %v3184
    %v3186 = vrot.slane %v3175, %v3185
    %v3187 = vlaneseq
    %v3188 = vshrl.u32 %v3187, 7
    %v3189 = vsub.s32 2, %v3188
    %v3190 = vrot.slane %v3175, %v3189
    %v3191 = vlaneseq
    %v3192 = vshrl.u32 %v3191, 7
    %v3193 = vsub.s32 3, %v3192
    %v3194 = vrot.slane %v3175, %v3193
    %v3195 = vlaneseq
    %v3196 = vshrl.u32 %v3195, 7
    %v3197 = vsub.s32 4, %v3196
    %v3198 = vrot.slane %v3175, %v3197
    %v3199 = vlaneseq
    %v3200 = vshrl.u32 %v3199, 7
    %v3201 = vsub.s32 5, %v3200
    %v3202 = vrot.slane %v3175, %v3201
    %v3203 = vlaneseq
    %v3204 = vshrl.u32 %v3203, 7
    %v3205 = vsub.s32 6, %v3204
    %v3206 = vrot.slane %v3175, %v3205
    %v3207 = vlaneseq
    %v3208 = vshrl.u32 %v3207, 7
    %v3209 = vsub.s32 7, %v3208
    %v3210 = vrot.slane %v3175, %v3209
    %v3211 = vlaneseq
    %v3212 = vshrl.u32 %v3211, 7
    %v3213 = vsub.s32 0, %v3212
    %v3214 = vrot.slane %v3176, %v3213
    %v3215 = vlaneseq
    %v3216 = vshrl.u32 %v3215, 7
    %v3217 = vsub.s32 1, %v3216
    %v3218 = vrot.slane %v3176, %v3217
    %v3219 = vlaneseq
    %v3220 = vshrl.u32 %v3219, 7
    %v3221 = vsub.s32 2, %v3220
    %v3222 = vrot.slane %v3176, %v3221
    %v3223 = vlaneseq
    %v3224 = vshrl.u32 %v3223, 7
    %v3225 = vsub.s32 3, %v3224
    %v3226 = vrot.slane %v3176, %v3225
    %v3227 = vlaneseq
    %v3228 = vshrl.u32 %v3227, 7
    %v3229 = vsub.s32 4, %v3228
    %v3230 = vrot.slane %v3176, %v3229
    %v3231 = vlaneseq
    %v3232 = vshrl.u32 %v3231, 7
    %v3233 = vsub.s32 5, %v3232
    %v3234 = vrot.slane %v3176, %v3233
    %v3235 = vlaneseq
    %v3236 = vshrl.u32 %v3235, 7
    %v3237 = vsub.s32 6, %v3236
    %v3238 = vrot.slane %v3176, %v3237
    %v3239 = vlaneseq
    %v3240 = vshrl.u32 %v3239, 7
    %v3241 = vsub.s32 7, %v3240
    %v3242 = vrot.slane %v3176, %v3241
    %v3291 = vunpack.c.l.b16 %v3142
    %v3292 = vunpack.c.h.b16 %v3142
    %v3293 = vunpack.c.l.b16 %v3143
    %v3294 = vunpack.c.h.b16 %v3143
    %v3295 = vunpack.c.l.b16 %v3144
    %v3296 = vunpack.c.h.b16 %v3144
    %v3297 = vunpack.c.l.b16 %v3145
    %v3298 = vunpack.c.h.b16 %v3145
    %v3299 = vunpack.c.l.b16 %v3146
    %v3300 = vunpack.c.h.b16 %v3146
    %v3301 = vunpack.c.l.b16 %v3147
    %v3302 = vunpack.c.h.b16 %v3147
    %v3303 = vunpack.c.l.b16 %v3148
    %v3304 = vunpack.c.h.b16 %v3148
    %v3305 = vunpack.c.l.b16 %v3149
    %v3306 = vunpack.c.h.b16 %v3149
    %v3307 = vunpack.c.l.b16 %v3150
    %v3308 = vunpack.c.h.b16 %v3150
    %v3309 = vunpack.c.l.b16 %v3151
    %v3310 = vunpack.c.h.b16 %v3151
    %v3311 = vunpack.c.l.b16 %v3152
    %v3312 = vunpack.c.h.b16 %v3152
    %v3313 = vunpack.c.l.b16 %v3153
    %v3314 = vunpack.c.h.b16 %v3153
    %v3315 = vunpack.c.l.b16 %v3154
    %v3316 = vunpack.c.h.b16 %v3154
    %v3317 = vunpack.c.l.b16 %v3155
    %v3318 = vunpack.c.h.b16 %v3155
    %v3319 = vunpack.c.l.b16 %v3156
    %v3320 = vunpack.c.h.b16 %v3156
    %v3321 = vunpack.c.l.b16 %v3157
    %v3322 = vunpack.c.h.b16 %v3157
    %v3323 = vunpack.c.l.b16 %v3158
    %v3324 = vunpack.c.h.b16 %v3158
    %v3325 = vunpack.c.l.b16 %v3159
    %v3326 = vunpack.c.h.b16 %v3159
    %v3327 = vunpack.c.l.b16 %v3160
    %v3328 = vunpack.c.h.b16 %v3160
    %v3329 = vunpack.c.l.b16 %v3161
    %v3330 = vunpack.c.h.b16 %v3161
    %v3331 = vunpack.c.l.b16 %v3162
    %v3332 = vunpack.c.h.b16 %v3162
    %v3333 = vunpack.c.l.b16 %v3163
    %v3334 = vunpack.c.h.b16 %v3163
    %v3335 = vunpack.c.l.b16 %v3164
    %v3336 = vunpack.c.h.b16 %v3164
    %v3337 = vunpack.c.l.b16 %v3165
    %v3338 = vunpack.c.h.b16 %v3165
    %v3339 = vunpack.c.l.b16 %v3166
    %v3340 = vunpack.c.h.b16 %v3166
    %v3341 = vunpack.c.l.b16 %v3167
    %v3342 = vunpack.c.h.b16 %v3167
    %v3343 = vunpack.c.l.b16 %v3168
    %v3344 = vunpack.c.h.b16 %v3168
    %v3345 = vunpack.c.l.b16 %v3169
    %v3346 = vunpack.c.h.b16 %v3169
    %v3347 = vunpack.c.l.b16 %v3170
    %v3348 = vunpack.c.h.b16 %v3170
    %v3349 = vunpack.c.l.b16 %v3171
    %v3350 = vunpack.c.h.b16 %v3171
    %v3351 = vunpack.c.l.b16 %v3172
    %v3352 = vunpack.c.h.b16 %v3172
    %v3353 = vunpack.c.l.b16 %v3173
    %v3354 = vunpack.c.h.b16 %v3173
    %v3355 = vpack.c.b16 %v3307, %v3291
    %v3356 = vpack.c.b16 %v3308, %v3292
    %v3357 = vpack.c.b16 %v3309, %v3293
    %v3358 = vpack.c.b16 %v3310, %v3294
    %v3359 = vpack.c.b16 %v3311, %v3295
    %v3360 = vpack.c.b16 %v3312, %v3296
    %v3361 = vpack.c.b16 %v3313, %v3297
    %v3362 = vpack.c.b16 %v3314, %v3298
    %v3363 = vpack.c.b16 %v3315, %v3299
    %v3364 = vpack.c.b16 %v3316, %v3300
    %v3365 = vpack.c.b16 %v3317, %v3301
    %v3366 = vpack.c.b16 %v3318, %v3302
    %v3367 = vpack.c.b16 %v3319, %v3303
    %v3368 = vpack.c.b16 %v3320, %v3304
    %v3369 = vpack.c.b16 %v3321, %v3305
    %v3370 = vpack.c.b16 %v3322, %v3306
    %v3371 = vpack.c.b16 %v3339, %v3323
    %v3372 = vpack.c.b16 %v3340, %v3324
    %v3373 = vpack.c.b16 %v3341, %v3325
    %v3374 = vpack.c.b16 %v3342, %v3326
    %v3375 = vpack.c.b16 %v3343, %v3327
    %v3376 = vpack.c.b16 %v3344, %v3328
    %v3377 = vpack.c.b16 %v3345, %v3329
    %v3378 = vpack.c.b16 %v3346, %v3330
    %v3379 = vpack.c.b16 %v3347, %v3331
    %v3380 = vpack.c.b16 %v3348, %v3332
    %v3381 = vpack.c.b16 %v3349, %v3333
    %v3382 = vpack.c.b16 %v3350, %v3334
    %v3383 = vpack.c.b16 %v3351, %v3335
    %v3384 = vpack.c.b16 %v3352, %v3336
    %v3385 = vpack.c.b16 %v3353, %v3337
    %v3386 = vpack.c.b16 %v3354, %v3338
    %v3420 = vsel %vm248, %v3140, 0
    %3422 = vmatprep.subr.bf16.mxu0 %v3356
    %3423 = vmatpush1.bf16.msra.mxu0 %v3355
    %3424 = vmatprep.subr.bf16.mxu0 %v3372
    %3425 = vmatpush1.bf16.msra.mxu0 %v3371
    %3426 = vmatprep.subr.bf16.mxu0 0
    %3427 = vmatpush1.bf16.msra.mxu0 0
    %3428 = vmatprep.subr.bf16.mxu0 0
    %3429 = vmatpush1.bf16.msra.mxu0 0
    %3430 = vmatprep.subr.bf16.mxu0 0
    %3431 = vmatpush1.bf16.msra.mxu0 0
    %3432 = vmatprep.subr.bf16.mxu0 0
    %3433 = vmatpush1.bf16.msra.mxu0 0
    %3434 = vmatprep.subr.bf16.mxu0 0
    %3435 = vmatpush1.bf16.msra.mxu0 0
    %3436 = vmatprep.subr.bf16.mxu0 0
    %3437 = vmatpush1.bf16.msra.mxu0 0
    %3438 = vmatprep.subr.bf16.mxu0 0
    %3439 = vmatpush1.bf16.msra.mxu0 0
    %3440 = vmatprep.subr.bf16.mxu0 0
    %3441 = vmatpush1.bf16.msra.mxu0 0
    %3442 = vmatprep.subr.bf16.mxu0 0
    %3443 = vmatpush1.bf16.msra.mxu0 0
    %3444 = vmatprep.subr.bf16.mxu0 0
    %3445 = vmatpush1.bf16.msra.mxu0 0
    %3446 = vmatprep.subr.bf16.mxu0 0
    %3447 = vmatpush1.bf16.msra.mxu0 0
    %3448 = vmatprep.subr.bf16.mxu0 0
    %3449 = vmatpush1.bf16.msra.mxu0 0
    %3450 = vmatprep.subr.bf16.mxu0 0
    %3451 = vmatpush1.bf16.msra.mxu0 0
    %3452 = vmatprep.subr.bf16.mxu0 0
    %3453 = vmatpush1.bf16.msra.mxu0 0
    %3454 = vmatprep.mubr.bf16.mxu0 0
    %3455 = vmatmul.mubr.bf16.gmra.mrb[0].mxu0 %v3420
    %v3456 = vpop.f32.mrb[0].mxu0
    %v3457 = vadd.f32 %v3182, %v3456
    %v3458 = vpop.f32.mrb[0].mxu0
    %v3459 = vadd.f32 %v3186, %v3458
    %v3460 = vpop.f32.mrb[0].mxu0
    %v3461 = vpop.f32.mrb[0].mxu0
    %3462 = vdwg.mxu0
    %3463 = vmatprep.subr.bf16.mxu0 %v3358
    %3464 = vmatpush1.bf16.msra.mxu0 %v3357
    %3465 = vmatprep.subr.bf16.mxu0 %v3374
    %3466 = vmatpush1.bf16.msra.mxu0 %v3373
    %3467 = vmatprep.subr.bf16.mxu0 0
    %3468 = vmatpush1.bf16.msra.mxu0 0
    %3469 = vmatprep.subr.bf16.mxu0 0
    %3470 = vmatpush1.bf16.msra.mxu0 0
    %3471 = vmatprep.subr.bf16.mxu0 0
    %3472 = vmatpush1.bf16.msra.mxu0 0
    %3473 = vmatprep.subr.bf16.mxu0 0
    %3474 = vmatpush1.bf16.msra.mxu0 0
    %3475 = vmatprep.subr.bf16.mxu0 0
    %3476 = vmatpush1.bf16.msra.mxu0 0
    %3477 = vmatprep.subr.bf16.mxu0 0
    %3478 = vmatpush1.bf16.msra.mxu0 0
    %3479 = vmatprep.subr.bf16.mxu0 0
    %3480 = vmatpush1.bf16.msra.mxu0 0
    %3481 = vmatprep.subr.bf16.mxu0 0
    %3482 = vmatpush1.bf16.msra.mxu0 0
    %3483 = vmatprep.subr.bf16.mxu0 0
    %3484 = vmatpush1.bf16.msra.mxu0 0
    %3485 = vmatprep.subr.bf16.mxu0 0
    %3486 = vmatpush1.bf16.msra.mxu0 0
    %3487 = vmatprep.subr.bf16.mxu0 0
    %3488 = vmatpush1.bf16.msra.mxu0 0
    %3489 = vmatprep.subr.bf16.mxu0 0
    %3490 = vmatpush1.bf16.msra.mxu0 0
    %3491 = vmatprep.subr.bf16.mxu0 0
    %3492 = vmatpush1.bf16.msra.mxu0 0
    %3493 = vmatprep.subr.bf16.mxu0 0
    %3494 = vmatpush1.bf16.msra.mxu0 0
    %3495 = vmatprep.mubr.bf16.mxu0 0
    %3496 = vmatmul.mubr.bf16.gmra.mrb[0].mxu0 %v3420
    %v3497 = vpop.f32.mrb[0].mxu0
    %v3498 = vadd.f32 %v3190, %v3497
    %v3499 = vpop.f32.mrb[0].mxu0
    %v3500 = vadd.f32 %v3194, %v3499
    %v3501 = vpop.f32.mrb[0].mxu0
    %v3502 = vpop.f32.mrb[0].mxu0
    %3503 = vdwg.mxu0
    %3504 = vmatprep.subr.bf16.mxu0 %v3360
    %3505 = vmatpush1.bf16.msra.mxu0 %v3359
    %3506 = vmatprep.subr.bf16.mxu0 %v3376
    %3507 = vmatpush1.bf16.msra.mxu0 %v3375
    %3508 = vmatprep.subr.bf16.mxu0 0
    %3509 = vmatpush1.bf16.msra.mxu0 0
    %3510 = vmatprep.subr.bf16.mxu0 0
    %3511 = vmatpush1.bf16.msra.mxu0 0
    %3512 = vmatprep.subr.bf16.mxu0 0
    %3513 = vmatpush1.bf16.msra.mxu0 0
    %3514 = vmatprep.subr.bf16.mxu0 0
    %3515 = vmatpush1.bf16.msra.mxu0 0
    %3516 = vmatprep.subr.bf16.mxu0 0
    %3517 = vmatpush1.bf16.msra.mxu0 0
    %3518 = vmatprep.subr.bf16.mxu0 0
    %3519 = vmatpush1.bf16.msra.mxu0 0
    %3520 = vmatprep.subr.bf16.mxu0 0
    %3521 = vmatpush1.bf16.msra.mxu0 0
    %3522 = vmatprep.subr.bf16.mxu0 0
    %3523 = vmatpush1.bf16.msra.mxu0 0
    %3524 = vmatprep.subr.bf16.mxu0 0
    %3525 = vmatpush1.bf16.msra.mxu0 0
    %3526 = vmatprep.subr.bf16.mxu0 0
    %3527 = vmatpush1.bf16.msra.mxu0 0
    %3528 = vmatprep.subr.bf16.mxu0 0
    %3529 = vmatpush1.bf16.msra.mxu0 0
    %3530 = vmatprep.subr.bf16.mxu0 0
    %3531 = vmatpush1.bf16.msra.mxu0 0
    %3532 = vmatprep.subr.bf16.mxu0 0
    %3533 = vmatpush1.bf16.msra.mxu0 0
    %3534 = vmatprep.subr.bf16.mxu0 0
    %3535 = vmatpush1.bf16.msra.mxu0 0
    %3536 = vmatprep.mubr.bf16.mxu0 0
    %3537 = vmatmul.mubr.bf16.gmra.mrb[0].mxu0 %v3420
    %v3538 = vpop.f32.mrb[0].mxu0
    %v3539 = vadd.f32 %v3198, %v3538
    %v3540 = vpop.f32.mrb[0].mxu0
    %v3541 = vadd.f32 %v3202, %v3540
    %v3542 = vpop.f32.mrb[0].mxu0
    %v3543 = vpop.f32.mrb[0].mxu0
    %3544 = vdwg.mxu0
    %3545 = vmatprep.subr.bf16.mxu0 %v3362
    %3546 = vmatpush1.bf16.msra.mxu0 %v3361
    %3547 = vmatprep.subr.bf16.mxu0 %v3378
    %3548 = vmatpush1.bf16.msra.mxu0 %v3377
    %3549 = vmatprep.subr.bf16.mxu0 0
    %3550 = vmatpush1.bf16.msra.mxu0 0
    %3551 = vmatprep.subr.bf16.mxu0 0
    %3552 = vmatpush1.bf16.msra.mxu0 0
    %3553 = vmatprep.subr.bf16.mxu0 0
    %3554 = vmatpush1.bf16.msra.mxu0 0
    %3555 = vmatprep.subr.bf16.mxu0 0
    %3556 = vmatpush1.bf16.msra.mxu0 0
    %3557 = vmatprep.subr.bf16.mxu0 0
    %3558 = vmatpush1.bf16.msra.mxu0 0
    %3559 = vmatprep.subr.bf16.mxu0 0
    %3560 = vmatpush1.bf16.msra.mxu0 0
    %3561 = vmatprep.subr.bf16.mxu0 0
    %3562 = vmatpush1.bf16.msra.mxu0 0
    %3563 = vmatprep.subr.bf16.mxu0 0
    %3564 = vmatpush1.bf16.msra.mxu0 0
    %3565 = vmatprep.subr.bf16.mxu0 0
    %3566 = vmatpush1.bf16.msra.mxu0 0
    %3567 = vmatprep.subr.bf16.mxu0 0
    %3568 = vmatpush1.bf16.msra.mxu0 0
    %3569 = vmatprep.subr.bf16.mxu0 0
    %3570 = vmatpush1.bf16.msra.mxu0 0
    %3571 = vmatprep.subr.bf16.mxu0 0
    %3572 = vmatpush1.bf16.msra.mxu0 0
    %3573 = vmatprep.subr.bf16.mxu0 0
    %3574 = vmatpush1.bf16.msra.mxu0 0
    %3575 = vmatprep.subr.bf16.mxu0 0
    %3576 = vmatpush1.bf16.msra.mxu0 0
    %3577 = vmatprep.mubr.bf16.mxu0 0
    %3578 = vmatmul.mubr.bf16.gmra.mrb[0].mxu0 %v3420
    %v3579 = vpop.f32.mrb[0].mxu0
    %v3580 = vadd.f32 %v3206, %v3579
    %v3581 = vpop.f32.mrb[0].mxu0
    %v3582 = vadd.f32 %v3210, %v3581
    %v3583 = vpop.f32.mrb[0].mxu0
    %v3584 = vpop.f32.mrb[0].mxu0
    %3585 = vdwg.mxu0
    %3586 = vmatprep.subr.bf16.mxu0 %v3364
    %3587 = vmatpush1.bf16.msra.mxu0 %v3363
    %3588 = vmatprep.subr.bf16.mxu0 %v3380
    %3589 = vmatpush1.bf16.msra.mxu0 %v3379
    %3590 = vmatprep.subr.bf16.mxu0 0
    %3591 = vmatpush1.bf16.msra.mxu0 0
    %3592 = vmatprep.subr.bf16.mxu0 0
    %3593 = vmatpush1.bf16.msra.mxu0 0
    %3594 = vmatprep.subr.bf16.mxu0 0
    %3595 = vmatpush1.bf16.msra.mxu0 0
    %3596 = vmatprep.subr.bf16.mxu0 0
    %3597 = vmatpush1.bf16.msra.mxu0 0
    %3598 = vmatprep.subr.bf16.mxu0 0
    %3599 = vmatpush1.bf16.msra.mxu0 0
    %3600 = vmatprep.subr.bf16.mxu0 0
    %3601 = vmatpush1.bf16.msra.mxu0 0
    %3602 = vmatprep.subr.bf16.mxu0 0
    %3603 = vmatpush1.bf16.msra.mxu0 0
    %3604 = vmatprep.subr.bf16.mxu0 0
    %3605 = vmatpush1.bf16.msra.mxu0 0
    %3606 = vmatprep.subr.bf16.mxu0 0
    %3607 = vmatpush1.bf16.msra.mxu0 0
    %3608 = vmatprep.subr.bf16.mxu0 0
    %3609 = vmatpush1.bf16.msra.mxu0 0
    %3610 = vmatprep.subr.bf16.mxu0 0
    %3611 = vmatpush1.bf16.msra.mxu0 0
    %3612 = vmatprep.subr.bf16.mxu0 0
    %3613 = vmatpush1.bf16.msra.mxu0 0
    %3614 = vmatprep.subr.bf16.mxu0 0
    %3615 = vmatpush1.bf16.msra.mxu0 0
    %3616 = vmatprep.subr.bf16.mxu0 0
    %3617 = vmatpush1.bf16.msra.mxu0 0
    %3618 = vmatprep.mubr.bf16.mxu0 0
    %3619 = vmatmul.mubr.bf16.gmra.mrb[0].mxu0 %v3420
    %v3620 = vpop.f32.mrb[0].mxu0
    %v3621 = vadd.f32 %v3214, %v3620
    %v3622 = vpop.f32.mrb[0].mxu0
    %v3623 = vadd.f32 %v3218, %v3622
    %v3624 = vpop.f32.mrb[0].mxu0
    %v3625 = vpop.f32.mrb[0].mxu0
    %3626 = vdwg.mxu0
    %3627 = vmatprep.subr.bf16.mxu0 %v3366
    %3628 = vmatpush1.bf16.msra.mxu0 %v3365
    %3629 = vmatprep.subr.bf16.mxu0 %v3382
    %3630 = vmatpush1.bf16.msra.mxu0 %v3381
    %3631 = vmatprep.subr.bf16.mxu0 0
    %3632 = vmatpush1.bf16.msra.mxu0 0
    %3633 = vmatprep.subr.bf16.mxu0 0
    %3634 = vmatpush1.bf16.msra.mxu0 0
    %3635 = vmatprep.subr.bf16.mxu0 0
    %3636 = vmatpush1.bf16.msra.mxu0 0
    %3637 = vmatprep.subr.bf16.mxu0 0
    %3638 = vmatpush1.bf16.msra.mxu0 0
    %3639 = vmatprep.subr.bf16.mxu0 0
    %3640 = vmatpush1.bf16.msra.mxu0 0
    %3641 = vmatprep.subr.bf16.mxu0 0
    %3642 = vmatpush1.bf16.msra.mxu0 0
    %3643 = vmatprep.subr.bf16.mxu0 0
    %3644 = vmatpush1.bf16.msra.mxu0 0
    %3645 = vmatprep.subr.bf16.mxu0 0
    %3646 = vmatpush1.bf16.msra.mxu0 0
    %3647 = vmatprep.subr.bf16.mxu0 0
    %3648 = vmatpush1.bf16.msra.mxu0 0
    %3649 = vmatprep.subr.bf16.mxu0 0
    %3650 = vmatpush1.bf16.msra.mxu0 0
    %3651 = vmatprep.subr.bf16.mxu0 0
    %3652 = vmatpush1.bf16.msra.mxu0 0
    %3653 = vmatprep.subr.bf16.mxu0 0
    %3654 = vmatpush1.bf16.msra.mxu0 0
    %3655 = vmatprep.subr.bf16.mxu0 0
    %3656 = vmatpush1.bf16.msra.mxu0 0
    %3657 = vmatprep.subr.bf16.mxu0 0
    %3658 = vmatpush1.bf16.msra.mxu0 0
    %3659 = vmatprep.mubr.bf16.mxu0 0
    %3660 = vmatmul.mubr.bf16.gmra.mrb[0].mxu0 %v3420
    %v3661 = vpop.f32.mrb[0].mxu0
    %v3662 = vadd.f32 %v3222, %v3661
    %v3663 = vpop.f32.mrb[0].mxu0
    %v3664 = vadd.f32 %v3226, %v3663
    %v3665 = vpop.f32.mrb[0].mxu0
    %v3666 = vpop.f32.mrb[0].mxu0
    %3667 = vdwg.mxu0
    %3668 = vmatprep.subr.bf16.mxu0 %v3368
    %3669 = vmatpush1.bf16.msra.mxu0 %v3367
    %3670 = vmatprep.subr.bf16.mxu0 %v3384
    %3671 = vmatpush1.bf16.msra.mxu0 %v3383
    %3672 = vmatprep.subr.bf16.mxu0 0
    %3673 = vmatpush1.bf16.msra.mxu0 0
    %3674 = vmatprep.subr.bf16.mxu0 0
    %3675 = vmatpush1.bf16.msra.mxu0 0
    %3676 = vmatprep.subr.bf16.mxu0 0
    %3677 = vmatpush1.bf16.msra.mxu0 0
    %3678 = vmatprep.subr.bf16.mxu0 0
    %3679 = vmatpush1.bf16.msra.mxu0 0
    %3680 = vmatprep.subr.bf16.mxu0 0
    %3681 = vmatpush1.bf16.msra.mxu0 0
    %3682 = vmatprep.subr.bf16.mxu0 0
    %3683 = vmatpush1.bf16.msra.mxu0 0
    %3684 = vmatprep.subr.bf16.mxu0 0
    %3685 = vmatpush1.bf16.msra.mxu0 0
    %3686 = vmatprep.subr.bf16.mxu0 0
    %3687 = vmatpush1.bf16.msra.mxu0 0
    %3688 = vmatprep.subr.bf16.mxu0 0
    %3689 = vmatpush1.bf16.msra.mxu0 0
    %3690 = vmatprep.subr.bf16.mxu0 0
    %3691 = vmatpush1.bf16.msra.mxu0 0
    %3692 = vmatprep.subr.bf16.mxu0 0
    %3693 = vmatpush1.bf16.msra.mxu0 0
    %3694 = vmatprep.subr.bf16.mxu0 0
    %3695 = vmatpush1.bf16.msra.mxu0 0
    %3696 = vmatprep.subr.bf16.mxu0 0
    %3697 = vmatpush1.bf16.msra.mxu0 0
    %3698 = vmatprep.subr.bf16.mxu0 0
    %3699 = vmatpush1.bf16.msra.mxu0 0
    %3700 = vmatprep.mubr.bf16.mxu0 0
    %3701 = vmatmul.mubr.bf16.gmra.mrb[0].mxu0 %v3420
    %v3702 = vpop.f32.mrb[0].mxu0
    %v3703 = vadd.f32 %v3230, %v3702
    %v3704 = vpop.f32.mrb[0].mxu0
    %v3705 = vadd.f32 %v3234, %v3704
    %v3706 = vpop.f32.mrb[0].mxu0
    %v3707 = vpop.f32.mrb[0].mxu0
    %3708 = vdwg.mxu0
    %3709 = vmatprep.subr.bf16.mxu0 %v3370
    %3710 = vmatpush1.bf16.msra.mxu0 %v3369
    %3711 = vmatprep.subr.bf16.mxu0 %v3386
    %3712 = vmatpush1.bf16.msra.mxu0 %v3385
    %3713 = vmatprep.subr.bf16.mxu0 0
    %3714 = vmatpush1.bf16.msra.mxu0 0
    %3715 = vmatprep.subr.bf16.mxu0 0
    %3716 = vmatpush1.bf16.msra.mxu0 0
    %3717 = vmatprep.subr.bf16.mxu0 0
    %3718 = vmatpush1.bf16.msra.mxu0 0
    %3719 = vmatprep.subr.bf16.mxu0 0
    %3720 = vmatpush1.bf16.msra.mxu0 0
    %3721 = vmatprep.subr.bf16.mxu0 0
    %3722 = vmatpush1.bf16.msra.mxu0 0
    %3723 = vmatprep.subr.bf16.mxu0 0
    %3724 = vmatpush1.bf16.msra.mxu0 0
    %3725 = vmatprep.subr.bf16.mxu0 0
    %3726 = vmatpush1.bf16.msra.mxu0 0
    %3727 = vmatprep.subr.bf16.mxu0 0
    %3728 = vmatpush1.bf16.msra.mxu0 0
    %3729 = vmatprep.subr.bf16.mxu0 0
    %3730 = vmatpush1.bf16.msra.mxu0 0
    %3731 = vmatprep.subr.bf16.mxu0 0
    %3732 = vmatpush1.bf16.msra.mxu0 0
    %3733 = vmatprep.subr.bf16.mxu0 0
    %3734 = vmatpush1.bf16.msra.mxu0 0
    %3735 = vmatprep.subr.bf16.mxu0 0
    %3736 = vmatpush1.bf16.msra.mxu0 0
    %3737 = vmatprep.subr.bf16.mxu0 0
    %3738 = vmatpush1.bf16.msra.mxu0 0
    %3739 = vmatprep.subr.bf16.mxu0 0
    %3740 = vmatpush1.bf16.msra.mxu0 0
    %3741 = vmatprep.mubr.bf16.mxu0 0
    %3742 = vmatmul.mubr.bf16.gmra.mrb[0].mxu0 %v3420
    %v3743 = vpop.f32.mrb[0].mxu0
    %v3744 = vadd.f32 %v3238, %v3743
    %v3745 = vpop.f32.mrb[0].mxu0
    %v3746 = vadd.f32 %v3242, %v3745
    %v3747 = vpop.f32.mrb[0].mxu0
    %v3748 = vpop.f32.mrb[0].mxu0
    %3749 = vdwg.mxu0
    %v3750 = vmax.f32 %v3457, 0.0
    %v3751 = vmax.f32 %v3459, 0.0
    %v3752 = vmax.f32 %v3498, 0.0
    %v3753 = vmax.f32 %v3500, 0.0
    %v3754 = vmax.f32 %v3539, 0.0
    %v3755 = vmax.f32 %v3541, 0.0
    %v3756 = vmax.f32 %v3580, 0.0
    %v3757 = vmax.f32 %v3582, 0.0
    %v3758 = vmax.f32 %v3621, 0.0
    %v3759 = vmax.f32 %v3623, 0.0
    %v3760 = vmax.f32 %v3662, 0.0
    %v3761 = vmax.f32 %v3664, 0.0
    %v3762 = vmax.f32 %v3703, 0.0
    %v3763 = vmax.f32 %v3705, 0.0
    %v3764 = vmax.f32 %v3744, 0.0
    %v3765 = vmax.f32 %v3746, 0.0
    %v3766 = vpack.c.bf16 %v3750, %v3750
    %v3767 = vpack.c.bf16 %v3751, %v3751
    %v3768 = vpack.c.bf16 %v3752, %v3752
    %v3769 = vpack.c.bf16 %v3753, %v3753
    %v3770 = vpack.c.bf16 %v3754, %v3754
    %v3771 = vpack.c.bf16 %v3755, %v3755
    %v3772 = vpack.c.bf16 %v3756, %v3756
    %v3773 = vpack.c.bf16 %v3757, %v3757
    %v3774 = vpack.c.bf16 %v3758, %v3758
    %v3775 = vpack.c.bf16 %v3759, %v3759
    %v3776 = vpack.c.bf16 %v3760, %v3760
    %v3777 = vpack.c.bf16 %v3761, %v3761
    %v3778 = vpack.c.bf16 %v3762, %v3762
    %v3779 = vpack.c.bf16 %v3763, %v3763
    %v3780 = vpack.c.bf16 %v3764, %v3764
    %v3781 = vpack.c.bf16 %v3765, %v3765
    %s3782 = scalar_lea.vmem %s16, 1024
    %v3783 = vld [vmem:[%s3782] sm:$0xf]
    %v3784 = vld [vmem:[%s3782 + $0x4] sm:$0xf]
    %v3785 = vld [vmem:[%s3782 + $0x8] sm:$0xf]
    %v3786 = vld [vmem:[%s3782 + $0xc] sm:$0xf]
    %v3787 = vld [vmem:[%s3782 + $0x10] sm:$0xf]
    %v3788 = vld [vmem:[%s3782 + $0x14] sm:$0xf]
    %v3789 = vld [vmem:[%s3782 + $0x18] sm:$0xf]
    %v3790 = vld [vmem:[%s3782 + $0x1c] sm:$0xf]
    %v3791 = vld [vmem:[%s3782 + $0x20] sm:$0xf]
    %v3792 = vld [vmem:[%s3782 + $0x24] sm:$0xf]
    %v3793 = vld [vmem:[%s3782 + $0x28] sm:$0xf]
    %v3794 = vld [vmem:[%s3782 + $0x2c] sm:$0xf]
    %v3795 = vld [vmem:[%s3782 + $0x30] sm:$0xf]
    %v3796 = vld [vmem:[%s3782 + $0x34] sm:$0xf]
    %v3797 = vld [vmem:[%s3782 + $0x38] sm:$0xf]
    %v3798 = vld [vmem:[%s3782 + $0x3c] sm:$0xf]
    %v3799 = vld [vmem:[%s3782 + $0x40] sm:$0xf]
    %v3800 = vld [vmem:[%s3782 + $0x44] sm:$0xf]
    %v3801 = vld [vmem:[%s3782 + $0x48] sm:$0xf]
    %v3802 = vld [vmem:[%s3782 + $0x4c] sm:$0xf]
    %v3803 = vld [vmem:[%s3782 + $0x50] sm:$0xf]
    %v3804 = vld [vmem:[%s3782 + $0x54] sm:$0xf]
    %v3805 = vld [vmem:[%s3782 + $0x58] sm:$0xf]
    %v3806 = vld [vmem:[%s3782 + $0x5c] sm:$0xf]
    %v3807 = vld [vmem:[%s3782 + $0x60] sm:$0xf]
    %v3808 = vld [vmem:[%s3782 + $0x64] sm:$0xf]
    %v3809 = vld [vmem:[%s3782 + $0x68] sm:$0xf]
    %v3810 = vld [vmem:[%s3782 + $0x6c] sm:$0xf]
    %v3811 = vld [vmem:[%s3782 + $0x70] sm:$0xf]
    %v3812 = vld [vmem:[%s3782 + $0x74] sm:$0xf]
    %v3813 = vld [vmem:[%s3782 + $0x78] sm:$0xf]
    %v3814 = vld [vmem:[%s3782 + $0x7c] sm:$0xf]
    %v3815 = vld [vmem:[%s3782 + $0x80] sm:$0xf]
    %v3816 = vld [vmem:[%s3782 + $0x84] sm:$0xf]
    %v3817 = vld [vmem:[%s3782 + $0x88] sm:$0xf]
    %v3818 = vld [vmem:[%s3782 + $0x8c] sm:$0xf]
    %v3819 = vld [vmem:[%s3782 + $0x90] sm:$0xf]
    %v3820 = vld [vmem:[%s3782 + $0x94] sm:$0xf]
    %v3821 = vld [vmem:[%s3782 + $0x98] sm:$0xf]
    %v3822 = vld [vmem:[%s3782 + $0x9c] sm:$0xf]
    %v3823 = vld [vmem:[%s3782 + $0xa0] sm:$0xf]
    %v3824 = vld [vmem:[%s3782 + $0xa4] sm:$0xf]
    %v3825 = vld [vmem:[%s3782 + $0xa8] sm:$0xf]
    %v3826 = vld [vmem:[%s3782 + $0xac] sm:$0xf]
    %v3827 = vld [vmem:[%s3782 + $0xb0] sm:$0xf]
    %v3828 = vld [vmem:[%s3782 + $0xb4] sm:$0xf]
    %v3829 = vld [vmem:[%s3782 + $0xb8] sm:$0xf]
    %v3830 = vld [vmem:[%s3782 + $0xbc] sm:$0xf]
    %v3831 = vld [vmem:[%s3782 + $0xc0] sm:$0xf]
    %v3832 = vld [vmem:[%s3782 + $0xc4] sm:$0xf]
    %v3833 = vld [vmem:[%s3782 + $0xc8] sm:$0xf]
    %v3834 = vld [vmem:[%s3782 + $0xcc] sm:$0xf]
    %v3835 = vld [vmem:[%s3782 + $0xd0] sm:$0xf]
    %v3836 = vld [vmem:[%s3782 + $0xd4] sm:$0xf]
    %v3837 = vld [vmem:[%s3782 + $0xd8] sm:$0xf]
    %v3838 = vld [vmem:[%s3782 + $0xdc] sm:$0xf]
    %v3839 = vld [vmem:[%s3782 + $0xe0] sm:$0xf]
    %v3840 = vld [vmem:[%s3782 + $0xe4] sm:$0xf]
    %v3841 = vld [vmem:[%s3782 + $0xe8] sm:$0xf]
    %v3842 = vld [vmem:[%s3782 + $0xec] sm:$0xf]
    %v3843 = vld [vmem:[%s3782 + $0xf0] sm:$0xf]
    %v3844 = vld [vmem:[%s3782 + $0xf4] sm:$0xf]
    %v3845 = vld [vmem:[%s3782 + $0xf8] sm:$0xf]
    %v3846 = vld [vmem:[%s3782 + $0xfc] sm:$0xf]
    %v3847 = vld [vmem:[%s3782 + $0x100] sm:$0xf]
    %v3848 = vld [vmem:[%s3782 + $0x104] sm:$0xf]
    %v3849 = vld [vmem:[%s3782 + $0x108] sm:$0xf]
    %v3850 = vld [vmem:[%s3782 + $0x10c] sm:$0xf]
    %v3851 = vld [vmem:[%s3782 + $0x110] sm:$0xf]
    %v3852 = vld [vmem:[%s3782 + $0x114] sm:$0xf]
    %v3853 = vld [vmem:[%s3782 + $0x118] sm:$0xf]
    %v3854 = vld [vmem:[%s3782 + $0x11c] sm:$0xf]
    %v3855 = vld [vmem:[%s3782 + $0x120] sm:$0xf]
    %v3856 = vld [vmem:[%s3782 + $0x124] sm:$0xf]
    %v3857 = vld [vmem:[%s3782 + $0x128] sm:$0xf]
    %v3858 = vld [vmem:[%s3782 + $0x12c] sm:$0xf]
    %v3859 = vld [vmem:[%s3782 + $0x130] sm:$0xf]
    %v3860 = vld [vmem:[%s3782 + $0x134] sm:$0xf]
    %v3861 = vld [vmem:[%s3782 + $0x138] sm:$0xf]
    %v3862 = vld [vmem:[%s3782 + $0x13c] sm:$0xf]
    %v3863 = vld [vmem:[%s3782 + $0x140] sm:$0xf]
    %v3864 = vld [vmem:[%s3782 + $0x144] sm:$0xf]
    %v3865 = vld [vmem:[%s3782 + $0x148] sm:$0xf]
    %v3866 = vld [vmem:[%s3782 + $0x14c] sm:$0xf]
    %v3867 = vld [vmem:[%s3782 + $0x150] sm:$0xf]
    %v3868 = vld [vmem:[%s3782 + $0x154] sm:$0xf]
    %v3869 = vld [vmem:[%s3782 + $0x158] sm:$0xf]
    %v3870 = vld [vmem:[%s3782 + $0x15c] sm:$0xf]
    %v3871 = vld [vmem:[%s3782 + $0x160] sm:$0xf]
    %v3872 = vld [vmem:[%s3782 + $0x164] sm:$0xf]
    %v3873 = vld [vmem:[%s3782 + $0x168] sm:$0xf]
    %v3874 = vld [vmem:[%s3782 + $0x16c] sm:$0xf]
    %v3875 = vld [vmem:[%s3782 + $0x170] sm:$0xf]
    %v3876 = vld [vmem:[%s3782 + $0x174] sm:$0xf]
    %v3877 = vld [vmem:[%s3782 + $0x178] sm:$0xf]
    %v3878 = vld [vmem:[%s3782 + $0x17c] sm:$0xf]
    %v3879 = vld [vmem:[%s3782 + $0x180] sm:$0xf]
    %v3880 = vld [vmem:[%s3782 + $0x184] sm:$0xf]
    %v3881 = vld [vmem:[%s3782 + $0x188] sm:$0xf]
    %v3882 = vld [vmem:[%s3782 + $0x18c] sm:$0xf]
    %v3883 = vld [vmem:[%s3782 + $0x190] sm:$0xf]
    %v3884 = vld [vmem:[%s3782 + $0x194] sm:$0xf]
    %v3885 = vld [vmem:[%s3782 + $0x198] sm:$0xf]
    %v3886 = vld [vmem:[%s3782 + $0x19c] sm:$0xf]
    %v3887 = vld [vmem:[%s3782 + $0x1a0] sm:$0xf]
    %v3888 = vld [vmem:[%s3782 + $0x1a4] sm:$0xf]
    %v3889 = vld [vmem:[%s3782 + $0x1a8] sm:$0xf]
    %v3890 = vld [vmem:[%s3782 + $0x1ac] sm:$0xf]
    %v3891 = vld [vmem:[%s3782 + $0x1b0] sm:$0xf]
    %v3892 = vld [vmem:[%s3782 + $0x1b4] sm:$0xf]
    %v3893 = vld [vmem:[%s3782 + $0x1b8] sm:$0xf]
    %v3894 = vld [vmem:[%s3782 + $0x1bc] sm:$0xf]
    %v3895 = vld [vmem:[%s3782 + $0x1c0] sm:$0xf]
    %v3896 = vld [vmem:[%s3782 + $0x1c4] sm:$0xf]
    %v3897 = vld [vmem:[%s3782 + $0x1c8] sm:$0xf]
    %v3898 = vld [vmem:[%s3782 + $0x1cc] sm:$0xf]
    %v3899 = vld [vmem:[%s3782 + $0x1d0] sm:$0xf]
    %v3900 = vld [vmem:[%s3782 + $0x1d4] sm:$0xf]
    %v3901 = vld [vmem:[%s3782 + $0x1d8] sm:$0xf]
    %v3902 = vld [vmem:[%s3782 + $0x1dc] sm:$0xf]
    %v3903 = vld [vmem:[%s3782 + $0x1e0] sm:$0xf]
    %v3904 = vld [vmem:[%s3782 + $0x1e4] sm:$0xf]
    %v3905 = vld [vmem:[%s3782 + $0x1e8] sm:$0xf]
    %v3906 = vld [vmem:[%s3782 + $0x1ec] sm:$0xf]
    %v3907 = vld [vmem:[%s3782 + $0x1f0] sm:$0xf]
    %v3908 = vld [vmem:[%s3782 + $0x1f4] sm:$0xf]
    %v3909 = vld [vmem:[%s3782 + $0x1f8] sm:$0xf]
    %v3910 = vld [vmem:[%s3782 + $0x1fc] sm:$0xf]
    %v3911 = vld [vmem:[%s3782 + $0x200] sm:$0xf]
    %v3912 = vld [vmem:[%s3782 + $0x204] sm:$0xf]
    %v3913 = vld [vmem:[%s3782 + $0x208] sm:$0xf]
    %v3914 = vld [vmem:[%s3782 + $0x20c] sm:$0xf]
    %v3915 = vld [vmem:[%s3782 + $0x210] sm:$0xf]
    %v3916 = vld [vmem:[%s3782 + $0x214] sm:$0xf]
    %v3917 = vld [vmem:[%s3782 + $0x218] sm:$0xf]
    %v3918 = vld [vmem:[%s3782 + $0x21c] sm:$0xf]
    %v3919 = vld [vmem:[%s3782 + $0x220] sm:$0xf]
    %v3920 = vld [vmem:[%s3782 + $0x224] sm:$0xf]
    %v3921 = vld [vmem:[%s3782 + $0x228] sm:$0xf]
    %v3922 = vld [vmem:[%s3782 + $0x22c] sm:$0xf]
    %v3923 = vld [vmem:[%s3782 + $0x230] sm:$0xf]
    %v3924 = vld [vmem:[%s3782 + $0x234] sm:$0xf]
    %v3925 = vld [vmem:[%s3782 + $0x238] sm:$0xf]
    %v3926 = vld [vmem:[%s3782 + $0x23c] sm:$0xf]
    %v3927 = vld [vmem:[%s3782 + $0x240] sm:$0xf]
    %v3928 = vld [vmem:[%s3782 + $0x244] sm:$0xf]
    %v3929 = vld [vmem:[%s3782 + $0x248] sm:$0xf]
    %v3930 = vld [vmem:[%s3782 + $0x24c] sm:$0xf]
    %v3931 = vld [vmem:[%s3782 + $0x250] sm:$0xf]
    %v3932 = vld [vmem:[%s3782 + $0x254] sm:$0xf]
    %v3933 = vld [vmem:[%s3782 + $0x258] sm:$0xf]
    %v3934 = vld [vmem:[%s3782 + $0x25c] sm:$0xf]
    %v3935 = vld [vmem:[%s3782 + $0x260] sm:$0xf]
    %v3936 = vld [vmem:[%s3782 + $0x264] sm:$0xf]
    %v3937 = vld [vmem:[%s3782 + $0x268] sm:$0xf]
    %v3938 = vld [vmem:[%s3782 + $0x26c] sm:$0xf]
    %v3939 = vld [vmem:[%s3782 + $0x270] sm:$0xf]
    %v3940 = vld [vmem:[%s3782 + $0x274] sm:$0xf]
    %v3941 = vld [vmem:[%s3782 + $0x278] sm:$0xf]
    %v3942 = vld [vmem:[%s3782 + $0x27c] sm:$0xf]
    %v3943 = vld [vmem:[%s3782 + $0x280] sm:$0xf]
    %v3944 = vld [vmem:[%s3782 + $0x284] sm:$0xf]
    %v3945 = vld [vmem:[%s3782 + $0x288] sm:$0xf]
    %v3946 = vld [vmem:[%s3782 + $0x28c] sm:$0xf]
    %v3947 = vld [vmem:[%s3782 + $0x290] sm:$0xf]
    %v3948 = vld [vmem:[%s3782 + $0x294] sm:$0xf]
    %v3949 = vld [vmem:[%s3782 + $0x298] sm:$0xf]
    %v3950 = vld [vmem:[%s3782 + $0x29c] sm:$0xf]
    %v3951 = vld [vmem:[%s3782 + $0x2a0] sm:$0xf]
    %v3952 = vld [vmem:[%s3782 + $0x2a4] sm:$0xf]
    %v3953 = vld [vmem:[%s3782 + $0x2a8] sm:$0xf]
    %v3954 = vld [vmem:[%s3782 + $0x2ac] sm:$0xf]
    %v3955 = vld [vmem:[%s3782 + $0x2b0] sm:$0xf]
    %v3956 = vld [vmem:[%s3782 + $0x2b4] sm:$0xf]
    %v3957 = vld [vmem:[%s3782 + $0x2b8] sm:$0xf]
    %v3958 = vld [vmem:[%s3782 + $0x2bc] sm:$0xf]
    %v3959 = vld [vmem:[%s3782 + $0x2c0] sm:$0xf]
    %v3960 = vld [vmem:[%s3782 + $0x2c4] sm:$0xf]
    %v3961 = vld [vmem:[%s3782 + $0x2c8] sm:$0xf]
    %v3962 = vld [vmem:[%s3782 + $0x2cc] sm:$0xf]
    %v3963 = vld [vmem:[%s3782 + $0x2d0] sm:$0xf]
    %v3964 = vld [vmem:[%s3782 + $0x2d4] sm:$0xf]
    %v3965 = vld [vmem:[%s3782 + $0x2d8] sm:$0xf]
    %v3966 = vld [vmem:[%s3782 + $0x2dc] sm:$0xf]
    %v3967 = vld [vmem:[%s3782 + $0x2e0] sm:$0xf]
    %v3968 = vld [vmem:[%s3782 + $0x2e4] sm:$0xf]
    %v3969 = vld [vmem:[%s3782 + $0x2e8] sm:$0xf]
    %v3970 = vld [vmem:[%s3782 + $0x2ec] sm:$0xf]
    %v3971 = vld [vmem:[%s3782 + $0x2f0] sm:$0xf]
    %v3972 = vld [vmem:[%s3782 + $0x2f4] sm:$0xf]
    %v3973 = vld [vmem:[%s3782 + $0x2f8] sm:$0xf]
    %v3974 = vld [vmem:[%s3782 + $0x2fc] sm:$0xf]
    %v3975 = vld [vmem:[%s3782 + $0x300] sm:$0xf]
    %v3976 = vld [vmem:[%s3782 + $0x304] sm:$0xf]
    %v3977 = vld [vmem:[%s3782 + $0x308] sm:$0xf]
    %v3978 = vld [vmem:[%s3782 + $0x30c] sm:$0xf]
    %v3979 = vld [vmem:[%s3782 + $0x310] sm:$0xf]
    %v3980 = vld [vmem:[%s3782 + $0x314] sm:$0xf]
    %v3981 = vld [vmem:[%s3782 + $0x318] sm:$0xf]
    %v3982 = vld [vmem:[%s3782 + $0x31c] sm:$0xf]
    %v3983 = vld [vmem:[%s3782 + $0x320] sm:$0xf]
    %v3984 = vld [vmem:[%s3782 + $0x324] sm:$0xf]
    %v3985 = vld [vmem:[%s3782 + $0x328] sm:$0xf]
    %v3986 = vld [vmem:[%s3782 + $0x32c] sm:$0xf]
    %v3987 = vld [vmem:[%s3782 + $0x330] sm:$0xf]
    %v3988 = vld [vmem:[%s3782 + $0x334] sm:$0xf]
    %v3989 = vld [vmem:[%s3782 + $0x338] sm:$0xf]
    %v3990 = vld [vmem:[%s3782 + $0x33c] sm:$0xf]
    %v3991 = vld [vmem:[%s3782 + $0x340] sm:$0xf]
    %v3992 = vld [vmem:[%s3782 + $0x344] sm:$0xf]
    %v3993 = vld [vmem:[%s3782 + $0x348] sm:$0xf]
    %v3994 = vld [vmem:[%s3782 + $0x34c] sm:$0xf]
    %v3995 = vld [vmem:[%s3782 + $0x350] sm:$0xf]
    %v3996 = vld [vmem:[%s3782 + $0x354] sm:$0xf]
    %v3997 = vld [vmem:[%s3782 + $0x358] sm:$0xf]
    %v3998 = vld [vmem:[%s3782 + $0x35c] sm:$0xf]
    %v3999 = vld [vmem:[%s3782 + $0x360] sm:$0xf]
    %v4000 = vld [vmem:[%s3782 + $0x364] sm:$0xf]
    %v4001 = vld [vmem:[%s3782 + $0x368] sm:$0xf]
    %v4002 = vld [vmem:[%s3782 + $0x36c] sm:$0xf]
    %v4003 = vld [vmem:[%s3782 + $0x370] sm:$0xf]
    %v4004 = vld [vmem:[%s3782 + $0x374] sm:$0xf]
    %v4005 = vld [vmem:[%s3782 + $0x378] sm:$0xf]
    %v4006 = vld [vmem:[%s3782 + $0x37c] sm:$0xf]
    %v4007 = vld [vmem:[%s3782 + $0x380] sm:$0xf]
    %v4008 = vld [vmem:[%s3782 + $0x384] sm:$0xf]
    %v4009 = vld [vmem:[%s3782 + $0x388] sm:$0xf]
    %v4010 = vld [vmem:[%s3782 + $0x38c] sm:$0xf]
    %v4011 = vld [vmem:[%s3782 + $0x390] sm:$0xf]
    %v4012 = vld [vmem:[%s3782 + $0x394] sm:$0xf]
    %v4013 = vld [vmem:[%s3782 + $0x398] sm:$0xf]
    %v4014 = vld [vmem:[%s3782 + $0x39c] sm:$0xf]
    %v4015 = vld [vmem:[%s3782 + $0x3a0] sm:$0xf]
    %v4016 = vld [vmem:[%s3782 + $0x3a4] sm:$0xf]
    %v4017 = vld [vmem:[%s3782 + $0x3a8] sm:$0xf]
    %v4018 = vld [vmem:[%s3782 + $0x3ac] sm:$0xf]
    %v4019 = vld [vmem:[%s3782 + $0x3b0] sm:$0xf]
    %v4020 = vld [vmem:[%s3782 + $0x3b4] sm:$0xf]
    %v4021 = vld [vmem:[%s3782 + $0x3b8] sm:$0xf]
    %v4022 = vld [vmem:[%s3782 + $0x3bc] sm:$0xf]
    %v4023 = vld [vmem:[%s3782 + $0x3c0] sm:$0xf]
    %v4024 = vld [vmem:[%s3782 + $0x3c4] sm:$0xf]
    %v4025 = vld [vmem:[%s3782 + $0x3c8] sm:$0xf]
    %v4026 = vld [vmem:[%s3782 + $0x3cc] sm:$0xf]
    %v4027 = vld [vmem:[%s3782 + $0x3d0] sm:$0xf]
    %v4028 = vld [vmem:[%s3782 + $0x3d4] sm:$0xf]
    %v4029 = vld [vmem:[%s3782 + $0x3d8] sm:$0xf]
    %v4030 = vld [vmem:[%s3782 + $0x3dc] sm:$0xf]
    %v4031 = vld [vmem:[%s3782 + $0x3e0] sm:$0xf]
    %v4032 = vld [vmem:[%s3782 + $0x3e4] sm:$0xf]
    %v4033 = vld [vmem:[%s3782 + $0x3e8] sm:$0xf]
    %v4034 = vld [vmem:[%s3782 + $0x3ec] sm:$0xf]
    %v4035 = vld [vmem:[%s3782 + $0x3f0] sm:$0xf]
    %v4036 = vld [vmem:[%s3782 + $0x3f4] sm:$0xf]
    %v4037 = vld [vmem:[%s3782 + $0x3f8] sm:$0xf]
    %v4038 = vld [vmem:[%s3782 + $0x3fc] sm:$0xf]
    %s4039 = scalar_lea.vmem %s17, 1
    %v4040 = vld [vmem:[%s4039] sm:$0x1]
    %v4042 = vlaneseq
    %v4043 = vshrl.u32 %v4042, 7
    %v4044 = vsub.s32 0, %v4043
    %v4045 = vrot.slane %v4040, %v4044
    %v4303 = vunpack.c.l.b16 %v3783
    %v4304 = vunpack.c.l.b16 %v3784
    %v4305 = vunpack.c.l.b16 %v3785
    %v4306 = vunpack.c.l.b16 %v3786
    %v4307 = vunpack.c.l.b16 %v3787
    %v4308 = vunpack.c.l.b16 %v3788
    %v4309 = vunpack.c.l.b16 %v3789
    %v4310 = vunpack.c.l.b16 %v3790
    %v4311 = vunpack.c.l.b16 %v3791
    %v4312 = vunpack.c.l.b16 %v3792
    %v4313 = vunpack.c.l.b16 %v3793
    %v4314 = vunpack.c.l.b16 %v3794
    %v4315 = vunpack.c.l.b16 %v3795
    %v4316 = vunpack.c.l.b16 %v3796
    %v4317 = vunpack.c.l.b16 %v3797
    %v4318 = vunpack.c.l.b16 %v3798
    %v4319 = vunpack.c.l.b16 %v3799
    %v4320 = vunpack.c.l.b16 %v3800
    %v4321 = vunpack.c.l.b16 %v3801
    %v4322 = vunpack.c.l.b16 %v3802
    %v4323 = vunpack.c.l.b16 %v3803
    %v4324 = vunpack.c.l.b16 %v3804
    %v4325 = vunpack.c.l.b16 %v3805
    %v4326 = vunpack.c.l.b16 %v3806
    %v4327 = vunpack.c.l.b16 %v3807
    %v4328 = vunpack.c.l.b16 %v3808
    %v4329 = vunpack.c.l.b16 %v3809
    %v4330 = vunpack.c.l.b16 %v3810
    %v4331 = vunpack.c.l.b16 %v3811
    %v4332 = vunpack.c.l.b16 %v3812
    %v4333 = vunpack.c.l.b16 %v3813
    %v4334 = vunpack.c.l.b16 %v3814
    %v4335 = vunpack.c.l.b16 %v3815
    %v4336 = vunpack.c.l.b16 %v3816
    %v4337 = vunpack.c.l.b16 %v3817
    %v4338 = vunpack.c.l.b16 %v3818
    %v4339 = vunpack.c.l.b16 %v3819
    %v4340 = vunpack.c.l.b16 %v3820
    %v4341 = vunpack.c.l.b16 %v3821
    %v4342 = vunpack.c.l.b16 %v3822
    %v4343 = vunpack.c.l.b16 %v3823
    %v4344 = vunpack.c.l.b16 %v3824
    %v4345 = vunpack.c.l.b16 %v3825
    %v4346 = vunpack.c.l.b16 %v3826
    %v4347 = vunpack.c.l.b16 %v3827
    %v4348 = vunpack.c.l.b16 %v3828
    %v4349 = vunpack.c.l.b16 %v3829
    %v4350 = vunpack.c.l.b16 %v3830
    %v4351 = vunpack.c.l.b16 %v3831
    %v4352 = vunpack.c.l.b16 %v3832
    %v4353 = vunpack.c.l.b16 %v3833
    %v4354 = vunpack.c.l.b16 %v3834
    %v4355 = vunpack.c.l.b16 %v3835
    %v4356 = vunpack.c.l.b16 %v3836
    %v4357 = vunpack.c.l.b16 %v3837
    %v4358 = vunpack.c.l.b16 %v3838
    %v4359 = vunpack.c.l.b16 %v3839
    %v4360 = vunpack.c.l.b16 %v3840
    %v4361 = vunpack.c.l.b16 %v3841
    %v4362 = vunpack.c.l.b16 %v3842
    %v4363 = vunpack.c.l.b16 %v3843
    %v4364 = vunpack.c.l.b16 %v3844
    %v4365 = vunpack.c.l.b16 %v3845
    %v4366 = vunpack.c.l.b16 %v3846
    %v4367 = vunpack.c.l.b16 %v3847
    %v4368 = vunpack.c.l.b16 %v3848
    %v4369 = vunpack.c.l.b16 %v3849
    %v4370 = vunpack.c.l.b16 %v3850
    %v4371 = vunpack.c.l.b16 %v3851
    %v4372 = vunpack.c.l.b16 %v3852
    %v4373 = vunpack.c.l.b16 %v3853
    %v4374 = vunpack.c.l.b16 %v3854
    %v4375 = vunpack.c.l.b16 %v3855
    %v4376 = vunpack.c.l.b16 %v3856
    %v4377 = vunpack.c.l.b16 %v3857
    %v4378 = vunpack.c.l.b16 %v3858
    %v4379 = vunpack.c.l.b16 %v3859
    %v4380 = vunpack.c.l.b16 %v3860
    %v4381 = vunpack.c.l.b16 %v3861
    %v4382 = vunpack.c.l.b16 %v3862
    %v4383 = vunpack.c.l.b16 %v3863
    %v4384 = vunpack.c.l.b16 %v3864
    %v4385 = vunpack.c.l.b16 %v3865
    %v4386 = vunpack.c.l.b16 %v3866
    %v4387 = vunpack.c.l.b16 %v3867
    %v4388 = vunpack.c.l.b16 %v3868
    %v4389 = vunpack.c.l.b16 %v3869
    %v4390 = vunpack.c.l.b16 %v3870
    %v4391 = vunpack.c.l.b16 %v3871
    %v4392 = vunpack.c.l.b16 %v3872
    %v4393 = vunpack.c.l.b16 %v3873
    %v4394 = vunpack.c.l.b16 %v3874
    %v4395 = vunpack.c.l.b16 %v3875
    %v4396 = vunpack.c.l.b16 %v3876
    %v4397 = vunpack.c.l.b16 %v3877
    %v4398 = vunpack.c.l.b16 %v3878
    %v4399 = vunpack.c.l.b16 %v3879
    %v4400 = vunpack.c.l.b16 %v3880
    %v4401 = vunpack.c.l.b16 %v3881
    %v4402 = vunpack.c.l.b16 %v3882
    %v4403 = vunpack.c.l.b16 %v3883
    %v4404 = vunpack.c.l.b16 %v3884
    %v4405 = vunpack.c.l.b16 %v3885
    %v4406 = vunpack.c.l.b16 %v3886
    %v4407 = vunpack.c.l.b16 %v3887
    %v4408 = vunpack.c.l.b16 %v3888
    %v4409 = vunpack.c.l.b16 %v3889
    %v4410 = vunpack.c.l.b16 %v3890
    %v4411 = vunpack.c.l.b16 %v3891
    %v4412 = vunpack.c.l.b16 %v3892
    %v4413 = vunpack.c.l.b16 %v3893
    %v4414 = vunpack.c.l.b16 %v3894
    %v4415 = vunpack.c.l.b16 %v3895
    %v4416 = vunpack.c.l.b16 %v3896
    %v4417 = vunpack.c.l.b16 %v3897
    %v4418 = vunpack.c.l.b16 %v3898
    %v4419 = vunpack.c.l.b16 %v3899
    %v4420 = vunpack.c.l.b16 %v3900
    %v4421 = vunpack.c.l.b16 %v3901
    %v4422 = vunpack.c.l.b16 %v3902
    %v4423 = vunpack.c.l.b16 %v3903
    %v4424 = vunpack.c.l.b16 %v3904
    %v4425 = vunpack.c.l.b16 %v3905
    %v4426 = vunpack.c.l.b16 %v3906
    %v4427 = vunpack.c.l.b16 %v3907
    %v4428 = vunpack.c.l.b16 %v3908
    %v4429 = vunpack.c.l.b16 %v3909
    %v4430 = vunpack.c.l.b16 %v3910
    %v4431 = vunpack.c.l.b16 %v3911
    %v4432 = vunpack.c.l.b16 %v3912
    %v4433 = vunpack.c.l.b16 %v3913
    %v4434 = vunpack.c.l.b16 %v3914
    %v4435 = vunpack.c.l.b16 %v3915
    %v4436 = vunpack.c.l.b16 %v3916
    %v4437 = vunpack.c.l.b16 %v3917
    %v4438 = vunpack.c.l.b16 %v3918
    %v4439 = vunpack.c.l.b16 %v3919
    %v4440 = vunpack.c.l.b16 %v3920
    %v4441 = vunpack.c.l.b16 %v3921
    %v4442 = vunpack.c.l.b16 %v3922
    %v4443 = vunpack.c.l.b16 %v3923
    %v4444 = vunpack.c.l.b16 %v3924
    %v4445 = vunpack.c.l.b16 %v3925
    %v4446 = vunpack.c.l.b16 %v3926
    %v4447 = vunpack.c.l.b16 %v3927
    %v4448 = vunpack.c.l.b16 %v3928
    %v4449 = vunpack.c.l.b16 %v3929
    %v4450 = vunpack.c.l.b16 %v3930
    %v4451 = vunpack.c.l.b16 %v3931
    %v4452 = vunpack.c.l.b16 %v3932
    %v4453 = vunpack.c.l.b16 %v3933
    %v4454 = vunpack.c.l.b16 %v3934
    %v4455 = vunpack.c.l.b16 %v3935
    %v4456 = vunpack.c.l.b16 %v3936
    %v4457 = vunpack.c.l.b16 %v3937
    %v4458 = vunpack.c.l.b16 %v3938
    %v4459 = vunpack.c.l.b16 %v3939
    %v4460 = vunpack.c.l.b16 %v3940
    %v4461 = vunpack.c.l.b16 %v3941
    %v4462 = vunpack.c.l.b16 %v3942
    %v4463 = vunpack.c.l.b16 %v3943
    %v4464 = vunpack.c.l.b16 %v3944
    %v4465 = vunpack.c.l.b16 %v3945
    %v4466 = vunpack.c.l.b16 %v3946
    %v4467 = vunpack.c.l.b16 %v3947
    %v4468 = vunpack.c.l.b16 %v3948
    %v4469 = vunpack.c.l.b16 %v3949
    %v4470 = vunpack.c.l.b16 %v3950
    %v4471 = vunpack.c.l.b16 %v3951
    %v4472 = vunpack.c.l.b16 %v3952
    %v4473 = vunpack.c.l.b16 %v3953
    %v4474 = vunpack.c.l.b16 %v3954
    %v4475 = vunpack.c.l.b16 %v3955
    %v4476 = vunpack.c.l.b16 %v3956
    %v4477 = vunpack.c.l.b16 %v3957
    %v4478 = vunpack.c.l.b16 %v3958
    %v4479 = vunpack.c.l.b16 %v3959
    %v4480 = vunpack.c.l.b16 %v3960
    %v4481 = vunpack.c.l.b16 %v3961
    %v4482 = vunpack.c.l.b16 %v3962
    %v4483 = vunpack.c.l.b16 %v3963
    %v4484 = vunpack.c.l.b16 %v3964
    %v4485 = vunpack.c.l.b16 %v3965
    %v4486 = vunpack.c.l.b16 %v3966
    %v4487 = vunpack.c.l.b16 %v3967
    %v4488 = vunpack.c.l.b16 %v3968
    %v4489 = vunpack.c.l.b16 %v3969
    %v4490 = vunpack.c.l.b16 %v3970
    %v4491 = vunpack.c.l.b16 %v3971
    %v4492 = vunpack.c.l.b16 %v3972
    %v4493 = vunpack.c.l.b16 %v3973
    %v4494 = vunpack.c.l.b16 %v3974
    %v4495 = vunpack.c.l.b16 %v3975
    %v4496 = vunpack.c.l.b16 %v3976
    %v4497 = vunpack.c.l.b16 %v3977
    %v4498 = vunpack.c.l.b16 %v3978
    %v4499 = vunpack.c.l.b16 %v3979
    %v4500 = vunpack.c.l.b16 %v3980
    %v4501 = vunpack.c.l.b16 %v3981
    %v4502 = vunpack.c.l.b16 %v3982
    %v4503 = vunpack.c.l.b16 %v3983
    %v4504 = vunpack.c.l.b16 %v3984
    %v4505 = vunpack.c.l.b16 %v3985
    %v4506 = vunpack.c.l.b16 %v3986
    %v4507 = vunpack.c.l.b16 %v3987
    %v4508 = vunpack.c.l.b16 %v3988
    %v4509 = vunpack.c.l.b16 %v3989
    %v4510 = vunpack.c.l.b16 %v3990
    %v4511 = vunpack.c.l.b16 %v3991
    %v4512 = vunpack.c.l.b16 %v3992
    %v4513 = vunpack.c.l.b16 %v3993
    %v4514 = vunpack.c.l.b16 %v3994
    %v4515 = vunpack.c.l.b16 %v3995
    %v4516 = vunpack.c.l.b16 %v3996
    %v4517 = vunpack.c.l.b16 %v3997
    %v4518 = vunpack.c.l.b16 %v3998
    %v4519 = vunpack.c.l.b16 %v3999
    %v4520 = vunpack.c.l.b16 %v4000
    %v4521 = vunpack.c.l.b16 %v4001
    %v4522 = vunpack.c.l.b16 %v4002
    %v4523 = vunpack.c.l.b16 %v4003
    %v4524 = vunpack.c.l.b16 %v4004
    %v4525 = vunpack.c.l.b16 %v4005
    %v4526 = vunpack.c.l.b16 %v4006
    %v4527 = vunpack.c.l.b16 %v4007
    %v4528 = vunpack.c.l.b16 %v4008
    %v4529 = vunpack.c.l.b16 %v4009
    %v4530 = vunpack.c.l.b16 %v4010
    %v4531 = vunpack.c.l.b16 %v4011
    %v4532 = vunpack.c.l.b16 %v4012
    %v4533 = vunpack.c.l.b16 %v4013
    %v4534 = vunpack.c.l.b16 %v4014
    %v4535 = vunpack.c.l.b16 %v4015
    %v4536 = vunpack.c.l.b16 %v4016
    %v4537 = vunpack.c.l.b16 %v4017
    %v4538 = vunpack.c.l.b16 %v4018
    %v4539 = vunpack.c.l.b16 %v4019
    %v4540 = vunpack.c.l.b16 %v4020
    %v4541 = vunpack.c.l.b16 %v4021
    %v4542 = vunpack.c.l.b16 %v4022
    %v4543 = vunpack.c.l.b16 %v4023
    %v4544 = vunpack.c.l.b16 %v4024
    %v4545 = vunpack.c.l.b16 %v4025
    %v4546 = vunpack.c.l.b16 %v4026
    %v4547 = vunpack.c.l.b16 %v4027
    %v4548 = vunpack.c.l.b16 %v4028
    %v4549 = vunpack.c.l.b16 %v4029
    %v4550 = vunpack.c.l.b16 %v4030
    %v4551 = vunpack.c.l.b16 %v4031
    %v4552 = vunpack.c.l.b16 %v4032
    %v4553 = vunpack.c.l.b16 %v4033
    %v4554 = vunpack.c.l.b16 %v4034
    %v4555 = vunpack.c.l.b16 %v4035
    %v4556 = vunpack.c.l.b16 %v4036
    %v4557 = vunpack.c.l.b16 %v4037
    %v4558 = vunpack.c.l.b16 %v4038
    %v4559 = vpack.c.b16 %v4304, %v4303
    %v4560 = vpack.c.b16 %v4306, %v4305
    %v4561 = vpack.c.b16 %v4308, %v4307
    %v4562 = vpack.c.b16 %v4310, %v4309
    %v4563 = vpack.c.b16 %v4312, %v4311
    %v4564 = vpack.c.b16 %v4314, %v4313
    %v4565 = vpack.c.b16 %v4316, %v4315
    %v4566 = vpack.c.b16 %v4318, %v4317
    %v4567 = vpack.c.b16 %v4320, %v4319
    %v4568 = vpack.c.b16 %v4322, %v4321
    %v4569 = vpack.c.b16 %v4324, %v4323
    %v4570 = vpack.c.b16 %v4326, %v4325
    %v4571 = vpack.c.b16 %v4328, %v4327
    %v4572 = vpack.c.b16 %v4330, %v4329
    %v4573 = vpack.c.b16 %v4332, %v4331
    %v4574 = vpack.c.b16 %v4334, %v4333
    %v4575 = vpack.c.b16 %v4336, %v4335
    %v4576 = vpack.c.b16 %v4338, %v4337
    %v4577 = vpack.c.b16 %v4340, %v4339
    %v4578 = vpack.c.b16 %v4342, %v4341
    %v4579 = vpack.c.b16 %v4344, %v4343
    %v4580 = vpack.c.b16 %v4346, %v4345
    %v4581 = vpack.c.b16 %v4348, %v4347
    %v4582 = vpack.c.b16 %v4350, %v4349
    %v4583 = vpack.c.b16 %v4352, %v4351
    %v4584 = vpack.c.b16 %v4354, %v4353
    %v4585 = vpack.c.b16 %v4356, %v4355
    %v4586 = vpack.c.b16 %v4358, %v4357
    %v4587 = vpack.c.b16 %v4360, %v4359
    %v4588 = vpack.c.b16 %v4362, %v4361
    %v4589 = vpack.c.b16 %v4364, %v4363
    %v4590 = vpack.c.b16 %v4366, %v4365
    %v4591 = vpack.c.b16 %v4368, %v4367
    %v4592 = vpack.c.b16 %v4370, %v4369
    %v4593 = vpack.c.b16 %v4372, %v4371
    %v4594 = vpack.c.b16 %v4374, %v4373
    %v4595 = vpack.c.b16 %v4376, %v4375
    %v4596 = vpack.c.b16 %v4378, %v4377
    %v4597 = vpack.c.b16 %v4380, %v4379
    %v4598 = vpack.c.b16 %v4382, %v4381
    %v4599 = vpack.c.b16 %v4384, %v4383
    %v4600 = vpack.c.b16 %v4386, %v4385
    %v4601 = vpack.c.b16 %v4388, %v4387
    %v4602 = vpack.c.b16 %v4390, %v4389
    %v4603 = vpack.c.b16 %v4392, %v4391
    %v4604 = vpack.c.b16 %v4394, %v4393
    %v4605 = vpack.c.b16 %v4396, %v4395
    %v4606 = vpack.c.b16 %v4398, %v4397
    %v4607 = vpack.c.b16 %v4400, %v4399
    %v4608 = vpack.c.b16 %v4402, %v4401
    %v4609 = vpack.c.b16 %v4404, %v4403
    %v4610 = vpack.c.b16 %v4406, %v4405
    %v4611 = vpack.c.b16 %v4408, %v4407
    %v4612 = vpack.c.b16 %v4410, %v4409
    %v4613 = vpack.c.b16 %v4412, %v4411
    %v4614 = vpack.c.b16 %v4414, %v4413
    %v4615 = vpack.c.b16 %v4416, %v4415
    %v4616 = vpack.c.b16 %v4418, %v4417
    %v4617 = vpack.c.b16 %v4420, %v4419
    %v4618 = vpack.c.b16 %v4422, %v4421
    %v4619 = vpack.c.b16 %v4424, %v4423
    %v4620 = vpack.c.b16 %v4426, %v4425
    %v4621 = vpack.c.b16 %v4428, %v4427
    %v4622 = vpack.c.b16 %v4430, %v4429
    %v4623 = vpack.c.b16 %v4432, %v4431
    %v4624 = vpack.c.b16 %v4434, %v4433
    %v4625 = vpack.c.b16 %v4436, %v4435
    %v4626 = vpack.c.b16 %v4438, %v4437
    %v4627 = vpack.c.b16 %v4440, %v4439
    %v4628 = vpack.c.b16 %v4442, %v4441
    %v4629 = vpack.c.b16 %v4444, %v4443
    %v4630 = vpack.c.b16 %v4446, %v4445
    %v4631 = vpack.c.b16 %v4448, %v4447
    %v4632 = vpack.c.b16 %v4450, %v4449
    %v4633 = vpack.c.b16 %v4452, %v4451
    %v4634 = vpack.c.b16 %v4454, %v4453
    %v4635 = vpack.c.b16 %v4456, %v4455
    %v4636 = vpack.c.b16 %v4458, %v4457
    %v4637 = vpack.c.b16 %v4460, %v4459
    %v4638 = vpack.c.b16 %v4462, %v4461
    %v4639 = vpack.c.b16 %v4464, %v4463
    %v4640 = vpack.c.b16 %v4466, %v4465
    %v4641 = vpack.c.b16 %v4468, %v4467
    %v4642 = vpack.c.b16 %v4470, %v4469
    %v4643 = vpack.c.b16 %v4472, %v4471
    %v4644 = vpack.c.b16 %v4474, %v4473
    %v4645 = vpack.c.b16 %v4476, %v4475
    %v4646 = vpack.c.b16 %v4478, %v4477
    %v4647 = vpack.c.b16 %v4480, %v4479
    %v4648 = vpack.c.b16 %v4482, %v4481
    %v4649 = vpack.c.b16 %v4484, %v4483
    %v4650 = vpack.c.b16 %v4486, %v4485
    %v4651 = vpack.c.b16 %v4488, %v4487
    %v4652 = vpack.c.b16 %v4490, %v4489
    %v4653 = vpack.c.b16 %v4492, %v4491
    %v4654 = vpack.c.b16 %v4494, %v4493
    %v4655 = vpack.c.b16 %v4496, %v4495
    %v4656 = vpack.c.b16 %v4498, %v4497
    %v4657 = vpack.c.b16 %v4500, %v4499
    %v4658 = vpack.c.b16 %v4502, %v4501
    %v4659 = vpack.c.b16 %v4504, %v4503
    %v4660 = vpack.c.b16 %v4506, %v4505
    %v4661 = vpack.c.b16 %v4508, %v4507
    %v4662 = vpack.c.b16 %v4510, %v4509
    %v4663 = vpack.c.b16 %v4512, %v4511
    %v4664 = vpack.c.b16 %v4514, %v4513
    %v4665 = vpack.c.b16 %v4516, %v4515
    %v4666 = vpack.c.b16 %v4518, %v4517
    %v4667 = vpack.c.b16 %v4520, %v4519
    %v4668 = vpack.c.b16 %v4522, %v4521
    %v4669 = vpack.c.b16 %v4524, %v4523
    %v4670 = vpack.c.b16 %v4526, %v4525
    %v4671 = vpack.c.b16 %v4528, %v4527
    %v4672 = vpack.c.b16 %v4530, %v4529
    %v4673 = vpack.c.b16 %v4532, %v4531
    %v4674 = vpack.c.b16 %v4534, %v4533
    %v4675 = vpack.c.b16 %v4536, %v4535
    %v4676 = vpack.c.b16 %v4538, %v4537
    %v4677 = vpack.c.b16 %v4540, %v4539
    %v4678 = vpack.c.b16 %v4542, %v4541
    %v4679 = vpack.c.b16 %v4544, %v4543
    %v4680 = vpack.c.b16 %v4546, %v4545
    %v4681 = vpack.c.b16 %v4548, %v4547
    %v4682 = vpack.c.b16 %v4550, %v4549
    %v4683 = vpack.c.b16 %v4552, %v4551
    %v4684 = vpack.c.b16 %v4554, %v4553
    %v4685 = vpack.c.b16 %v4556, %v4555
    %v4686 = vpack.c.b16 %v4558, %v4557
    %4815 = vmatprep.subr.bf16.mxu0 0
    %4816 = vmatpush1.bf16.msra.mxu0 %v4559
    %4817 = vmatprep.subr.bf16.mxu0 0
    %4818 = vmatpush1.bf16.msra.mxu0 %v4560
    %4819 = vmatprep.subr.bf16.mxu0 0
    %4820 = vmatpush1.bf16.msra.mxu0 %v4561
    %4821 = vmatprep.subr.bf16.mxu0 0
    %4822 = vmatpush1.bf16.msra.mxu0 %v4562
    %4823 = vmatprep.subr.bf16.mxu0 0
    %4824 = vmatpush1.bf16.msra.mxu0 %v4563
    %4825 = vmatprep.subr.bf16.mxu0 0
    %4826 = vmatpush1.bf16.msra.mxu0 %v4564
    %4827 = vmatprep.subr.bf16.mxu0 0
    %4828 = vmatpush1.bf16.msra.mxu0 %v4565
    %4829 = vmatprep.subr.bf16.mxu0 0
    %4830 = vmatpush1.bf16.msra.mxu0 %v4566
    %4831 = vmatprep.subr.bf16.mxu0 0
    %4832 = vmatpush1.bf16.msra.mxu0 %v4567
    %4833 = vmatprep.subr.bf16.mxu0 0
    %4834 = vmatpush1.bf16.msra.mxu0 %v4568
    %4835 = vmatprep.subr.bf16.mxu0 0
    %4836 = vmatpush1.bf16.msra.mxu0 %v4569
    %4837 = vmatprep.subr.bf16.mxu0 0
    %4838 = vmatpush1.bf16.msra.mxu0 %v4570
    %4839 = vmatprep.subr.bf16.mxu0 0
    %4840 = vmatpush1.bf16.msra.mxu0 %v4571
    %4841 = vmatprep.subr.bf16.mxu0 0
    %4842 = vmatpush1.bf16.msra.mxu0 %v4572
    %4843 = vmatprep.subr.bf16.mxu0 0
    %4844 = vmatpush1.bf16.msra.mxu0 %v4573
    %4845 = vmatprep.subr.bf16.mxu0 0
    %4846 = vmatpush1.bf16.msra.mxu0 %v4574
    %4847 = vmatprep.mubr.bf16.mxu0 %v3767
    %4848 = vmatmul.mubr.bf16.gmra.mrb[0].mxu0 %v3766
    %v4849 = vpop.f32.mrb[0].mxu0
    %v4850 = vadd.f32 %v4045, %v4849
    %v4851 = vpop.f32.mrb[0].mxu0
    %v4852 = vpop.f32.mrb[0].mxu0
    %v4853 = vpop.f32.mrb[0].mxu0
    %4854 = vdwg.mxu0
    %4855 = vmatprep.subr.bf16.mxu0 0
    %4856 = vmatpush1.bf16.msra.mxu0 %v4575
    %4857 = vmatprep.subr.bf16.mxu0 0
    %4858 = vmatpush1.bf16.msra.mxu0 %v4576
    %4859 = vmatprep.subr.bf16.mxu0 0
    %4860 = vmatpush1.bf16.msra.mxu0 %v4577
    %4861 = vmatprep.subr.bf16.mxu0 0
    %4862 = vmatpush1.bf16.msra.mxu0 %v4578
    %4863 = vmatprep.subr.bf16.mxu0 0
    %4864 = vmatpush1.bf16.msra.mxu0 %v4579
    %4865 = vmatprep.subr.bf16.mxu0 0
    %4866 = vmatpush1.bf16.msra.mxu0 %v4580
    %4867 = vmatprep.subr.bf16.mxu0 0
    %4868 = vmatpush1.bf16.msra.mxu0 %v4581
    %4869 = vmatprep.subr.bf16.mxu0 0
    %4870 = vmatpush1.bf16.msra.mxu0 %v4582
    %4871 = vmatprep.subr.bf16.mxu0 0
    %4872 = vmatpush1.bf16.msra.mxu0 %v4583
    %4873 = vmatprep.subr.bf16.mxu0 0
    %4874 = vmatpush1.bf16.msra.mxu0 %v4584
    %4875 = vmatprep.subr.bf16.mxu0 0
    %4876 = vmatpush1.bf16.msra.mxu0 %v4585
    %4877 = vmatprep.subr.bf16.mxu0 0
    %4878 = vmatpush1.bf16.msra.mxu0 %v4586
    %4879 = vmatprep.subr.bf16.mxu0 0
    %4880 = vmatpush1.bf16.msra.mxu0 %v4587
    %4881 = vmatprep.subr.bf16.mxu0 0
    %4882 = vmatpush1.bf16.msra.mxu0 %v4588
    %4883 = vmatprep.subr.bf16.mxu0 0
    %4884 = vmatpush1.bf16.msra.mxu0 %v4589
    %4885 = vmatprep.subr.bf16.mxu0 0
    %4886 = vmatpush1.bf16.msra.mxu0 %v4590
    %4887 = vmatprep.mubr.bf16.mxu0 %v3769
    %4888 = vmatmul.mubr.bf16.gmra.mrb[0].mxu0 %v3768
    %v4889 = vpop.f32.mrb[0].mxu0
    %v4890 = vadd.f32 %v4850, %v4889
    %v4891 = vpop.f32.mrb[0].mxu0
    %v4892 = vpop.f32.mrb[0].mxu0
    %v4893 = vpop.f32.mrb[0].mxu0
    %4894 = vdwg.mxu0
    %4895 = vmatprep.subr.bf16.mxu0 0
    %4896 = vmatpush1.bf16.msra.mxu0 %v4591
    %4897 = vmatprep.subr.bf16.mxu0 0
    %4898 = vmatpush1.bf16.msra.mxu0 %v4592
    %4899 = vmatprep.subr.bf16.mxu0 0
    %4900 = vmatpush1.bf16.msra.mxu0 %v4593
    %4901 = vmatprep.subr.bf16.mxu0 0
    %4902 = vmatpush1.bf16.msra.mxu0 %v4594
    %4903 = vmatprep.subr.bf16.mxu0 0
    %4904 = vmatpush1.bf16.msra.mxu0 %v4595
    %4905 = vmatprep.subr.bf16.mxu0 0
    %4906 = vmatpush1.bf16.msra.mxu0 %v4596
    %4907 = vmatprep.subr.bf16.mxu0 0
    %4908 = vmatpush1.bf16.msra.mxu0 %v4597
    %4909 = vmatprep.subr.bf16.mxu0 0
    %4910 = vmatpush1.bf16.msra.mxu0 %v4598
    %4911 = vmatprep.subr.bf16.mxu0 0
    %4912 = vmatpush1.bf16.msra.mxu0 %v4599
    %4913 = vmatprep.subr.bf16.mxu0 0
    %4914 = vmatpush1.bf16.msra.mxu0 %v4600
    %4915 = vmatprep.subr.bf16.mxu0 0
    %4916 = vmatpush1.bf16.msra.mxu0 %v4601
    %4917 = vmatprep.subr.bf16.mxu0 0
    %4918 = vmatpush1.bf16.msra.mxu0 %v4602
    %4919 = vmatprep.subr.bf16.mxu0 0
    %4920 = vmatpush1.bf16.msra.mxu0 %v4603
    %4921 = vmatprep.subr.bf16.mxu0 0
    %4922 = vmatpush1.bf16.msra.mxu0 %v4604
    %4923 = vmatprep.subr.bf16.mxu0 0
    %4924 = vmatpush1.bf16.msra.mxu0 %v4605
    %4925 = vmatprep.subr.bf16.mxu0 0
    %4926 = vmatpush1.bf16.msra.mxu0 %v4606
    %4927 = vmatprep.mubr.bf16.mxu0 %v3771
    %4928 = vmatmul.mubr.bf16.gmra.mrb[0].mxu0 %v3770
    %v4929 = vpop.f32.mrb[0].mxu0
    %v4930 = vadd.f32 %v4890, %v4929
    %v4931 = vpop.f32.mrb[0].mxu0
    %v4932 = vpop.f32.mrb[0].mxu0
    %v4933 = vpop.f32.mrb[0].mxu0
    %4934 = vdwg.mxu0
    %4935 = vmatprep.subr.bf16.mxu0 0
    %4936 = vmatpush1.bf16.msra.mxu0 %v4607
    %4937 = vmatprep.subr.bf16.mxu0 0
    %4938 = vmatpush1.bf16.msra.mxu0 %v4608
    %4939 = vmatprep.subr.bf16.mxu0 0
    %4940 = vmatpush1.bf16.msra.mxu0 %v4609
    %4941 = vmatprep.subr.bf16.mxu0 0
    %4942 = vmatpush1.bf16.msra.mxu0 %v4610
    %4943 = vmatprep.subr.bf16.mxu0 0
    %4944 = vmatpush1.bf16.msra.mxu0 %v4611
    %4945 = vmatprep.subr.bf16.mxu0 0
    %4946 = vmatpush1.bf16.msra.mxu0 %v4612
    %4947 = vmatprep.subr.bf16.mxu0 0
    %4948 = vmatpush1.bf16.msra.mxu0 %v4613
    %4949 = vmatprep.subr.bf16.mxu0 0
    %4950 = vmatpush1.bf16.msra.mxu0 %v4614
    %4951 = vmatprep.subr.bf16.mxu0 0
    %4952 = vmatpush1.bf16.msra.mxu0 %v4615
    %4953 = vmatprep.subr.bf16.mxu0 0
    %4954 = vmatpush1.bf16.msra.mxu0 %v4616
    %4955 = vmatprep.subr.bf16.mxu0 0
    %4956 = vmatpush1.bf16.msra.mxu0 %v4617
    %4957 = vmatprep.subr.bf16.mxu0 0
    %4958 = vmatpush1.bf16.msra.mxu0 %v4618
    %4959 = vmatprep.subr.bf16.mxu0 0
    %4960 = vmatpush1.bf16.msra.mxu0 %v4619
    %4961 = vmatprep.subr.bf16.mxu0 0
    %4962 = vmatpush1.bf16.msra.mxu0 %v4620
    %4963 = vmatprep.subr.bf16.mxu0 0
    %4964 = vmatpush1.bf16.msra.mxu0 %v4621
    %4965 = vmatprep.subr.bf16.mxu0 0
    %4966 = vmatpush1.bf16.msra.mxu0 %v4622
    %4967 = vmatprep.mubr.bf16.mxu0 %v3773
    %4968 = vmatmul.mubr.bf16.gmra.mrb[0].mxu0 %v3772
    %v4969 = vpop.f32.mrb[0].mxu0
    %v4970 = vadd.f32 %v4930, %v4969
    %v4971 = vpop.f32.mrb[0].mxu0
    %v4972 = vpop.f32.mrb[0].mxu0
    %v4973 = vpop.f32.mrb[0].mxu0
    %4974 = vdwg.mxu0
    %4975 = vmatprep.subr.bf16.mxu0 0
    %4976 = vmatpush1.bf16.msra.mxu0 %v4623
    %4977 = vmatprep.subr.bf16.mxu0 0
    %4978 = vmatpush1.bf16.msra.mxu0 %v4624
    %4979 = vmatprep.subr.bf16.mxu0 0
    %4980 = vmatpush1.bf16.msra.mxu0 %v4625
    %4981 = vmatprep.subr.bf16.mxu0 0
    %4982 = vmatpush1.bf16.msra.mxu0 %v4626
    %4983 = vmatprep.subr.bf16.mxu0 0
    %4984 = vmatpush1.bf16.msra.mxu0 %v4627
    %4985 = vmatprep.subr.bf16.mxu0 0
    %4986 = vmatpush1.bf16.msra.mxu0 %v4628
    %4987 = vmatprep.subr.bf16.mxu0 0
    %4988 = vmatpush1.bf16.msra.mxu0 %v4629
    %4989 = vmatprep.subr.bf16.mxu0 0
    %4990 = vmatpush1.bf16.msra.mxu0 %v4630
    %4991 = vmatprep.subr.bf16.mxu0 0
    %4992 = vmatpush1.bf16.msra.mxu0 %v4631
    %4993 = vmatprep.subr.bf16.mxu0 0
    %4994 = vmatpush1.bf16.msra.mxu0 %v4632
    %4995 = vmatprep.subr.bf16.mxu0 0
    %4996 = vmatpush1.bf16.msra.mxu0 %v4633
    %4997 = vmatprep.subr.bf16.mxu0 0
    %4998 = vmatpush1.bf16.msra.mxu0 %v4634
    %4999 = vmatprep.subr.bf16.mxu0 0
    %5000 = vmatpush1.bf16.msra.mxu0 %v4635
    %5001 = vmatprep.subr.bf16.mxu0 0
    %5002 = vmatpush1.bf16.msra.mxu0 %v4636
    %5003 = vmatprep.subr.bf16.mxu0 0
    %5004 = vmatpush1.bf16.msra.mxu0 %v4637
    %5005 = vmatprep.subr.bf16.mxu0 0
    %5006 = vmatpush1.bf16.msra.mxu0 %v4638
    %5007 = vmatprep.mubr.bf16.mxu0 %v3775
    %5008 = vmatmul.mubr.bf16.gmra.mrb[0].mxu0 %v3774
    %v5009 = vpop.f32.mrb[0].mxu0
    %v5010 = vadd.f32 %v4970, %v5009
    %v5011 = vpop.f32.mrb[0].mxu0
    %v5012 = vpop.f32.mrb[0].mxu0
    %v5013 = vpop.f32.mrb[0].mxu0
    %5014 = vdwg.mxu0
    %5015 = vmatprep.subr.bf16.mxu0 0
    %5016 = vmatpush1.bf16.msra.mxu0 %v4639
    %5017 = vmatprep.subr.bf16.mxu0 0
    %5018 = vmatpush1.bf16.msra.mxu0 %v4640
    %5019 = vmatprep.subr.bf16.mxu0 0
    %5020 = vmatpush1.bf16.msra.mxu0 %v4641
    %5021 = vmatprep.subr.bf16.mxu0 0
    %5022 = vmatpush1.bf16.msra.mxu0 %v4642
    %5023 = vmatprep.subr.bf16.mxu0 0
    %5024 = vmatpush1.bf16.msra.mxu0 %v4643
    %5025 = vmatprep.subr.bf16.mxu0 0
    %5026 = vmatpush1.bf16.msra.mxu0 %v4644
    %5027 = vmatprep.subr.bf16.mxu0 0
    %5028 = vmatpush1.bf16.msra.mxu0 %v4645
    %5029 = vmatprep.subr.bf16.mxu0 0
    %5030 = vmatpush1.bf16.msra.mxu0 %v4646
    %5031 = vmatprep.subr.bf16.mxu0 0
    %5032 = vmatpush1.bf16.msra.mxu0 %v4647
    %5033 = vmatprep.subr.bf16.mxu0 0
    %5034 = vmatpush1.bf16.msra.mxu0 %v4648
    %5035 = vmatprep.subr.bf16.mxu0 0
    %5036 = vmatpush1.bf16.msra.mxu0 %v4649
    %5037 = vmatprep.subr.bf16.mxu0 0
    %5038 = vmatpush1.bf16.msra.mxu0 %v4650
    %5039 = vmatprep.subr.bf16.mxu0 0
    %5040 = vmatpush1.bf16.msra.mxu0 %v4651
    %5041 = vmatprep.subr.bf16.mxu0 0
    %5042 = vmatpush1.bf16.msra.mxu0 %v4652
    %5043 = vmatprep.subr.bf16.mxu0 0
    %5044 = vmatpush1.bf16.msra.mxu0 %v4653
    %5045 = vmatprep.subr.bf16.mxu0 0
    %5046 = vmatpush1.bf16.msra.mxu0 %v4654
    %5047 = vmatprep.mubr.bf16.mxu0 %v3777
    %5048 = vmatmul.mubr.bf16.gmra.mrb[0].mxu0 %v3776
    %v5049 = vpop.f32.mrb[0].mxu0
    %v5050 = vadd.f32 %v5010, %v5049
    %v5051 = vpop.f32.mrb[0].mxu0
    %v5052 = vpop.f32.mrb[0].mxu0
    %v5053 = vpop.f32.mrb[0].mxu0
    %5054 = vdwg.mxu0
    %5055 = vmatprep.subr.bf16.mxu0 0
    %5056 = vmatpush1.bf16.msra.mxu0 %v4655
    %5057 = vmatprep.subr.bf16.mxu0 0
    %5058 = vmatpush1.bf16.msra.mxu0 %v4656
    %5059 = vmatprep.subr.bf16.mxu0 0
    %5060 = vmatpush1.bf16.msra.mxu0 %v4657
    %5061 = vmatprep.subr.bf16.mxu0 0
    %5062 = vmatpush1.bf16.msra.mxu0 %v4658
    %5063 = vmatprep.subr.bf16.mxu0 0
    %5064 = vmatpush1.bf16.msra.mxu0 %v4659
    %5065 = vmatprep.subr.bf16.mxu0 0
    %5066 = vmatpush1.bf16.msra.mxu0 %v4660
    %5067 = vmatprep.subr.bf16.mxu0 0
    %5068 = vmatpush1.bf16.msra.mxu0 %v4661
    %5069 = vmatprep.subr.bf16.mxu0 0
    %5070 = vmatpush1.bf16.msra.mxu0 %v4662
    %5071 = vmatprep.subr.bf16.mxu0 0
    %5072 = vmatpush1.bf16.msra.mxu0 %v4663
    %5073 = vmatprep.subr.bf16.mxu0 0
    %5074 = vmatpush1.bf16.msra.mxu0 %v4664
    %5075 = vmatprep.subr.bf16.mxu0 0
    %5076 = vmatpush1.bf16.msra.mxu0 %v4665
    %5077 = vmatprep.subr.bf16.mxu0 0
    %5078 = vmatpush1.bf16.msra.mxu0 %v4666
    %5079 = vmatprep.subr.bf16.mxu0 0
    %5080 = vmatpush1.bf16.msra.mxu0 %v4667
    %5081 = vmatprep.subr.bf16.mxu0 0
    %5082 = vmatpush1.bf16.msra.mxu0 %v4668
    %5083 = vmatprep.subr.bf16.mxu0 0
    %5084 = vmatpush1.bf16.msra.mxu0 %v4669
    %5085 = vmatprep.subr.bf16.mxu0 0
    %5086 = vmatpush1.bf16.msra.mxu0 %v4670
    %5087 = vmatprep.mubr.bf16.mxu0 %v3779
    %5088 = vmatmul.mubr.bf16.gmra.mrb[0].mxu0 %v3778
    %v5089 = vpop.f32.mrb[0].mxu0
    %v5090 = vadd.f32 %v5050, %v5089
    %v5091 = vpop.f32.mrb[0].mxu0
    %v5092 = vpop.f32.mrb[0].mxu0
    %v5093 = vpop.f32.mrb[0].mxu0
    %5094 = vdwg.mxu0
    %5095 = vmatprep.subr.bf16.mxu0 0
    %5096 = vmatpush1.bf16.msra.mxu0 %v4671
    %5097 = vmatprep.subr.bf16.mxu0 0
    %5098 = vmatpush1.bf16.msra.mxu0 %v4672
    %5099 = vmatprep.subr.bf16.mxu0 0
    %5100 = vmatpush1.bf16.msra.mxu0 %v4673
    %5101 = vmatprep.subr.bf16.mxu0 0
    %5102 = vmatpush1.bf16.msra.mxu0 %v4674
    %5103 = vmatprep.subr.bf16.mxu0 0
    %5104 = vmatpush1.bf16.msra.mxu0 %v4675
    %5105 = vmatprep.subr.bf16.mxu0 0
    %5106 = vmatpush1.bf16.msra.mxu0 %v4676
    %5107 = vmatprep.subr.bf16.mxu0 0
    %5108 = vmatpush1.bf16.msra.mxu0 %v4677
    %5109 = vmatprep.subr.bf16.mxu0 0
    %5110 = vmatpush1.bf16.msra.mxu0 %v4678
    %5111 = vmatprep.subr.bf16.mxu0 0
    %5112 = vmatpush1.bf16.msra.mxu0 %v4679
    %5113 = vmatprep.subr.bf16.mxu0 0
    %5114 = vmatpush1.bf16.msra.mxu0 %v4680
    %5115 = vmatprep.subr.bf16.mxu0 0
    %5116 = vmatpush1.bf16.msra.mxu0 %v4681
    %5117 = vmatprep.subr.bf16.mxu0 0
    %5118 = vmatpush1.bf16.msra.mxu0 %v4682
    %5119 = vmatprep.subr.bf16.mxu0 0
    %5120 = vmatpush1.bf16.msra.mxu0 %v4683
    %5121 = vmatprep.subr.bf16.mxu0 0
    %5122 = vmatpush1.bf16.msra.mxu0 %v4684
    %5123 = vmatprep.subr.bf16.mxu0 0
    %5124 = vmatpush1.bf16.msra.mxu0 %v4685
    %5125 = vmatprep.subr.bf16.mxu0 0
    %5126 = vmatpush1.bf16.msra.mxu0 %v4686
    %5127 = vmatprep.mubr.bf16.mxu0 %v3781
    %5128 = vmatmul.mubr.bf16.gmra.mrb[0].mxu0 %v3780
    %v5129 = vpop.f32.mrb[0].mxu0
    %v5130 = vadd.f32 %v5090, %v5129
    %v5131 = vpop.f32.mrb[0].mxu0
    %v5132 = vpop.f32.mrb[0].mxu0
    %v5133 = vpop.f32.mrb[0].mxu0
    %5134 = vdwg.mxu0
    %v5135 = vadd.f32 %v3139, %v5130
    %s5136 = scalar_lea.vmem %s18, 1
    %v5137 = vld [vmem:[%s5136] sm:$0x1]
    %s5138 = scalar_lea.vmem %s19, 1
    %v5139 = vld [vmem:[%s5138] sm:$0x1]
    %v5140 = vsel %vm662, %v5135, 0.0
    %5141 = vadd.xlane.f32.xlu0 %v5140
    %v5142 = vpop.xlane.xlu0 %5141
    %v5143 = vmul.f32 %v5142, %v666
    %v5144 = vsub.f32 %v5135, %v5143
    %v5145 = vmul.f32 %v5144, %v5144
    %v5146 = vsel %vm662, %v5145, 0.0
    %5147 = vadd.xlane.f32.xlu0 %v5146
    %v5148 = vpop.xlane.xlu0 %5147
    %v5149 = vmul.f32 %v5148, %v666
    %v5150 = vadd.f32 %v5149, 1e-05
    %v5151 = vrsqrt.pop %v5150
    %v5152 = vmul.f32 %v5144, %v5151
    %v5154 = vlaneseq
    %v5155 = vshrl.u32 %v5154, 7
    %v5156 = vsub.s32 0, %v5155
    %v5157 = vrot.slane %v5137, %v5156
    %v5159 = vmul.f32 %v5152, %v5157
    %v5161 = vlaneseq
    %v5162 = vshrl.u32 %v5161, 7
    %v5163 = vsub.s32 0, %v5162
    %v5164 = vrot.slane %v5139, %v5163
    %v5166 = vadd.f32 %v5159, %v5164
    %v5167 = vld [vmem:[%s20] sm:$0x1]
    %v5169 = vlaneseq
    %v5170 = vshrl.u32 %v5169, 7
    %v5171 = vsub.s32 0, %v5170
    %v5172 = vrot.slane %v5167, %v5171
    %v5174 = vmul.f32 %v5166, %v5172
    %v5175 = vsel %vm662, %v5174, 0.0
    %5176 = vadd.xlane.f32.xlu0 %v5175
    %v5177 = vpop.xlane.xlu0 %5176
    %v5178 = vld [vmem:[#allocation2] sm:$0x1]
    %v5180 = vlaneseq
    %v5181 = vshrl.u32 %v5180, 7
    %v5182 = vsub.s32 0, %v5181
    %v5183 = vrot.slane %v5178, %v5182
    %v5185 = vadd.f32 %v5177, %v5183
    %v5187 = vrot.slane %v5185, 2
    %v5189 = vmax.f32 %v5185, %v5187
    %v5190 = vrot.slane %v5185, 4
    %v5192 = vmax.f32 %v5189, %v5190
    %v5193 = vsub.f32 %v5185, %v5192
    %v5194 = vmul.f32 %v5193, 1.442695
    %v5195 = vpow.pop %v5194
    %v5197 = vrot.slane %v5192, 6
    %v5199 = vsub.f32 %v5185, %v5197
    %v5200 = vmul.f32 %v5199, 1.442695
    %v5201 = vpow.pop %v5200
    %v5202 = vrot.slane %v5192, 4
    %v5204 = vsub.f32 %v5185, %v5202
    %v5205 = vmul.f32 %v5204, 1.442695
    %v5206 = vpow.pop %v5205
    %v5208 = vrot.slane %v5201, 2
    %v5210 = vadd.f32 %v5195, %v5208
    %v5212 = vrot.slane %v5206, 4
    %v5214 = vadd.f32 %v5210, %v5212
    %v5215 = vrcp.pop %v5214
    %5217 = vset.pattern.permute.xlu0 0
    %5218 = vperm.xlu0 %5217, %v5195
    %v5219 = vpop.permute.xlu0 %5218
    %v5221 = vmul.f32 %v5219, %v5166
    %5222 = vset.pattern.permute.xlu0 0
    %5223 = vperm.xlu0 %5222, %v5201
    %v5224 = vpop.permute.xlu0 %5223
    %v5226 = vmul.f32 %v5224, %v5166
    %v5228 = vrot.slane %v5226, 2
    %v5230 = vadd.f32 %v5221, %v5228
    %5231 = vset.pattern.permute.xlu0 0
    %5232 = vperm.xlu0 %5231, %v5206
    %v5233 = vpop.permute.xlu0 %5232
    %v5235 = vmul.f32 %v5233, %v5166
    %v5237 = vrot.slane %v5235, 4
    %v5239 = vadd.f32 %v5230, %v5237
    %5241 = vset.pattern.permute.xlu0 0
    %5242 = vperm.xlu0 %5241, %v5215
    %v5243 = vpop.permute.xlu0 %5242
    %v5245 = vmul.f32 %v5239, %v5243
    %vm5246 = vcmask 254976
    %5247 = vst.msk [vmem:[#allocation3] sm:$0x3] %vm5246, %v5245
    // Predicated region
    $region90: #{multimodal_feature_block.1} parent=1 // pred_check
      _
    $region91: #{multimodal_feature_block.1} parent=1 // pred_check_branch
      %5249 = sbr.rel (0) target = $region93
    $region92: #{multimodal_feature_block.1} parent=1 // pred_region
      %s5251 = ssub.s32 32, 32
      %5252 = vsyncadd [#allocation4], %s5251
      %s5254 = sshll.u32 [#allocation3], 4
      %s5255 = int_to_ptr.vmem [resolvable:$true] %s5254
      %5257 = dma.vmem_to_hbm [thread:$0]  %s5255, 32, %s22, [#allocation4]
    $region93: #{multimodal_feature_block.1} parent=1 // pred_fallthru
      _
    // Predicated region
    $region94: #{multimodal_feature_block.1} parent=1 // pred_check
      _
    $region95: #{multimodal_feature_block.1} parent=1 // pred_check_branch
      %5259 = sbr.rel (0) target = $region97
    $region96: #{multimodal_feature_block.1} parent=1 // pred_region
      %5260 = dma.done [#allocation4], 32
    $region97: #{multimodal_feature_block.1} parent=1 // pred_fallthru
      _
    %5261 = vsyncpa [#allocation4], 1

</llo_original>
